<compile_context>
chip_gen: v7x
topology: tpu7x:2x2x1
jax: 0.10.0
libtpu: 0.0.40
codegen_flags: <defaults>
</compile_context>

<pallas_src>
import functools

import jax
import jax.numpy as jnp
from jax.experimental import pallas as pl
from jax.experimental.pallas import tpu as pltpu


# ---------------------------------------------------------------------------
# Fused GEMM + bias + activation Pallas kernels
# ---------------------------------------------------------------------------
def _apply_act(x, act):
    if act == "relu":
        return jnp.maximum(x, 0.0)
    if act == "tanh":
        return jnp.tanh(x)
    return x


def _gemm_kernel(x_ref, w_ref, o_ref, acc_ref, *, act):
    @pl.when(pl.program_id(3) == 0)
    def _init():
        acc_ref[...] = jnp.zeros_like(acc_ref)

    acc_ref[...] += jnp.dot(x_ref[...], w_ref[...],
                            preferred_element_type=jnp.float32)

    @pl.when(pl.program_id(3) == pl.num_programs(3) - 1)
    def _fin():
        o_ref[...] = _apply_act(acc_ref[...], act).astype(o_ref.dtype)


def _gemm_bias_kernel(x_ref, w_ref, b_ref, o_ref, acc_ref, *, act):
    @pl.when(pl.program_id(3) == 0)
    def _init():
        acc_ref[...] = jnp.zeros_like(acc_ref)

    acc_ref[...] += jnp.dot(x_ref[...], w_ref[...],
                            preferred_element_type=jnp.float32)

    @pl.when(pl.program_id(3) == pl.num_programs(3) - 1)
    def _fin():
        o_ref[...] = _apply_act(acc_ref[...] + b_ref[...], act).astype(o_ref.dtype)


def _round_up(x, m):
    return (x + m - 1) // m * m


def fused_matmul(x, w, b, act, out_dtype):
    """Batched fused GEMM: out[g] = act(x[g] @ w[g] + b).

    x: (G, M, K) float; w: (G, K, Nout) float; b: (Nout,) float or None.
    Operands are cast to bf16 for the MXU, accumulated in f32.
    Returns (G, M, Nout) in `out_dtype`.
    """
    G, M, K = x.shape
    _, _, Nout = w.shape

    # Lane-dense output: pad Nout to a multiple of 128.
    Np = _round_up(Nout, 128)
    tn = 512 if Np % 512 == 0 else (256 if Np % 256 == 0 else 128)

    # M tile: up to 512 rows, multiple of 8 sublanes; pad M to the tile.
    tm = min(512, _round_up(M, 8))
    Mp = _round_up(M, tm)

    # K tile: full K when small, otherwise 512-wide reduction steps.
    if K <= 512:
        tk, Kp = K, K
    else:
        tk = 512
        Kp = _round_up(K, tk)

    xb = jnp.pad(x.astype(jnp.bfloat16), ((0, 0), (0, Mp - M), (0, Kp - K)))
    wb = jnp.pad(w.astype(jnp.bfloat16), ((0, 0), (0, Kp - K), (0, Np - Nout)))

    grid = (G, Mp // tm, Np // tn, Kp // tk)

    if b is not None:
        bb = jnp.pad(b.astype(jnp.float32), (0, Np - Nout)).reshape(1, Np)
        kernel = functools.partial(_gemm_bias_kernel, act=act)
        in_specs = [
            pl.BlockSpec((None, tm, tk), lambda g, i, j, k: (g, i, k)),
            pl.BlockSpec((None, tk, tn), lambda g, i, j, k: (g, k, j)),
            pl.BlockSpec((1, tn), lambda g, i, j, k: (0, j)),
        ]
        args = (xb, wb, bb)
    else:
        kernel = functools.partial(_gemm_kernel, act=act)
        in_specs = [
            pl.BlockSpec((None, tm, tk), lambda g, i, j, k: (g, i, k)),
            pl.BlockSpec((None, tk, tn), lambda g, i, j, k: (g, k, j)),
        ]
        args = (xb, wb)

    out = pl.pallas_call(
        kernel,
        out_shape=jax.ShapeDtypeStruct((G, Mp, Np), out_dtype),
        grid=grid,
        in_specs=in_specs,
        out_specs=pl.BlockSpec((None, tm, tn), lambda g, i, j, k: (g, i, j)),
        scratch_shapes=[pltpu.VMEM((tm, tn), jnp.float32)],
        compiler_params=pltpu.CompilerParams(
            dimension_semantics=("parallel", "parallel", "parallel", "arbitrary"),
            vmem_limit_bytes=48 * 1024 * 1024,
        ),
    )(*args)

    # Trim padded rows/columns before they can leak into the next layer.
    return out[:, :M, :Nout]


# ---------------------------------------------------------------------------
# ConvTranspose2d(k=4, s=2, p=1) via output-parity (sub-pixel) decomposition
# ---------------------------------------------------------------------------
def conv_transpose2d_s2p1k4(x, w, b, act, out_dtype):
    """x: (N, H, W, Cin) NHWC; w: (Cin, Cout, 4, 4) PyTorch ConvTranspose layout.

    out[n, 2*qy+ry, 2*qx+rx, co] is a stride-1 2x2 correlation of the padded
    input with the (ry, rx) parity slice of the flipped kernel.
    """
    N, H, W, Cin = x.shape
    _, Cout, _, _ = w.shape

    xp = jnp.pad(x, ((0, 0), (1, 1), (1, 1), (0, 0)))

    xs, ws = [], []
    for ry in (0, 1):
        for rx in (0, 1):
            # im2col for a 2x2 stride-1 window at offset (ry, rx); columns
            # ordered (dy, dx, ci).
            cols = [xp[:, ry + dy:ry + dy + H, rx + dx:rx + dx + W, :]
                    for dy in (0, 1) for dx in (0, 1)]
            xs.append(jnp.concatenate(cols, axis=-1).reshape(N * H * W, 4 * Cin))
            # Matching kernel taps: ky = [3,1]-ry, kx = [3,1]-rx (flipped order).
            w_sub = w[:, :, (3 - ry)::-2, (3 - rx)::-2]            # (Cin, Cout, 2, 2)
            ws.append(jnp.transpose(w_sub, (2, 3, 0, 1)).reshape(4 * Cin, Cout))

    xg = jnp.stack(xs, axis=0)        # (4, N*H*W, 4*Cin)
    wg = jnp.stack(ws, axis=0)        # (4, 4*Cin, Cout)
    yg = fused_matmul(xg, wg, b, act, out_dtype)   # (4, N*H*W, Cout)

    y = yg.reshape(2, 2, N, H, W, Cout)
    y = jnp.transpose(y, (2, 3, 0, 4, 1, 5)).reshape(N, 2 * H, 2 * W, Cout)
    return y


# ---------------------------------------------------------------------------
# Generator parameters + forward (static config baked in; params = arrays only)
# ---------------------------------------------------------------------------
def init_generator_params(key, channels_noise, channels_img, features_g):
    dims = [
        (channels_noise,  features_g * 16),
        (features_g * 16, features_g * 8),
        (features_g * 8,  features_g * 4),
        (features_g * 4,  features_g * 2),
        (features_g * 2,  channels_img),
    ]
    params = []
    for li, (cin, cout) in enumerate(dims):
        key, wk, bk = jax.random.split(key, 3)
        w = jax.random.normal(wk, (cin, cout, 4, 4), jnp.float32) * 0.05
        b = (jax.random.normal(bk, (cout,), jnp.float32) * 0.05
             if li == len(dims) - 1 else None)      # only the last ConvT has a bias
        params.append((w, b))
    return params


def generator_forward(params, x):
    """x: (N, channels_noise, 1, 1) NCHW. Returns (N, channels_img, 64, 64) NCHW."""
    n_layers = len(params)
    n = x.shape[0]

    # Layer 0: ConvT(k=4, s=1, p=0) on a 1x1 input is a dense projection.
    w0, _ = params[0]
    cin, cout, kh, kw = w0.shape
    x2 = x.reshape(n, cin)
    w_mat = jnp.transpose(w0, (0, 2, 3, 1)).reshape(cin, kh * kw * cout)
    y = fused_matmul(x2[None], w_mat[None], None, "relu", jnp.bfloat16)[0]
    h = y.reshape(n, kh, kw, cout)                       # NHWC, (N, 4, 4, fg*16)

    # Layers 1..4: ConvT(k=4, s=2, p=1), NHWC throughout.
    for li in range(1, n_layers):
        w, b = params[li]
        last = (li == n_layers - 1)
        h = conv_transpose2d_s2p1k4(
            h, w, b,
            act="tanh" if last else "relu",
            out_dtype=jnp.float32 if last else jnp.bfloat16)

    return jnp.transpose(h, (0, 3, 1, 2))                # back to NCHW


if __name__ == "__main__":
    channels_noise, channels_img, features_g = 8, 3, 4
    batch = 2

    key = jax.random.PRNGKey(0)
    key, pkey, xkey = jax.random.split(key, 3)
    params = init_generator_params(pkey, channels_noise, channels_img, features_g)
    x = jax.random.normal(xkey, (batch, channels_noise, 1, 1), jnp.float32)

    out = jax.jit(generator_forward)(params, x)
    out = jax.block_until_ready(out)

    assert out.shape == (batch, channels_img, 64, 64), out.shape
    assert bool(jnp.all(jnp.isfinite(out)))
    assert bool(jnp.all(jnp.abs(out) <= 1.0))            # tanh output range
    print("KERNEL_OK")
</pallas_src>

<mosaic_0001>
module attributes {stable_mosaic.version = 11 : i64} {
  func.func @_gemm_kernel(%arg0: i32, %arg1: i32, %arg2: i32, %arg3: i32, %arg4: memref<1x8x8xbf16, #tpu.memory_space<vmem>>, %arg5: memref<1x8x512xbf16, #tpu.memory_space<vmem>>, %arg6: memref<1x8x512xbf16, #tpu.memory_space<vmem>>, %arg7: memref<8x512xf32, #tpu.memory_space<vmem>>) attributes {dimension_semantics = [#tpu.dimension_semantics<parallel>, #tpu.dimension_semantics<parallel>, #tpu.dimension_semantics<parallel>, #tpu.dimension_semantics<arbitrary>], iteration_bounds = array<i64: 1, 1, 2, 1>, scalar_prefetch = 0 : i64, scratch_operands = 1 : i64, tpu.core_type = #tpu.core_type<tc>, window_params = [{transform_indices = @transform_0, window_bounds = array<i64: 1, 8, 8>}, {transform_indices = @transform_1, window_bounds = array<i64: 1, 8, 512>}, {transform_indices = @transform_2, window_bounds = array<i64: 1, 8, 512>}]} {
    %c0_i32 = arith.constant 0 : i32
    %0 = arith.cmpi eq, %arg3, %c0_i32 : i32
    %1 = arith.extui %0 : i1 to i32
    %c0_i32_0 = arith.constant 0 : i32
    %2 = arith.cmpi ne, %1, %c0_i32_0 : i32
    scf.if %2 {
      %cst_12 = arith.constant 0.000000e+00 : f32
      %14 = vector.broadcast %cst_12 : f32 to vector<8x512xf32>
      %c0_13 = arith.constant 0 : index
      %c0_14 = arith.constant 0 : index
      %15 = vector.load %arg7[%c0_13, %c0_14] : memref<8x512xf32, #tpu.memory_space<vmem>>, vector<8x512xf32>
      tpu.vector_store %arg7[%c0_13, %c0_14], %14 {strides = array<i32>} : memref<8x512xf32, #tpu.memory_space<vmem>>, vector<8x512xf32>,
    } else {
    }
    %c0 = arith.constant 0 : index
    %c0_1 = arith.constant 0 : index
    %3 = vector.load %arg7[%c0, %c0_1] : memref<8x512xf32, #tpu.memory_space<vmem>>, vector<8x512xf32>
    %c0_2 = arith.constant 0 : index
    %c0_3 = arith.constant 0 : index
    %c0_4 = arith.constant 0 : index
    %4 = vector.load %arg4[%c0_2, %c0_3, %c0_4] : memref<1x8x8xbf16, #tpu.memory_space<vmem>>, vector<1x8x8xbf16>
    %5 = vector.shape_cast %4 : vector<1x8x8xbf16> to vector<8x8xbf16>
    %c0_5 = arith.constant 0 : index
    %c0_6 = arith.constant 0 : index
    %c0_7 = arith.constant 0 : index
    %6 = vector.load %arg5[%c0_5, %c0_6, %c0_7] : memref<1x8x512xbf16, #tpu.memory_space<vmem>>, vector<1x8x512xbf16>
    %7 = vector.shape_cast %6 : vector<1x8x512xbf16> to vector<8x512xbf16>
    %cst = arith.constant dense<0.000000e+00> : vector<8x512xf32>
    %8 = tpu.matmul %5, %7, %cst {dimension_numbers = #tpu.dot_dimension_numbers<[1], [0], [0], [1], [0, 0, 1, 1], [], []>} : vector<8x8xbf16>, vector<8x512xbf16>, vector<8x512xf32> -> vector<8x512xf32>
    %9 = arith.addf %3, %8 : vector<8x512xf32>
    %c0_8 = arith.constant 0 : index
    %c0_9 = arith.constant 0 : index
    %10 = vector.load %arg7[%c0_8, %c0_9] : memref<8x512xf32, #tpu.memory_space<vmem>>, vector<8x512xf32>
    tpu.vector_store %arg7[%c0_8, %c0_9], %9 {strides = array<i32>} : memref<8x512xf32, #tpu.memory_space<vmem>>, vector<8x512xf32>,
    %c0_i32_10 = arith.constant 0 : i32
    %11 = arith.cmpi eq, %arg3, %c0_i32_10 : i32
    %12 = arith.extui %11 : i1 to i32
    %c0_i32_11 = arith.constant 0 : i32
    %13 = arith.cmpi ne, %12, %c0_i32_11 : i32
    scf.if %13 {
      %c0_12 = arith.constant 0 : index
      %c0_13 = arith.constant 0 : index
      %14 = vector.load %arg7[%c0_12, %c0_13] : memref<8x512xf32, #tpu.memory_space<vmem>>, vector<8x512xf32>
      %cst_14 = arith.constant 0.000000e+00 : f32
      %15 = vector.broadcast %cst_14 : f32 to vector<8x512xf32>
      %16 = arith.maximumf %14, %15 : vector<8x512xf32>
      %17 = arith.truncf %16 : vector<8x512xf32> to vector<8x512xbf16>
      %c0_15 = arith.constant 0 : index
      %c0_16 = arith.constant 0 : index
      %c0_17 = arith.constant 0 : index
      %18 = vector.load %arg6[%c0_15, %c0_16, %c0_17] : memref<1x8x512xbf16, #tpu.memory_space<vmem>>, vector<1x8x512xbf16>
      %19 = vector.shape_cast %18 : vector<1x8x512xbf16> to vector<8x512xbf16>
      %20 = vector.shape_cast %17 : vector<8x512xbf16> to vector<1x8x512xbf16>
      tpu.vector_store %arg6[%c0_15, %c0_16, %c0_17], %20 {strides = array<i32>} : memref<1x8x512xbf16, #tpu.memory_space<vmem>>, vector<1x8x512xbf16>,
    } else {
    }
    return
  }
  func.func @transform_0(%arg0: i32, %arg1: i32, %arg2: i32, %arg3: i32) -> (i32, i32, i32) {
    %c0_i32 = arith.constant 0 : i32
    return %arg0, %arg1, %arg3 : i32, i32, i32
  }
  func.func @transform_1(%arg0: i32, %arg1: i32, %arg2: i32, %arg3: i32) -> (i32, i32, i32) {
    %c0_i32 = arith.constant 0 : i32
    return %arg0, %arg3, %arg2 : i32, i32, i32
  }
  func.func @transform_2(%arg0: i32, %arg1: i32, %arg2: i32, %arg3: i32) -> (i32, i32, i32) {
    %c0_i32 = arith.constant 0 : i32
    return %arg0, %arg1, %arg2 : i32, i32, i32
  }
}

module attributes {stable_mosaic.version = 11 : i64} {
  func.func @_gemm_kernel(%arg0: i32, %arg1: i32, %arg2: i32, %arg3: i32, %arg4: memref<1x32x256xbf16, #tpu.memory_space<vmem>>, %arg5: memref<1x256x128xbf16, #tpu.memory_space<vmem>>, %arg6: memref<1x32x128xbf16, #tpu.memory_space<vmem>>, %arg7: memref<32x128xf32, #tpu.memory_space<vmem>>) attributes {dimension_semantics = [#tpu.dimension_semantics<parallel>, #tpu.dimension_semantics<parallel>, #tpu.dimension_semantics<parallel>, #tpu.dimension_semantics<arbitrary>], iteration_bounds = array<i64: 4, 1, 1, 1>, scalar_prefetch = 0 : i64, scratch_operands = 1 : i64, tpu.core_type = #tpu.core_type<tc>, window_params = [{transform_indices = @transform_0, window_bounds = array<i64: 1, 32, 256>}, {transform_indices = @transform_1, window_bounds = array<i64: 1, 256, 128>}, {transform_indices = @transform_2, window_bounds = array<i64: 1, 32, 128>}]} {
    %c0_i32 = arith.constant 0 : i32
    %0 = arith.cmpi eq, %arg3, %c0_i32 : i32
    %1 = arith.extui %0 : i1 to i32
    %c0_i32_0 = arith.constant 0 : i32
    %2 = arith.cmpi ne, %1, %c0_i32_0 : i32
    scf.if %2 {
      %cst_12 = arith.constant 0.000000e+00 : f32
      %14 = vector.broadcast %cst_12 : f32 to vector<32x128xf32>
      %c0_13 = arith.constant 0 : index
      %c0_14 = arith.constant 0 : index
      %15 = vector.load %arg7[%c0_13, %c0_14] : memref<32x128xf32, #tpu.memory_space<vmem>>, vector<32x128xf32>
      tpu.vector_store %arg7[%c0_13, %c0_14], %14 {strides = array<i32>} : memref<32x128xf32, #tpu.memory_space<vmem>>, vector<32x128xf32>,
    } else {
    }
    %c0 = arith.constant 0 : index
    %c0_1 = arith.constant 0 : index
    %3 = vector.load %arg7[%c0, %c0_1] : memref<32x128xf32, #tpu.memory_space<vmem>>, vector<32x128xf32>
    %c0_2 = arith.constant 0 : index
    %c0_3 = arith.constant 0 : index
    %c0_4 = arith.constant 0 : index
    %4 = vector.load %arg4[%c0_2, %c0_3, %c0_4] : memref<1x32x256xbf16, #tpu.memory_space<vmem>>, vector<1x32x256xbf16>
    %5 = vector.shape_cast %4 : vector<1x32x256xbf16> to vector<32x256xbf16>
    %c0_5 = arith.constant 0 : index
    %c0_6 = arith.constant 0 : index
    %c0_7 = arith.constant 0 : index
    %6 = vector.load %arg5[%c0_5, %c0_6, %c0_7] : memref<1x256x128xbf16, #tpu.memory_space<vmem>>, vector<1x256x128xbf16>
    %7 = vector.shape_cast %6 : vector<1x256x128xbf16> to vector<256x128xbf16>
    %cst = arith.constant dense<0.000000e+00> : vector<32x128xf32>
    %8 = tpu.matmul %5, %7, %cst {dimension_numbers = #tpu.dot_dimension_numbers<[1], [0], [0], [1], [0, 0, 1, 1], [], []>} : vector<32x256xbf16>, vector<256x128xbf16>, vector<32x128xf32> -> vector<32x128xf32>
    %9 = arith.addf %3, %8 : vector<32x128xf32>
    %c0_8 = arith.constant 0 : index
    %c0_9 = arith.constant 0 : index
    %10 = vector.load %arg7[%c0_8, %c0_9] : memref<32x128xf32, #tpu.memory_space<vmem>>, vector<32x128xf32>
    tpu.vector_store %arg7[%c0_8, %c0_9], %9 {strides = array<i32>} : memref<32x128xf32, #tpu.memory_space<vmem>>, vector<32x128xf32>,
    %c0_i32_10 = arith.constant 0 : i32
    %11 = arith.cmpi eq, %arg3, %c0_i32_10 : i32
    %12 = arith.extui %11 : i1 to i32
    %c0_i32_11 = arith.constant 0 : i32
    %13 = arith.cmpi ne, %12, %c0_i32_11 : i32
    scf.if %13 {
      %c0_12 = arith.constant 0 : index
      %c0_13 = arith.constant 0 : index
      %14 = vector.load %arg7[%c0_12, %c0_13] : memref<32x128xf32, #tpu.memory_space<vmem>>, vector<32x128xf32>
      %cst_14 = arith.constant 0.000000e+00 : f32
      %15 = vector.broadcast %cst_14 : f32 to vector<32x128xf32>
      %16 = arith.maximumf %14, %15 : vector<32x128xf32>
      %17 = arith.truncf %16 : vector<32x128xf32> to vector<32x128xbf16>
      %c0_15 = arith.constant 0 : index
      %c0_16 = arith.constant 0 : index
      %c0_17 = arith.constant 0 : index
      %18 = vector.load %arg6[%c0_15, %c0_16, %c0_17] : memref<1x32x128xbf16, #tpu.memory_space<vmem>>, vector<1x32x128xbf16>
      %19 = vector.shape_cast %18 : vector<1x32x128xbf16> to vector<32x128xbf16>
      %20 = vector.shape_cast %17 : vector<32x128xbf16> to vector<1x32x128xbf16>
      tpu.vector_store %arg6[%c0_15, %c0_16, %c0_17], %20 {strides = array<i32>} : memref<1x32x128xbf16, #tpu.memory_space<vmem>>, vector<1x32x128xbf16>,
    } else {
    }
    return
  }
  func.func @transform_0(%arg0: i32, %arg1: i32, %arg2: i32, %arg3: i32) -> (i32, i32, i32) {
    %c0_i32 = arith.constant 0 : i32
    return %arg0, %arg1, %arg3 : i32, i32, i32
  }
  func.func @transform_1(%arg0: i32, %arg1: i32, %arg2: i32, %arg3: i32) -> (i32, i32, i32) {
    %c0_i32 = arith.constant 0 : i32
    return %arg0, %arg3, %arg2 : i32, i32, i32
  }
  func.func @transform_2(%arg0: i32, %arg1: i32, %arg2: i32, %arg3: i32) -> (i32, i32, i32) {
    %c0_i32 = arith.constant 0 : i32
    return %arg0, %arg1, %arg2 : i32, i32, i32
  }
}

module attributes {stable_mosaic.version = 11 : i64} {
  func.func @_gemm_kernel(%arg0: i32, %arg1: i32, %arg2: i32, %arg3: i32, %arg4: memref<1x128x128xbf16, #tpu.memory_space<vmem>>, %arg5: memref<1x128x128xbf16, #tpu.memory_space<vmem>>, %arg6: memref<1x128x128xbf16, #tpu.memory_space<vmem>>, %arg7: memref<128x128xf32, #tpu.memory_space<vmem>>) attributes {dimension_semantics = [#tpu.dimension_semantics<parallel>, #tpu.dimension_semantics<parallel>, #tpu.dimension_semantics<parallel>, #tpu.dimension_semantics<arbitrary>], iteration_bounds = array<i64: 4, 1, 1, 1>, scalar_prefetch = 0 : i64, scratch_operands = 1 : i64, tpu.core_type = #tpu.core_type<tc>, window_params = [{transform_indices = @transform_0, window_bounds = array<i64: 1, 128, 128>}, {transform_indices = @transform_1, window_bounds = array<i64: 1, 128, 128>}, {transform_indices = @transform_2, window_bounds = array<i64: 1, 128, 128>}]} {
    %c0_i32 = arith.constant 0 : i32
    %0 = arith.cmpi eq, %arg3, %c0_i32 : i32
    %1 = arith.extui %0 : i1 to i32
    %c0_i32_0 = arith.constant 0 : i32
    %2 = arith.cmpi ne, %1, %c0_i32_0 : i32
    scf.if %2 {
      %cst_12 = arith.constant 0.000000e+00 : f32
      %14 = vector.broadcast %cst_12 : f32 to vector<128x128xf32>
      %c0_13 = arith.constant 0 : index
      %c0_14 = arith.constant 0 : index
      %15 = vector.load %arg7[%c0_13, %c0_14] : memref<128x128xf32, #tpu.memory_space<vmem>>, vector<128x128xf32>
      tpu.vector_store %arg7[%c0_13, %c0_14], %14 {strides = array<i32>} : memref<128x128xf32, #tpu.memory_space<vmem>>, vector<128x128xf32>,
    } else {
    }
    %c0 = arith.constant 0 : index
    %c0_1 = arith.constant 0 : index
    %3 = vector.load %arg7[%c0, %c0_1] : memref<128x128xf32, #tpu.memory_space<vmem>>, vector<128x128xf32>
    %c0_2 = arith.constant 0 : index
    %c0_3 = arith.constant 0 : index
    %c0_4 = arith.constant 0 : index
    %4 = vector.load %arg4[%c0_2, %c0_3, %c0_4] : memref<1x128x128xbf16, #tpu.memory_space<vmem>>, vector<1x128x128xbf16>
    %5 = vector.shape_cast %4 : vector<1x128x128xbf16> to vector<128x128xbf16>
    %c0_5 = arith.constant 0 : index
    %c0_6 = arith.constant 0 : index
    %c0_7 = arith.constant 0 : index
    %6 = vector.load %arg5[%c0_5, %c0_6, %c0_7] : memref<1x128x128xbf16, #tpu.memory_space<vmem>>, vector<1x128x128xbf16>
    %7 = vector.shape_cast %6 : vector<1x128x128xbf16> to vector<128x128xbf16>
    %cst = arith.constant dense<0.000000e+00> : vector<128x128xf32>
    %8 = tpu.matmul %5, %7, %cst {dimension_numbers = #tpu.dot_dimension_numbers<[1], [0], [0], [1], [0, 0, 1, 1], [], []>} : vector<128x128xbf16>, vector<128x128xbf16>, vector<128x128xf32> -> vector<128x128xf32>
    %9 = arith.addf %3, %8 : vector<128x128xf32>
    %c0_8 = arith.constant 0 : index
    %c0_9 = arith.constant 0 : index
    %10 = vector.load %arg7[%c0_8, %c0_9] : memref<128x128xf32, #tpu.memory_space<vmem>>, vector<128x128xf32>
    tpu.vector_store %arg7[%c0_8, %c0_9], %9 {strides = array<i32>} : memref<128x128xf32, #tpu.memory_space<vmem>>, vector<128x128xf32>,
    %c0_i32_10 = arith.constant 0 : i32
    %11 = arith.cmpi eq, %arg3, %c0_i32_10 : i32
    %12 = arith.extui %11 : i1 to i32
    %c0_i32_11 = arith.constant 0 : i32
    %13 = arith.cmpi ne, %12, %c0_i32_11 : i32
    scf.if %13 {
      %c0_12 = arith.constant 0 : index
      %c0_13 = arith.constant 0 : index
      %14 = vector.load %arg7[%c0_12, %c0_13] : memref<128x128xf32, #tpu.memory_space<vmem>>, vector<128x128xf32>
      %cst_14 = arith.constant 0.000000e+00 : f32
      %15 = vector.broadcast %cst_14 : f32 to vector<128x128xf32>
      %16 = arith.maximumf %14, %15 : vector<128x128xf32>
      %17 = arith.truncf %16 : vector<128x128xf32> to vector<128x128xbf16>
      %c0_15 = arith.constant 0 : index
      %c0_16 = arith.constant 0 : index
      %c0_17 = arith.constant 0 : index
      %18 = vector.load %arg6[%c0_15, %c0_16, %c0_17] : memref<1x128x128xbf16, #tpu.memory_space<vmem>>, vector<1x128x128xbf16>
      %19 = vector.shape_cast %18 : vector<1x128x128xbf16> to vector<128x128xbf16>
      %20 = vector.shape_cast %17 : vector<128x128xbf16> to vector<1x128x128xbf16>
      tpu.vector_store %arg6[%c0_15, %c0_16, %c0_17], %20 {strides = array<i32>} : memref<1x128x128xbf16, #tpu.memory_space<vmem>>, vector<1x128x128xbf16>,
    } else {
    }
    return
  }
  func.func @transform_0(%arg0: i32, %arg1: i32, %arg2: i32, %arg3: i32) -> (i32, i32, i32) {
    %c0_i32 = arith.constant 0 : i32
    return %arg0, %arg1, %arg3 : i32, i32, i32
  }
  func.func @transform_1(%arg0: i32, %arg1: i32, %arg2: i32, %arg3: i32) -> (i32, i32, i32) {
    %c0_i32 = arith.constant 0 : i32
    return %arg0, %arg3, %arg2 : i32, i32, i32
  }
  func.func @transform_2(%arg0: i32, %arg1: i32, %arg2: i32, %arg3: i32) -> (i32, i32, i32) {
    %c0_i32 = arith.constant 0 : i32
    return %arg0, %arg1, %arg2 : i32, i32, i32
  }
}

module attributes {stable_mosaic.version = 11 : i64} {
  func.func @_gemm_kernel(%arg0: i32, %arg1: i32, %arg2: i32, %arg3: i32, %arg4: memref<1x512x64xbf16, #tpu.memory_space<vmem>>, %arg5: memref<1x64x128xbf16, #tpu.memory_space<vmem>>, %arg6: memref<1x512x128xbf16, #tpu.memory_space<vmem>>, %arg7: memref<512x128xf32, #tpu.memory_space<vmem>>) attributes {dimension_semantics = [#tpu.dimension_semantics<parallel>, #tpu.dimension_semantics<parallel>, #tpu.dimension_semantics<parallel>, #tpu.dimension_semantics<arbitrary>], iteration_bounds = array<i64: 4, 1, 1, 1>, scalar_prefetch = 0 : i64, scratch_operands = 1 : i64, tpu.core_type = #tpu.core_type<tc>, window_params = [{transform_indices = @transform_0, window_bounds = array<i64: 1, 512, 64>}, {transform_indices = @transform_1, window_bounds = array<i64: 1, 64, 128>}, {transform_indices = @transform_2, window_bounds = array<i64: 1, 512, 128>}]} {
    %c0_i32 = arith.constant 0 : i32
    %0 = arith.cmpi eq, %arg3, %c0_i32 : i32
    %1 = arith.extui %0 : i1 to i32
    %c0_i32_0 = arith.constant 0 : i32
    %2 = arith.cmpi ne, %1, %c0_i32_0 : i32
    scf.if %2 {
      %cst_12 = arith.constant 0.000000e+00 : f32
      %14 = vector.broadcast %cst_12 : f32 to vector<512x128xf32>
      %c0_13 = arith.constant 0 : index
      %c0_14 = arith.constant 0 : index
      %15 = vector.load %arg7[%c0_13, %c0_14] : memref<512x128xf32, #tpu.memory_space<vmem>>, vector<512x128xf32>
      tpu.vector_store %arg7[%c0_13, %c0_14], %14 {strides = array<i32>} : memref<512x128xf32, #tpu.memory_space<vmem>>, vector<512x128xf32>,
    } else {
    }
    %c0 = arith.constant 0 : index
    %c0_1 = arith.constant 0 : index
    %3 = vector.load %arg7[%c0, %c0_1] : memref<512x128xf32, #tpu.memory_space<vmem>>, vector<512x128xf32>
    %c0_2 = arith.constant 0 : index
    %c0_3 = arith.constant 0 : index
    %c0_4 = arith.constant 0 : index
    %4 = vector.load %arg4[%c0_2, %c0_3, %c0_4] : memref<1x512x64xbf16, #tpu.memory_space<vmem>>, vector<1x512x64xbf16>
    %5 = vector.shape_cast %4 : vector<1x512x64xbf16> to vector<512x64xbf16>
    %c0_5 = arith.constant 0 : index
    %c0_6 = arith.constant 0 : index
    %c0_7 = arith.constant 0 : index
    %6 = vector.load %arg5[%c0_5, %c0_6, %c0_7] : memref<1x64x128xbf16, #tpu.memory_space<vmem>>, vector<1x64x128xbf16>
    %7 = vector.shape_cast %6 : vector<1x64x128xbf16> to vector<64x128xbf16>
    %cst = arith.constant dense<0.000000e+00> : vector<512x128xf32>
    %8 = tpu.matmul %5, %7, %cst {dimension_numbers = #tpu.dot_dimension_numbers<[1], [0], [0], [1], [0, 0, 1, 1], [], []>} : vector<512x64xbf16>, vector<64x128xbf16>, vector<512x128xf32> -> vector<512x128xf32>
    %9 = arith.addf %3, %8 : vector<512x128xf32>
    %c0_8 = arith.constant 0 : index
    %c0_9 = arith.constant 0 : index
    %10 = vector.load %arg7[%c0_8, %c0_9] : memref<512x128xf32, #tpu.memory_space<vmem>>, vector<512x128xf32>
    tpu.vector_store %arg7[%c0_8, %c0_9], %9 {strides = array<i32>} : memref<512x128xf32, #tpu.memory_space<vmem>>, vector<512x128xf32>,
    %c0_i32_10 = arith.constant 0 : i32
    %11 = arith.cmpi eq, %arg3, %c0_i32_10 : i32
    %12 = arith.extui %11 : i1 to i32
    %c0_i32_11 = arith.constant 0 : i32
    %13 = arith.cmpi ne, %12, %c0_i32_11 : i32
    scf.if %13 {
      %c0_12 = arith.constant 0 : index
      %c0_13 = arith.constant 0 : index
      %14 = vector.load %arg7[%c0_12, %c0_13] : memref<512x128xf32, #tpu.memory_space<vmem>>, vector<512x128xf32>
      %cst_14 = arith.constant 0.000000e+00 : f32
      %15 = vector.broadcast %cst_14 : f32 to vector<512x128xf32>
      %16 = arith.maximumf %14, %15 : vector<512x128xf32>
      %17 = arith.truncf %16 : vector<512x128xf32> to vector<512x128xbf16>
      %c0_15 = arith.constant 0 : index
      %c0_16 = arith.constant 0 : index
      %c0_17 = arith.constant 0 : index
      %18 = vector.load %arg6[%c0_15, %c0_16, %c0_17] : memref<1x512x128xbf16, #tpu.memory_space<vmem>>, vector<1x512x128xbf16>
      %19 = vector.shape_cast %18 : vector<1x512x128xbf16> to vector<512x128xbf16>
      %20 = vector.shape_cast %17 : vector<512x128xbf16> to vector<1x512x128xbf16>
      tpu.vector_store %arg6[%c0_15, %c0_16, %c0_17], %20 {strides = array<i32>} : memref<1x512x128xbf16, #tpu.memory_space<vmem>>, vector<1x512x128xbf16>,
    } else {
    }
    return
  }
  func.func @transform_0(%arg0: i32, %arg1: i32, %arg2: i32, %arg3: i32) -> (i32, i32, i32) {
    %c0_i32 = arith.constant 0 : i32
    return %arg0, %arg1, %arg3 : i32, i32, i32
  }
  func.func @transform_1(%arg0: i32, %arg1: i32, %arg2: i32, %arg3: i32) -> (i32, i32, i32) {
    %c0_i32 = arith.constant 0 : i32
    return %arg0, %arg3, %arg2 : i32, i32, i32
  }
  func.func @transform_2(%arg0: i32, %arg1: i32, %arg2: i32, %arg3: i32) -> (i32, i32, i32) {
    %c0_i32 = arith.constant 0 : i32
    return %arg0, %arg1, %arg2 : i32, i32, i32
  }
}

module attributes {stable_mosaic.version = 11 : i64} {
  func.func @_gemm_bias_kernel(%arg0: i32, %arg1: i32, %arg2: i32, %arg3: i32, %arg4: memref<1x512x32xbf16, #tpu.memory_space<vmem>>, %arg5: memref<1x32x128xbf16, #tpu.memory_space<vmem>>, %arg6: memref<1x128xf32, #tpu.memory_space<vmem>>, %arg7: memref<1x512x128xf32, #tpu.memory_space<vmem>>, %arg8: memref<512x128xf32, #tpu.memory_space<vmem>>) attributes {dimension_semantics = [#tpu.dimension_semantics<parallel>, #tpu.dimension_semantics<parallel>, #tpu.dimension_semantics<parallel>, #tpu.dimension_semantics<arbitrary>], iteration_bounds = array<i64: 4, 4, 1, 1>, scalar_prefetch = 0 : i64, scratch_operands = 1 : i64, tpu.core_type = #tpu.core_type<tc>, window_params = [{transform_indices = @transform_0, window_bounds = array<i64: 1, 512, 32>}, {transform_indices = @transform_1, window_bounds = array<i64: 1, 32, 128>}, {transform_indices = @transform_2, window_bounds = array<i64: 1, 128>}, {transform_indices = @transform_3, window_bounds = array<i64: 1, 512, 128>}]} {
    %c0_i32 = arith.constant 0 : i32
    %0 = arith.cmpi eq, %arg3, %c0_i32 : i32
    %1 = arith.extui %0 : i1 to i32
    %c0_i32_0 = arith.constant 0 : i32
    %2 = arith.cmpi ne, %1, %c0_i32_0 : i32
    scf.if %2 {
      %cst_12 = arith.constant 0.000000e+00 : f32
      %14 = vector.broadcast %cst_12 : f32 to vector<512x128xf32>
      %c0_13 = arith.constant 0 : index
      %c0_14 = arith.constant 0 : index
      %15 = vector.load %arg8[%c0_13, %c0_14] : memref<512x128xf32, #tpu.memory_space<vmem>>, vector<512x128xf32>
      tpu.vector_store %arg8[%c0_13, %c0_14], %14 {strides = array<i32>} : memref<512x128xf32, #tpu.memory_space<vmem>>, vector<512x128xf32>,
    } else {
    }
    %c0 = arith.constant 0 : index
    %c0_1 = arith.constant 0 : index
    %3 = vector.load %arg8[%c0, %c0_1] : memref<512x128xf32, #tpu.memory_space<vmem>>, vector<512x128xf32>
    %c0_2 = arith.constant 0 : index
    %c0_3 = arith.constant 0 : index
    %c0_4 = arith.constant 0 : index
    %4 = vector.load %arg4[%c0_2, %c0_3, %c0_4] : memref<1x512x32xbf16, #tpu.memory_space<vmem>>, vector<1x512x32xbf16>
    %5 = vector.shape_cast %4 : vector<1x512x32xbf16> to vector<512x32xbf16>
    %c0_5 = arith.constant 0 : index
    %c0_6 = arith.constant 0 : index
    %c0_7 = arith.constant 0 : index
    %6 = vector.load %arg5[%c0_5, %c0_6, %c0_7] : memref<1x32x128xbf16, #tpu.memory_space<vmem>>, vector<1x32x128xbf16>
    %7 = vector.shape_cast %6 : vector<1x32x128xbf16> to vector<32x128xbf16>
    %cst = arith.constant dense<0.000000e+00> : vector<512x128xf32>
    %8 = tpu.matmul %5, %7, %cst {dimension_numbers = #tpu.dot_dimension_numbers<[1], [0], [0], [1], [0, 0, 1, 1], [], []>} : vector<512x32xbf16>, vector<32x128xbf16>, vector<512x128xf32> -> vector<512x128xf32>
    %9 = arith.addf %3, %8 : vector<512x128xf32>
    %c0_8 = arith.constant 0 : index
    %c0_9 = arith.constant 0 : index
    %10 = vector.load %arg8[%c0_8, %c0_9] : memref<512x128xf32, #tpu.memory_space<vmem>>, vector<512x128xf32>
    tpu.vector_store %arg8[%c0_8, %c0_9], %9 {strides = array<i32>} : memref<512x128xf32, #tpu.memory_space<vmem>>, vector<512x128xf32>,
    %c0_i32_10 = arith.constant 0 : i32
    %11 = arith.cmpi eq, %arg3, %c0_i32_10 : i32
    %12 = arith.extui %11 : i1 to i32
    %c0_i32_11 = arith.constant 0 : i32
    %13 = arith.cmpi ne, %12, %c0_i32_11 : i32
    scf.if %13 {
      %c0_12 = arith.constant 0 : index
      %c0_13 = arith.constant 0 : index
      %14 = vector.load %arg8[%c0_12, %c0_13] : memref<512x128xf32, #tpu.memory_space<vmem>>, vector<512x128xf32>
      %c0_14 = arith.constant 0 : index
      %c0_15 = arith.constant 0 : index
      %15 = vector.load %arg6[%c0_14, %c0_15] : memref<1x128xf32, #tpu.memory_space<vmem>>, vector<1x128xf32>
      %16 = vector.broadcast %15 : vector<1x128xf32> to vector<512x128xf32>
      %17 = arith.addf %14, %16 : vector<512x128xf32>
      %18 = math.tanh %17 : vector<512x128xf32>
      %c0_16 = arith.constant 0 : index
      %c0_17 = arith.constant 0 : index
      %c0_18 = arith.constant 0 : index
      %19 = vector.load %arg7[%c0_16, %c0_17, %c0_18] : memref<1x512x128xf32, #tpu.memory_space<vmem>>, vector<1x512x128xf32>
      %20 = vector.shape_cast %19 : vector<1x512x128xf32> to vector<512x128xf32>
      %21 = vector.shape_cast %18 : vector<512x128xf32> to vector<1x512x128xf32>
      tpu.vector_store %arg7[%c0_16, %c0_17, %c0_18], %21 {strides = array<i32>} : memref<1x512x128xf32, #tpu.memory_space<vmem>>, vector<1x512x128xf32>,
    } else {
    }
    return
  }
  func.func @transform_0(%arg0: i32, %arg1: i32, %arg2: i32, %arg3: i32) -> (i32, i32, i32) {
    %c0_i32 = arith.constant 0 : i32
    return %arg0, %arg1, %arg3 : i32, i32, i32
  }
  func.func @transform_1(%arg0: i32, %arg1: i32, %arg2: i32, %arg3: i32) -> (i32, i32, i32) {
    %c0_i32 = arith.constant 0 : i32
    return %arg0, %arg3, %arg2 : i32, i32, i32
  }
  func.func @transform_2(%arg0: i32, %arg1: i32, %arg2: i32, %arg3: i32) -> (i32, i32) {
    %c0_i32 = arith.constant 0 : i32
    %c0_i32_0 = arith.constant 0 : i32
    return %c0_i32, %arg2 : i32, i32
  }
  func.func @transform_3(%arg0: i32, %arg1: i32, %arg2: i32, %arg3: i32) -> (i32, i32, i32) {
    %c0_i32 = arith.constant 0 : i32
    return %arg0, %arg1, %arg2 : i32, i32, i32
  }
}

</mosaic_0001>

<llo_original>
// kernel: squeeze.1
$region0: #{squeeze.1}
  %s0 = inlined_call_operand.vmem [shape: bf16[1,2,1024], index: 0, kind: input, shape index: {}]
  %s1 = inlined_call_operand.vmem [shape: bf16[2,4,4,64], index: 1, kind: output, shape index: {}]
  $region1: #{squeeze.1} parent=0
    #allocation0 [shape = 'u8[32768]{0}', space=vmem, size = 0x8000, scoped, tag = 'scoped mem for output reshape']
    #allocation1 [shape = 'u8[32768]{0}', space=vmem, size = 0x8000, scoped, tag = 'scoped mem for input reshape']
    %s3 = smul.u32 1, 2
    %s4 = sshllo.u32 0, %s3
    %s5 = smul.addr 1, 7
    %s6 = scalar_lea.vmem %s0, %s5
    %s7 = sshrl.u32 %s4, 1
    %s8 = sor.u32 %s4, %s7
    %s9 = sand.u32 %s8, 85
    %s10 = sshrl.u32 %s9, 1
    %s11 = sor.u32 %s9, %s10
    %s12 = sand.u32 51, %s11
    %s13 = sshrl.u32 %s12, 2
    %s14 = sor.u32 %s12, %s13
    %s15 = sand.u32 15, %s14
    %v16 = vld [vmem:[%s6] sm:%s15]
    %v17 = vunpack.c.l.bf16 %v16
    %v18 = vunpack.c.h.bf16 %v16
    %s19 = scalar_lea.vmem [#allocation1], 56
    %20 = vst [vmem:[%s19] sm:%s4] %v17
    %s21 = smul.addr 1, 6
    %s22 = scalar_lea.vmem %s0, %s21
    %s23 = sshrl.u32 %s4, 1
    %s24 = sor.u32 %s4, %s23
    %s25 = sand.u32 %s24, 85
    %s26 = sshrl.u32 %s25, 1
    %s27 = sor.u32 %s25, %s26
    %s28 = sand.u32 51, %s27
    %s29 = sshrl.u32 %s28, 2
    %s30 = sor.u32 %s28, %s29
    %s31 = sand.u32 15, %s30
    %v32 = vld [vmem:[%s22] sm:%s31]
    %v33 = vunpack.c.l.bf16 %v32
    %v34 = vunpack.c.h.bf16 %v32
    %s35 = scalar_lea.vmem [#allocation1], 48
    %36 = vst [vmem:[%s35] sm:%s4] %v33
    %s37 = smul.addr 1, 5
    %s38 = scalar_lea.vmem %s0, %s37
    %s39 = sshrl.u32 %s4, 1
    %s40 = sor.u32 %s4, %s39
    %s41 = sand.u32 %s40, 85
    %s42 = sshrl.u32 %s41, 1
    %s43 = sor.u32 %s41, %s42
    %s44 = sand.u32 51, %s43
    %s45 = sshrl.u32 %s44, 2
    %s46 = sor.u32 %s44, %s45
    %s47 = sand.u32 15, %s46
    %v48 = vld [vmem:[%s38] sm:%s47]
    %v49 = vunpack.c.l.bf16 %v48
    %v50 = vunpack.c.h.bf16 %v48
    %s51 = scalar_lea.vmem [#allocation1], 40
    %52 = vst [vmem:[%s51] sm:%s4] %v49
    %s53 = smul.addr 1, 4
    %s54 = scalar_lea.vmem %s0, %s53
    %s55 = sshrl.u32 %s4, 1
    %s56 = sor.u32 %s4, %s55
    %s57 = sand.u32 %s56, 85
    %s58 = sshrl.u32 %s57, 1
    %s59 = sor.u32 %s57, %s58
    %s60 = sand.u32 51, %s59
    %s61 = sshrl.u32 %s60, 2
    %s62 = sor.u32 %s60, %s61
    %s63 = sand.u32 15, %s62
    %v64 = vld [vmem:[%s54] sm:%s63]
    %v65 = vunpack.c.l.bf16 %v64
    %v66 = vunpack.c.h.bf16 %v64
    %s67 = scalar_lea.vmem [#allocation1], 32
    %68 = vst [vmem:[%s67] sm:%s4] %v65
    %s69 = smul.addr 1, 3
    %s70 = scalar_lea.vmem %s0, %s69
    %s71 = sshrl.u32 %s4, 1
    %s72 = sor.u32 %s4, %s71
    %s73 = sand.u32 %s72, 85
    %s74 = sshrl.u32 %s73, 1
    %s75 = sor.u32 %s73, %s74
    %s76 = sand.u32 51, %s75
    %s77 = sshrl.u32 %s76, 2
    %s78 = sor.u32 %s76, %s77
    %s79 = sand.u32 15, %s78
    %v80 = vld [vmem:[%s70] sm:%s79]
    %v81 = vunpack.c.l.bf16 %v80
    %v82 = vunpack.c.h.bf16 %v80
    %s83 = scalar_lea.vmem [#allocation1], 24
    %84 = vst [vmem:[%s83] sm:%s4] %v81
    %s85 = smul.addr 1, 2
    %s86 = scalar_lea.vmem %s0, %s85
    %s87 = sshrl.u32 %s4, 1
    %s88 = sor.u32 %s4, %s87
    %s89 = sand.u32 %s88, 85
    %s90 = sshrl.u32 %s89, 1
    %s91 = sor.u32 %s89, %s90
    %s92 = sand.u32 51, %s91
    %s93 = sshrl.u32 %s92, 2
    %s94 = sor.u32 %s92, %s93
    %s95 = sand.u32 15, %s94
    %v96 = vld [vmem:[%s86] sm:%s95]
    %v97 = vunpack.c.l.bf16 %v96
    %v98 = vunpack.c.h.bf16 %v96
    %s99 = scalar_lea.vmem [#allocation1], 16
    %100 = vst [vmem:[%s99] sm:%s4] %v97
    %s101 = scalar_lea.vmem %s0, 1
    %s102 = sshrl.u32 %s4, 1
    %s103 = sor.u32 %s4, %s102
    %s104 = sand.u32 %s103, 85
    %s105 = sshrl.u32 %s104, 1
    %s106 = sor.u32 %s104, %s105
    %s107 = sand.u32 51, %s106
    %s108 = sshrl.u32 %s107, 2
    %s109 = sor.u32 %s107, %s108
    %s110 = sand.u32 15, %s109
    %v111 = vld [vmem:[%s101] sm:%s110]
    %v112 = vunpack.c.l.bf16 %v111
    %v113 = vunpack.c.h.bf16 %v111
    %s114 = scalar_lea.vmem [#allocation1], 8
    %115 = vst [vmem:[%s114] sm:%s4] %v112
    %s116 = sshrl.u32 %s4, 1
    %s117 = sor.u32 %s4, %s116
    %s118 = sand.u32 %s117, 85
    %s119 = sshrl.u32 %s118, 1
    %s120 = sor.u32 %s118, %s119
    %s121 = sand.u32 51, %s120
    %s122 = sshrl.u32 %s121, 2
    %s123 = sor.u32 %s121, %s122
    %s124 = sand.u32 15, %s123
    %v125 = vld [vmem:[%s0] sm:%s124]
    %v126 = vunpack.c.l.bf16 %v125
    %v127 = vunpack.c.h.bf16 %v125
    %128 = vst [vmem:[#allocation1] sm:%s4] %v126
    %v129 = vld [vmem:[#allocation1] sm:$0x3]
    %vm130 = vcmask 523264
    %131 = vst.msk [vmem:[#allocation0] sm:$0x1] %vm130, %v129
    %s132 = scalar_lea.vmem [#allocation0], 31
    %133 = vst.msk [vmem:[%s132] sm:$0x2] %vm130, %v129
    %s134 = scalar_lea.vmem [#allocation1], 8
    %v135 = vld [vmem:[%s134] sm:$0x3]
    %vm136 = vcmask 523264
    %s137 = scalar_lea.vmem [#allocation0], 2
    %138 = vst.msk [vmem:[%s137] sm:$0x1] %vm136, %v135
    %s139 = scalar_lea.vmem [#allocation0], 33
    %140 = vst.msk [vmem:[%s139] sm:$0x2] %vm136, %v135
    %s141 = scalar_lea.vmem [#allocation1], 16
    %v142 = vld [vmem:[%s141] sm:$0x3]
    %vm143 = vcmask 523264
    %s144 = scalar_lea.vmem [#allocation0], 8
    %145 = vst.msk [vmem:[%s144] sm:$0x1] %vm143, %v142
    %s146 = scalar_lea.vmem [#allocation0], 39
    %147 = vst.msk [vmem:[%s146] sm:$0x2] %vm143, %v142
    %s148 = scalar_lea.vmem [#allocation1], 24
    %v149 = vld [vmem:[%s148] sm:$0x3]
    %vm150 = vcmask 523264
    %s151 = scalar_lea.vmem [#allocation0], 10
    %152 = vst.msk [vmem:[%s151] sm:$0x1] %vm150, %v149
    %s153 = scalar_lea.vmem [#allocation0], 41
    %154 = vst.msk [vmem:[%s153] sm:$0x2] %vm150, %v149
    %s155 = scalar_lea.vmem [#allocation1], 32
    %v156 = vld [vmem:[%s155] sm:$0x3]
    %vm157 = vcmask 523264
    %s158 = scalar_lea.vmem [#allocation0], 16
    %159 = vst.msk [vmem:[%s158] sm:$0x1] %vm157, %v156
    %s160 = scalar_lea.vmem [#allocation0], 47
    %161 = vst.msk [vmem:[%s160] sm:$0x2] %vm157, %v156
    %s162 = scalar_lea.vmem [#allocation1], 40
    %v163 = vld [vmem:[%s162] sm:$0x3]
    %vm164 = vcmask 523264
    %s165 = scalar_lea.vmem [#allocation0], 18
    %166 = vst.msk [vmem:[%s165] sm:$0x1] %vm164, %v163
    %s167 = scalar_lea.vmem [#allocation0], 49
    %168 = vst.msk [vmem:[%s167] sm:$0x2] %vm164, %v163
    %s169 = scalar_lea.vmem [#allocation1], 48
    %v170 = vld [vmem:[%s169] sm:$0x3]
    %vm171 = vcmask 523264
    %s172 = scalar_lea.vmem [#allocation0], 24
    %173 = vst.msk [vmem:[%s172] sm:$0x1] %vm171, %v170
    %s174 = scalar_lea.vmem [#allocation0], 55
    %175 = vst.msk [vmem:[%s174] sm:$0x2] %vm171, %v170
    %s176 = scalar_lea.vmem [#allocation1], 56
    %v177 = vld [vmem:[%s176] sm:$0x3]
    %vm178 = vcmask 523264
    %s179 = scalar_lea.vmem [#allocation0], 26
    %180 = vst.msk [vmem:[%s179] sm:$0x1] %vm178, %v177
    %s181 = scalar_lea.vmem [#allocation0], 57
    %182 = vst.msk [vmem:[%s181] sm:$0x2] %vm178, %v177
    %v183 = vld [vmem:[#allocation1] ss:$8 sm:$0xf]
    %v184 = vld [vmem:[#allocation1] ss:$8 sm:$0xf0]
    %vm185 = vcmask 1047556
    %v186 = vsel %vm185, %v184, %v183
    %187 = vrot.lane.b32.xlu0 %v186, 64
    %v188 = vpop.permute.xlu0 %187
    %vm189 = vcmask 523264
    %s190 = scalar_lea.vmem [#allocation0], 1
    %191 = vst.msk [vmem:[%s190] ss:$2 sm:$0x3] %vm189, %v188
    %s192 = scalar_lea.vmem [#allocation0], 5
    %193 = vst.msk [vmem:[%s192] ss:$2 sm:$0xc] %vm189, %v188
    %s194 = scalar_lea.vmem [#allocation0], 9
    %195 = vst.msk [vmem:[%s194] ss:$2 sm:$0x30] %vm189, %v188
    %s196 = scalar_lea.vmem [#allocation0], 13
    %197 = vst.msk [vmem:[%s196] ss:$2 sm:$0xc0] %vm189, %v188
    %s198 = scalar_lea.vmem [#allocation1], 1
    %v199 = vld [vmem:[%s198] ss:$8 sm:$0xf]
    %s200 = scalar_lea.vmem [#allocation1], 1
    %v201 = vld [vmem:[%s200] ss:$8 sm:$0xf0]
    %vm202 = vcmask 1047556
    %v203 = vsel %vm202, %v201, %v199
    %204 = vrot.lane.b32.xlu0 %v203, 64
    %v205 = vpop.permute.xlu0 %204
    %vm206 = vcmask 523264
    %s207 = scalar_lea.vmem [#allocation0], 33
    %208 = vst.msk [vmem:[%s207] ss:$2 sm:$0x3] %vm206, %v205
    %s209 = scalar_lea.vmem [#allocation0], 37
    %210 = vst.msk [vmem:[%s209] ss:$2 sm:$0xc] %vm206, %v205
    %s211 = scalar_lea.vmem [#allocation0], 41
    %212 = vst.msk [vmem:[%s211] ss:$2 sm:$0x30] %vm206, %v205
    %s213 = scalar_lea.vmem [#allocation0], 45
    %214 = vst.msk [vmem:[%s213] ss:$2 sm:$0xc0] %vm206, %v205
    %s216 = smul.u32 2, 2
    %s217 = sshllo.u32 0, %s216
    %s218 = sshrl.u32 %s216, 1
    %v219 = vld [vmem:[#allocation0] sm:%s217]
    %v220 = vpack.c.bf16 0.0, %v219
    %s221 = sshllo.u32 0, %s218
    %222 = vst [vmem:[%s1] sm:%s221] %v220
    %s223 = scalar_lea.vmem [#allocation0], 8
    %v224 = vld [vmem:[%s223] sm:%s217]
    %v225 = vpack.c.bf16 0.0, %v224
    %s226 = sshllo.u32 0, %s218
    %s227 = scalar_lea.vmem %s1, 2
    %228 = vst [vmem:[%s227] sm:%s226] %v225
    %s229 = scalar_lea.vmem [#allocation0], 16
    %v230 = vld [vmem:[%s229] sm:%s217]
    %v231 = vpack.c.bf16 0.0, %v230
    %s232 = sshllo.u32 0, %s218
    %s233 = smul.addr 2, 2
    %s234 = scalar_lea.vmem %s1, %s233
    %235 = vst [vmem:[%s234] sm:%s232] %v231
    %s236 = scalar_lea.vmem [#allocation0], 24
    %v237 = vld [vmem:[%s236] sm:%s217]
    %v238 = vpack.c.bf16 0.0, %v237
    %s239 = sshllo.u32 0, %s218
    %s240 = smul.addr 2, 3
    %s241 = scalar_lea.vmem %s1, %s240
    %242 = vst [vmem:[%s241] sm:%s239] %v238
    %s243 = scalar_lea.vmem [#allocation0], 32
    %v244 = vld [vmem:[%s243] sm:%s217]
    %v245 = vpack.c.bf16 0.0, %v244
    %s246 = sshllo.u32 0, %s218
    %s247 = smul.addr 2, 4
    %s248 = scalar_lea.vmem %s1, %s247
    %249 = vst [vmem:[%s248] sm:%s246] %v245
    %s250 = scalar_lea.vmem [#allocation0], 40
    %v251 = vld [vmem:[%s250] sm:%s217]
    %v252 = vpack.c.bf16 0.0, %v251
    %s253 = sshllo.u32 0, %s218
    %s254 = smul.addr 2, 5
    %s255 = scalar_lea.vmem %s1, %s254
    %256 = vst [vmem:[%s255] sm:%s253] %v252
    %s257 = scalar_lea.vmem [#allocation0], 48
    %v258 = vld [vmem:[%s257] sm:%s217]
    %v259 = vpack.c.bf16 0.0, %v258
    %s260 = sshllo.u32 0, %s218
    %s261 = smul.addr 2, 6
    %s262 = scalar_lea.vmem %s1, %s261
    %263 = vst [vmem:[%s262] sm:%s260] %v259
    %s264 = scalar_lea.vmem [#allocation0], 56
    %v265 = vld [vmem:[%s264] sm:%s217]
    %v266 = vpack.c.bf16 0.0, %v265
    %s267 = sshllo.u32 0, %s218
    %s268 = smul.addr 2, 7
    %s269 = scalar_lea.vmem %s1, %s268
    %270 = vst [vmem:[%s269] sm:%s267] %v266

// kernel: generator_forward.5
$region0: #{generator_forward.5}
  #allocation0 [shape = 'u32[]', space=smem, size = 0x4, offset = 0x4, fixed_abs, tag = 'smem constant byte address 0x4 - core index']
  #allocation1 [shape = 'u32[144,128]{1,0:T(1,128)}', space=vmem, size = 0x12000, scoped, tag = 'internal scratch']
  #allocation2 [shape = 'f32[8,512]{1,0:T(8,128)}', space=vmem, size = 0x4000, scoped, tag = 'scratch operand']
  %s0 = inlined_call_operand.vmem [shape: bf16[1,8,8], index: 0, kind: input, shape index: {}]
  %s1 = inlined_call_operand.vmem [shape: bf16[1,8,1024], index: 1, kind: input, shape index: {}]
  %s2 = inlined_call_operand.vmem [shape: bf16[1,8,1024], index: 2, kind: output, shape index: {}]
  %s3 = sld [smem:[#allocation0]]
  $region49: #{generator_forward.5} parent=0
    _
  %s5 = ssub.s32 1, %s3
  %s6 = scalar_select 0, %s5, %s3
  loop: start=0, step=1, limit=4
  $region2: #{generator_forward.5} parent=0 // loop_pre_header
    _
  $region3: #{generator_forward.5} parent=0 // loop_header
    %s8 = sphi 0, %s12
    %p9 = scmp.ge.s32.totalorder %s8, 4
    %s15 = sphi 0, %s41
    %s16 = sphi 0, %s37
    %s17 = sphi 0, %s33
    %s18 = sphi 0, %s29
    %s19 = sphi 0, %s15
    %s20 = sphi 0, %s16
    %s21 = sphi 0, %s17
    %s22 = sphi 0, %s18
    %s23 = sphi 0, %s19
    %s24 = sphi 0, %s20
    %s25 = sphi 0, %s21
    %s26 = sphi 0, %s22
    %s48 = sphi 0, %s50
    %s51 = sphi 0, %s48
    %s52 = sphi 0, %s51
    %s68 = sphi 0, %s52
    %s78 = sphi 0, %s80
    %s81 = sphi 0, %s78
    %s82 = sphi 0, %s81
    %s98 = sphi 0, %s82
    %s108 = sphi 0, %s110
    %s111 = sphi 0, %s108
    %s112 = sphi 0, %s111
    %s128 = sphi 0, %s112
  $region4: #{generator_forward.5} parent=0 // loop_header_branch
    %11 = sbr.rel (%p9) target = $region8
  $region5: #{generator_forward.5} parent=0 // loop_body
    %s13 = ssub.s32 %s8, 1
    %s14 = ssub.s32 %s8, 2
    %s27 = sadd.s32 1, %s18
    %p28 = scmp.ge.s32.totalorder %s27, 1
    %s29 = scalar_select %p28, 0, %s27
    %s30 = sadd.s32 1, %s17
    %s31 = scalar_select %p28, %s30, %s17
    %p32 = scmp.ge.s32.totalorder %s31, 2
    %s33 = scalar_select %p32, 0, %s31
    %s34 = sadd.s32 1, %s16
    %s35 = scalar_select %p32, %s34, %s16
    %p36 = scmp.ge.s32.totalorder %s35, 1
    %s37 = scalar_select %p36, 0, %s35
    %s38 = sadd.s32 1, %s15
    %s39 = scalar_select %p36, %s38, %s15
    %p40 = scmp.ge.s32.totalorder %s39, 1
    %s41 = scalar_select %p40, 0, %s39
    %s42 = ssub.s32 %s15, %s41
    %s43 = ssub.s32 %s16, %s37
    %s44 = sor.u32 %s42, %s43
    %s45 = ssub.s32 %s18, %s29
    %s46 = sor.u32 %s44, %s45
    %p47 = scmp.eq.s32.totalorder %s46, 0
    %s49 = sadd.s32 %s48, 1
    %s50 = scalar_select %p47, %s48, %s49
    %p53 = pneg %p47
    %p54 = scmp.eq.s32.totalorder %s8, 1
    %p55 = por %p53, %p54
    %p56 = scmp.ne.s32.totalorder %s48, %s51
    %p57 = scmp.eq.s32.totalorder %s8, 0
    %p58 = por %p56, %p57
    %p59 = scmp.ne.s32.totalorder %s48, %s51
    %p60 = scmp.eq.s32.totalorder %s13, 1
    %p61 = por %p59, %p60
    %p62 = scmp.ne.s32.totalorder %s51, %s52
    %p63 = scmp.eq.s32.totalorder %s13, 0
    %p64 = por %p62, %p63
    %p65 = scmp.ne.s32.totalorder %s51, %s52
    %p66 = scmp.eq.s32.totalorder %s14, 1
    %p67 = por %p65, %p66
    %p69 = scmp.ne.s32.totalorder %s52, %s68
    %p70 = scmp.eq.s32.totalorder %s14, 0
    %p71 = por %p69, %p70
    %s72 = ssub.s32 %s15, %s41
    %s73 = ssub.s32 %s18, %s29
    %s74 = sor.u32 %s72, %s73
    %s75 = ssub.s32 %s17, %s33
    %s76 = sor.u32 %s74, %s75
    %p77 = scmp.eq.s32.totalorder %s76, 0
    %s79 = sadd.s32 %s78, 1
    %s80 = scalar_select %p77, %s78, %s79
    %p83 = pneg %p77
    %p84 = scmp.eq.s32.totalorder %s8, 1
    %p85 = por %p83, %p84
    %p86 = scmp.ne.s32.totalorder %s78, %s81
    %p87 = scmp.eq.s32.totalorder %s8, 0
    %p88 = por %p86, %p87
    %p89 = scmp.ne.s32.totalorder %s78, %s81
    %p90 = scmp.eq.s32.totalorder %s13, 1
    %p91 = por %p89, %p90
    %p92 = scmp.ne.s32.totalorder %s81, %s82
    %p93 = scmp.eq.s32.totalorder %s13, 0
    %p94 = por %p92, %p93
    %p95 = scmp.ne.s32.totalorder %s81, %s82
    %p96 = scmp.eq.s32.totalorder %s14, 1
    %p97 = por %p95, %p96
    %p99 = scmp.ne.s32.totalorder %s82, %s98
    %p100 = scmp.eq.s32.totalorder %s14, 0
    %p101 = por %p99, %p100
    %s102 = ssub.s32 %s15, %s41
    %s103 = ssub.s32 %s16, %s37
    %s104 = sor.u32 %s102, %s103
    %s105 = ssub.s32 %s17, %s33
    %s106 = sor.u32 %s104, %s105
    %p107 = scmp.eq.s32.totalorder %s106, 0
    %s109 = sadd.s32 %s108, 1
    %s110 = scalar_select %p107, %s108, %s109
    %p113 = pneg %p107
    %p114 = scmp.eq.s32.totalorder %s8, 1
    %p115 = por %p113, %p114
    %p116 = scmp.ne.s32.totalorder %s108, %s111
    %p117 = scmp.eq.s32.totalorder %s8, 0
    %p118 = por %p116, %p117
    %p119 = scmp.ne.s32.totalorder %s108, %s111
    %p120 = scmp.eq.s32.totalorder %s13, 1
    %p121 = por %p119, %p120
    %p122 = scmp.ne.s32.totalorder %s111, %s112
    %p123 = scmp.eq.s32.totalorder %s13, 0
    %p124 = por %p122, %p123
    %p125 = scmp.ne.s32.totalorder %s111, %s112
    %p126 = scmp.eq.s32.totalorder %s14, 1
    %p127 = por %p125, %p126
    %p129 = scmp.ne.s32.totalorder %s112, %s128
    %p130 = scmp.eq.s32.totalorder %s14, 0
    %p131 = por %p129, %p130
    %p132 = scmp.le.s32.totalorder 1, %s8
    %p133 = scmp.lt.s32.totalorder %s8, 3
    %p134 = pnand %p132, %p133
    %p135 = pneg %p134
    // Predicated region
    $region9: #{generator_forward.5} parent=5 // pred_check
      _
    $region10: #{generator_forward.5} parent=5 // pred_check_branch
      %137 = sbr.rel (%p134) target = $region12
    $region11: #{generator_forward.5} parent=5 // pred_region
      %s138 = ssub.s32 %s8, 1
      // Predicated region
      $region13: #{generator_forward.5} parent=11 // pred_check
        %p139 = pneg %p64
      $region14: #{generator_forward.5} parent=11 // pred_check_branch
        %141 = sbr.rel (%p139) target = $region16
      $region15: #{generator_forward.5} parent=11 // pred_region
        %p142 = scmp.lt.s32.totalorder %s19, 0
        %s143 = scalar_select %p142, %s19, 0
        %p144 = scmp.lt.s32.totalorder %s20, 0
        %s145 = scalar_select %p144, %s20, 0
        %p146 = scmp.lt.s32.totalorder %s22, 0
        %s147 = scalar_select %p146, %s22, 0
        %s148 = sadd.s32 %s147, %s145
        %s149 = sadd.s32 %s148, %s143
        %s150 = smul.addr %s149, 4
        %s151 = scalar_lea.vmem %s0, %s150
      $region16: #{generator_forward.5} parent=11 // pred_fallthru
        _
    $region12: #{generator_forward.5} parent=5 // pred_fallthru
      _
    %p152 = scmp.lt.s32.totalorder %s8, 2
    // Predicated region
    $region17: #{generator_forward.5} parent=5 // pred_check
      %p153 = pneg %p152
    $region18: #{generator_forward.5} parent=5 // pred_check_branch
      %155 = sbr.rel (%p153) target = $region20
    $region19: #{generator_forward.5} parent=5 // pred_region
      // Predicated region
      $region21: #{generator_forward.5} parent=19 // pred_check
        %p156 = pneg %p88
      $region22: #{generator_forward.5} parent=19 // pred_check_branch
        %158 = sbr.rel (%p156) target = $region24
      $region23: #{generator_forward.5} parent=19 // pred_region
        %s159 = smul.u32 4, %s17
        %p160 = scmp.lt.s32.totalorder %s15, 0
        %s161 = scalar_select %p160, %s15, 0
        %p162 = scmp.lt.s32.totalorder %s18, 0
        %s163 = scalar_select %p162, %s18, 0
        %p164 = scmp.lt.s32.totalorder %s159, 7
        %s165 = scalar_select %p164, %s159, 7
        %s166 = smul.addr %s163, 8
        %s167 = sadd.s32 %s165, %s166
        %s168 = smul.addr %s161, 8
        %s169 = sadd.s32 %s167, %s168
        %s170 = smul.addr %s169, 4
        %s171 = scalar_lea.vmem %s1, %s170
        %s172 = smul.u32 4, %s17
      $region24: #{generator_forward.5} parent=19 // pred_fallthru
        _
    $region20: #{generator_forward.5} parent=5 // pred_fallthru
      _
    %p173 = scmp.le.s32.totalorder 1, %s8
    %p174 = scmp.lt.s32.totalorder %s8, 3
    %p175 = pnand %p173, %p174
    %p176 = pneg %p175
    // Predicated region
    $region25: #{generator_forward.5} parent=5 // pred_check
      _
    $region26: #{generator_forward.5} parent=5 // pred_check_branch
      %178 = sbr.rel (%p175) target = $region28
    $region27: #{generator_forward.5} parent=5 // pred_region
      %s179 = ssub.s32 %s8, 1
      %p180 = scmp.lt.s32.totalorder %s19, 0
      %s181 = scalar_select %p180, %s19, 0
      %p182 = scmp.lt.s32.totalorder %s20, 0
      %s183 = scalar_select %p182, %s20, 0
      %p184 = scmp.lt.s32.totalorder %s22, 0
      %s185 = scalar_select %p184, %s22, 0
      %s186 = sadd.s32 %s185, %s183
      %s187 = sadd.s32 %s186, %s181
      %s188 = smul.addr %s187, 4
      %s189 = scalar_lea.vmem %s0, %s188
      %p190 = pneg %p64
      %p191 = pneg %p61
      %s192 = smul.u32 4, %s21
      %p193 = scmp.lt.s32.totalorder %s19, 0
      %s194 = scalar_select %p193, %s19, 0
      %p195 = scmp.lt.s32.totalorder %s22, 0
      %s196 = scalar_select %p195, %s22, 0
      %p197 = scmp.lt.s32.totalorder %s192, 7
      %s198 = scalar_select %p197, %s192, 7
      %s199 = smul.addr %s196, 8
      %s200 = sadd.s32 %s198, %s199
      %s201 = smul.addr %s194, 8
      %s202 = sadd.s32 %s200, %s201
      %s203 = smul.addr %s202, 4
      %s204 = scalar_lea.vmem %s1, %s203
      %p205 = pneg %p94
      %p206 = pneg %p91
      %p207 = pneg %p124
      %p208 = pneg %p121
      %s209 = smul.u32 4, %s21
      %p210 = scmp.lt.s32.totalorder %s19, 0
      %s211 = scalar_select %p210, %s19, 0
      %p212 = scmp.lt.s32.totalorder %s20, 0
      %s213 = scalar_select %p212, %s20, 0
      %p214 = scmp.lt.s32.totalorder %s209, 7
      %s215 = scalar_select %p214, %s209, 7
      %s216 = smul.addr %s213, 8
      %s217 = sadd.s32 %s215, %s216
      %s218 = smul.addr %s211, 8
      %s219 = sadd.s32 %s217, %s218
      %s220 = smul.addr %s219, 4
      %s221 = scalar_lea.vmem %s2, %s220
      %p222 = scmp.lt.s32.totalorder %s19, 0
      %s223 = scalar_select %p222, %s19, 0
      %p224 = scmp.lt.s32.totalorder %s20, 0
      %s225 = scalar_select %p224, %s20, 0
      %p226 = scmp.lt.s32.totalorder %s22, 0
      %s227 = scalar_select %p226, %s22, 0
      %s228 = sadd.s32 %s227, %s225
      %s229 = sadd.s32 %s228, %s223
      %s230 = smul.addr %s229, 4
      %s231 = scalar_lea.vmem %s0, %s230
      %s232 = smul.u32 4, %s21
      %p233 = scmp.lt.s32.totalorder %s19, 0
      %s234 = scalar_select %p233, %s19, 0
      %p235 = scmp.lt.s32.totalorder %s22, 0
      %s236 = scalar_select %p235, %s22, 0
      %p237 = scmp.lt.s32.totalorder %s232, 7
      %s238 = scalar_select %p237, %s232, 7
      %s239 = smul.addr %s236, 8
      %s240 = sadd.s32 %s238, %s239
      %s241 = smul.addr %s234, 8
      %s242 = sadd.s32 %s240, %s241
      %s243 = smul.addr %s242, 4
      %s244 = scalar_lea.vmem %s1, %s243
      %s245 = smul.u32 4, %s21
      %s246 = smul.u32 4, %s21
      %p247 = scmp.lt.s32.totalorder %s19, 0
      %s248 = scalar_select %p247, %s19, 0
      %p249 = scmp.lt.s32.totalorder %s20, 0
      %s250 = scalar_select %p249, %s20, 0
      %p251 = scmp.lt.s32.totalorder %s246, 7
      %s252 = scalar_select %p251, %s246, 7
      %s253 = smul.addr %s250, 8
      %s254 = sadd.s32 %s252, %s253
      %s255 = smul.addr %s248, 8
      %s256 = sadd.s32 %s254, %s255
      %s257 = smul.addr %s256, 4
      %s258 = scalar_lea.vmem %s2, %s257
      %s259 = smul.u32 4, %s21
      %p261 = scmp.eq.s32.totalorder %s22, 0
      // Predicated region
      $region29: #{generator_forward.5} parent=27 // pred_check
        %p262 = pneg %p261
      $region30: #{generator_forward.5} parent=27 // pred_check_branch
        %264 = sbr.rel (%p262) target = $region32
      $region31: #{generator_forward.5} parent=27 // pred_region
        %265 = vst [vmem:[#allocation2] sm:$0xff] 0.0
        %266 = vst [vmem:[#allocation2 + $0x8] sm:$0xff] 0.0
        %267 = vst [vmem:[#allocation2 + $0x10] sm:$0xff] 0.0
        %268 = vst [vmem:[#allocation2 + $0x18] sm:$0xff] 0.0
      $region32: #{generator_forward.5} parent=27 // pred_fallthru
        _
      %v269 = vld [vmem:[#allocation2] sm:$0xff]
      %v270 = vld [vmem:[#allocation2 + $0x8] sm:$0xff]
      %v271 = vld [vmem:[#allocation2 + $0x10] sm:$0xff]
      %v272 = vld [vmem:[#allocation2 + $0x18] sm:$0xff]
      %v273 = vld [vmem:[%s231] sm:$0xf]
      %v274 = vld [vmem:[%s244] sm:$0xff]
      %v275 = vld [vmem:[%s244 + $0x8] sm:$0xff]
      %v278 = vunpack.c.l.b16 %v274
      %v279 = vunpack.c.h.b16 %v274
      %v280 = vunpack.c.l.b16 %v275
      %v281 = vunpack.c.h.b16 %v275
      %v282 = vpack.c.b16 %v278, %v278
      %v283 = vpack.c.b16 %v279, %v279
      %v284 = vpack.c.b16 %v280, %v280
      %v285 = vpack.c.b16 %v281, %v281
      %vm286 = vcmask 64512
      %v288 = vsel %vm286, %v273, 0
      %vm290 = vcmask 1043456
      %v292 = vsel %vm290, %v282, 0
      %v295 = vsel %vm290, %v283, 0
      %v298 = vsel %vm290, %v284, 0
      %v301 = vsel %vm290, %v285, 0
      %303 = vmatprep.subr.bf16.mxu0 %v295
      %304 = vmatpush1.bf16.msra.mxu0 %v292
      %305 = vmatprep.subr.bf16.mxu0 0
      %306 = vmatpush1.bf16.msra.mxu0 0
      %307 = vmatprep.subr.bf16.mxu0 0
      %308 = vmatpush1.bf16.msra.mxu0 0
      %309 = vmatprep.subr.bf16.mxu0 0
      %310 = vmatpush1.bf16.msra.mxu0 0
      %311 = vmatprep.subr.bf16.mxu0 0
      %312 = vmatpush1.bf16.msra.mxu0 0
      %313 = vmatprep.subr.bf16.mxu0 0
      %314 = vmatpush1.bf16.msra.mxu0 0
      %315 = vmatprep.subr.bf16.mxu0 0
      %316 = vmatpush1.bf16.msra.mxu0 0
      %317 = vmatprep.subr.bf16.mxu0 0
      %318 = vmatpush1.bf16.msra.mxu0 0
      %319 = vmatprep.subr.bf16.mxu0 0
      %320 = vmatpush1.bf16.msra.mxu0 0
      %321 = vmatprep.subr.bf16.mxu0 0
      %322 = vmatpush1.bf16.msra.mxu0 0
      %323 = vmatprep.subr.bf16.mxu0 0
      %324 = vmatpush1.bf16.msra.mxu0 0
      %325 = vmatprep.subr.bf16.mxu0 0
      %326 = vmatpush1.bf16.msra.mxu0 0
      %327 = vmatprep.subr.bf16.mxu0 0
      %328 = vmatpush1.bf16.msra.mxu0 0
      %329 = vmatprep.subr.bf16.mxu0 0
      %330 = vmatpush1.bf16.msra.mxu0 0
      %331 = vmatprep.subr.bf16.mxu0 0
      %332 = vmatpush1.bf16.msra.mxu0 0
      %333 = vmatprep.subr.bf16.mxu0 0
      %334 = vmatpush1.bf16.msra.mxu0 0
      %335 = vmatprep.mubr.bf16.mxu0 0
      %336 = vmatmul.mubr.bf16.gmra.mrb[0].mxu0 %v288
      %v337 = vpop.f32.mrb[0].mxu0
      %v338 = vadd.f32 0.0, %v337
      %v339 = vpop.f32.mrb[0].mxu0
      %v340 = vadd.f32 0.0, %v339
      %v341 = vpop.f32.mrb[0].mxu0
      %v342 = vpop.f32.mrb[0].mxu0
      %343 = vdwg.mxu0
      %344 = vmatprep.subr.bf16.mxu0 %v301
      %345 = vmatpush1.bf16.msra.mxu0 %v298
      %346 = vmatprep.subr.bf16.mxu0 0
      %347 = vmatpush1.bf16.msra.mxu0 0
      %348 = vmatprep.subr.bf16.mxu0 0
      %349 = vmatpush1.bf16.msra.mxu0 0
      %350 = vmatprep.subr.bf16.mxu0 0
      %351 = vmatpush1.bf16.msra.mxu0 0
      %352 = vmatprep.subr.bf16.mxu0 0
      %353 = vmatpush1.bf16.msra.mxu0 0
      %354 = vmatprep.subr.bf16.mxu0 0
      %355 = vmatpush1.bf16.msra.mxu0 0
      %356 = vmatprep.subr.bf16.mxu0 0
      %357 = vmatpush1.bf16.msra.mxu0 0
      %358 = vmatprep.subr.bf16.mxu0 0
      %359 = vmatpush1.bf16.msra.mxu0 0
      %360 = vmatprep.subr.bf16.mxu0 0
      %361 = vmatpush1.bf16.msra.mxu0 0
      %362 = vmatprep.subr.bf16.mxu0 0
      %363 = vmatpush1.bf16.msra.mxu0 0
      %364 = vmatprep.subr.bf16.mxu0 0
      %365 = vmatpush1.bf16.msra.mxu0 0
      %366 = vmatprep.subr.bf16.mxu0 0
      %367 = vmatpush1.bf16.msra.mxu0 0
      %368 = vmatprep.subr.bf16.mxu0 0
      %369 = vmatpush1.bf16.msra.mxu0 0
      %370 = vmatprep.subr.bf16.mxu0 0
      %371 = vmatpush1.bf16.msra.mxu0 0
      %372 = vmatprep.subr.bf16.mxu0 0
      %373 = vmatpush1.bf16.msra.mxu0 0
      %374 = vmatprep.subr.bf16.mxu0 0
      %375 = vmatpush1.bf16.msra.mxu0 0
      %376 = vmatprep.mubr.bf16.mxu0 0
      %377 = vmatmul.mubr.bf16.gmra.mrb[0].mxu0 %v288
      %v378 = vpop.f32.mrb[0].mxu0
      %v379 = vadd.f32 0.0, %v378
      %v380 = vpop.f32.mrb[0].mxu0
      %v381 = vadd.f32 0.0, %v380
      %v382 = vpop.f32.mrb[0].mxu0
      %v383 = vpop.f32.mrb[0].mxu0
      %384 = vdwg.mxu0
      %v385 = vadd.f32 %v269, %v338
      %v386 = vadd.f32 %v270, %v340
      %v387 = vadd.f32 %v271, %v379
      %v388 = vadd.f32 %v272, %v381
      %389 = vst [vmem:[#allocation2] sm:$0xff] %v385
      %390 = vst [vmem:[#allocation2 + $0x8] sm:$0xff] %v386
      %391 = vst [vmem:[#allocation2 + $0x10] sm:$0xff] %v387
      %392 = vst [vmem:[#allocation2 + $0x18] sm:$0xff] %v388
      // Predicated region
      $region33: #{generator_forward.5} parent=27 // pred_check
        %p393 = pneg %p261
      $region34: #{generator_forward.5} parent=27 // pred_check_branch
        %395 = sbr.rel (%p393) target = $region36
      $region35: #{generator_forward.5} parent=27 // pred_region
        %v396 = vld [vmem:[#allocation2] sm:$0xff]
        %v397 = vld [vmem:[#allocation2 + $0x8] sm:$0xff]
        %v398 = vld [vmem:[#allocation2 + $0x10] sm:$0xff]
        %v399 = vld [vmem:[#allocation2 + $0x18] sm:$0xff]
        %v400 = vmax.f32 %v396, 0.0
        %v401 = vmax.f32 %v397, 0.0
        %v402 = vmax.f32 %v398, 0.0
        %v403 = vmax.f32 %v399, 0.0
        %v404 = vpack.c.bf16 %v400, %v400
        %v405 = vpack.c.bf16 %v401, %v401
        %v406 = vpack.c.bf16 %v402, %v402
        %v407 = vpack.c.bf16 %v403, %v403
        %v412 = vunpack.c.l.b16 %v404
        %v413 = vunpack.c.l.b16 %v405
        %v414 = vunpack.c.l.b16 %v406
        %v415 = vunpack.c.l.b16 %v407
        %v416 = vpack.c.b16 %v413, %v412
        %v417 = vpack.c.b16 %v415, %v414
        %420 = vst [vmem:[%s258] sm:$0xff] %v416
        %421 = vst [vmem:[%s258 + $0x8] sm:$0xff] %v417
      $region36: #{generator_forward.5} parent=27 // pred_fallthru
        _
      %s422 = smul.u32 4, %s21
      %p423 = scmp.lt.s32.totalorder %s19, 0
      %s424 = scalar_select %p423, %s19, 0
      %p425 = scmp.lt.s32.totalorder %s20, 0
      %s426 = scalar_select %p425, %s20, 0
      %p427 = scmp.lt.s32.totalorder %s422, 7
      %s428 = scalar_select %p427, %s422, 7
      %s429 = smul.addr %s426, 8
      %s430 = sadd.s32 %s428, %s429
      %s431 = smul.addr %s424, 8
      %s432 = sadd.s32 %s430, %s431
      %s433 = smul.addr %s432, 4
      %s434 = scalar_lea.vmem %s2, %s433
      // Predicated region
      $region37: #{generator_forward.5} parent=27 // pred_check
        %p435 = pneg %p121
      $region38: #{generator_forward.5} parent=27 // pred_check_branch
        %437 = sbr.rel (%p435) target = $region40
      $region39: #{generator_forward.5} parent=27 // pred_region
        %s438 = smul.u32 4, %s21
      $region40: #{generator_forward.5} parent=27 // pred_fallthru
        _
    $region28: #{generator_forward.5} parent=5 // pred_fallthru
      _
    %p439 = scmp.le.s32.totalorder 2, %s8
    // Predicated region
    $region41: #{generator_forward.5} parent=5 // pred_check
      %p440 = pneg %p439
    $region42: #{generator_forward.5} parent=5 // pred_check_branch
      %442 = sbr.rel (%p440) target = $region44
    $region43: #{generator_forward.5} parent=5 // pred_region
      %s443 = ssub.s32 %s8, 2
      // Predicated region
      $region45: #{generator_forward.5} parent=43 // pred_check
        %p444 = pneg %p127
      $region46: #{generator_forward.5} parent=43 // pred_check_branch
        %446 = sbr.rel (%p444) target = $region48
      $region47: #{generator_forward.5} parent=43 // pred_region
        %s447 = smul.u32 4, %s25
        %p448 = scmp.lt.s32.totalorder %s23, 0
        %s449 = scalar_select %p448, %s23, 0
        %p450 = scmp.lt.s32.totalorder %s24, 0
        %s451 = scalar_select %p450, %s24, 0
        %p452 = scmp.lt.s32.totalorder %s447, 7
        %s453 = scalar_select %p452, %s447, 7
        %s454 = smul.addr %s451, 8
        %s455 = sadd.s32 %s453, %s454
        %s456 = smul.addr %s449, 8
        %s457 = sadd.s32 %s455, %s456
        %s458 = smul.addr %s457, 4
        %s459 = scalar_lea.vmem %s2, %s458
      $region48: #{generator_forward.5} parent=43 // pred_fallthru
        _
    $region44: #{generator_forward.5} parent=5 // pred_fallthru
      _
  $region6: #{generator_forward.5} parent=0 // loop_footer
    %s12 = sadd.s32 1, %s8
  $region7: #{generator_forward.5} parent=0 // loop_footer_branch
    %7 = sbr.rel target = $region3
  $region8: #{generator_forward.5} parent=0 // loop_exit
    _

// kernel: generator_forward.6
$region0: #{generator_forward.6}
  #allocation0 [shape = 'u32[]', space=smem, size = 0x4, offset = 0x4, fixed_abs, tag = 'smem constant byte address 0x4 - core index']
  #allocation1 [shape = 'u32[144,128]{1,0:T(1,128)}', space=vmem, size = 0x12000, scoped, tag = 'internal scratch']
  #allocation2 [shape = 'f32[32,128]{1,0:T(8,128)}', space=vmem, size = 0x4000, scoped, tag = 'scratch operand']
  %s0 = inlined_call_operand.vmem [shape: bf16[4,32,256], index: 0, kind: input, shape index: {}]
  %s1 = inlined_call_operand.vmem [shape: bf16[4,256,128], index: 1, kind: input, shape index: {}]
  %s2 = inlined_call_operand.vmem [shape: bf16[4,32,128], index: 2, kind: output, shape index: {}]
  %s3 = sld [smem:[#allocation0]]
  $region49: #{generator_forward.6} parent=0
    _
  %s5 = ssub.s32 1, %s3
  %s6 = scalar_select 0, %s5, %s3
  loop: start=0, step=1, limit=6
  $region2: #{generator_forward.6} parent=0 // loop_pre_header
    _
  $region3: #{generator_forward.6} parent=0 // loop_header
    %s8 = sphi 0, %s12
    %p9 = scmp.ge.s32.totalorder %s8, 6
    %s15 = sphi 0, %s41
    %s16 = sphi 0, %s37
    %s17 = sphi 0, %s33
    %s18 = sphi 0, %s29
    %s19 = sphi 0, %s15
    %s20 = sphi 0, %s16
    %s21 = sphi 0, %s17
    %s22 = sphi 0, %s18
    %s23 = sphi 0, %s19
    %s24 = sphi 0, %s20
    %s25 = sphi 0, %s21
    %s26 = sphi 0, %s22
    %s48 = sphi 0, %s50
    %s51 = sphi 0, %s48
    %s52 = sphi 0, %s51
    %s68 = sphi 0, %s52
    %s78 = sphi 0, %s80
    %s81 = sphi 0, %s78
    %s82 = sphi 0, %s81
    %s98 = sphi 0, %s82
    %s108 = sphi 0, %s110
    %s111 = sphi 0, %s108
    %s112 = sphi 0, %s111
    %s128 = sphi 0, %s112
  $region4: #{generator_forward.6} parent=0 // loop_header_branch
    %11 = sbr.rel (%p9) target = $region8
  $region5: #{generator_forward.6} parent=0 // loop_body
    %s13 = ssub.s32 %s8, 1
    %s14 = ssub.s32 %s8, 2
    %s27 = sadd.s32 1, %s18
    %p28 = scmp.ge.s32.totalorder %s27, 1
    %s29 = scalar_select %p28, 0, %s27
    %s30 = sadd.s32 1, %s17
    %s31 = scalar_select %p28, %s30, %s17
    %p32 = scmp.ge.s32.totalorder %s31, 1
    %s33 = scalar_select %p32, 0, %s31
    %s34 = sadd.s32 1, %s16
    %s35 = scalar_select %p32, %s34, %s16
    %p36 = scmp.ge.s32.totalorder %s35, 1
    %s37 = scalar_select %p36, 0, %s35
    %s38 = sadd.s32 1, %s15
    %s39 = scalar_select %p36, %s38, %s15
    %p40 = scmp.ge.s32.totalorder %s39, 4
    %s41 = scalar_select %p40, 0, %s39
    %s42 = ssub.s32 %s15, %s41
    %s43 = ssub.s32 %s16, %s37
    %s44 = sor.u32 %s42, %s43
    %s45 = ssub.s32 %s18, %s29
    %s46 = sor.u32 %s44, %s45
    %p47 = scmp.eq.s32.totalorder %s46, 0
    %s49 = sadd.s32 %s48, 1
    %s50 = scalar_select %p47, %s48, %s49
    %p53 = pneg %p47
    %p54 = scmp.eq.s32.totalorder %s8, 3
    %p55 = por %p53, %p54
    %p56 = scmp.ne.s32.totalorder %s48, %s51
    %p57 = scmp.eq.s32.totalorder %s8, 0
    %p58 = por %p56, %p57
    %p59 = scmp.ne.s32.totalorder %s48, %s51
    %p60 = scmp.eq.s32.totalorder %s13, 3
    %p61 = por %p59, %p60
    %p62 = scmp.ne.s32.totalorder %s51, %s52
    %p63 = scmp.eq.s32.totalorder %s13, 0
    %p64 = por %p62, %p63
    %p65 = scmp.ne.s32.totalorder %s51, %s52
    %p66 = scmp.eq.s32.totalorder %s14, 3
    %p67 = por %p65, %p66
    %p69 = scmp.ne.s32.totalorder %s52, %s68
    %p70 = scmp.eq.s32.totalorder %s14, 0
    %p71 = por %p69, %p70
    %s72 = ssub.s32 %s15, %s41
    %s73 = ssub.s32 %s18, %s29
    %s74 = sor.u32 %s72, %s73
    %s75 = ssub.s32 %s17, %s33
    %s76 = sor.u32 %s74, %s75
    %p77 = scmp.eq.s32.totalorder %s76, 0
    %s79 = sadd.s32 %s78, 1
    %s80 = scalar_select %p77, %s78, %s79
    %p83 = pneg %p77
    %p84 = scmp.eq.s32.totalorder %s8, 3
    %p85 = por %p83, %p84
    %p86 = scmp.ne.s32.totalorder %s78, %s81
    %p87 = scmp.eq.s32.totalorder %s8, 0
    %p88 = por %p86, %p87
    %p89 = scmp.ne.s32.totalorder %s78, %s81
    %p90 = scmp.eq.s32.totalorder %s13, 3
    %p91 = por %p89, %p90
    %p92 = scmp.ne.s32.totalorder %s81, %s82
    %p93 = scmp.eq.s32.totalorder %s13, 0
    %p94 = por %p92, %p93
    %p95 = scmp.ne.s32.totalorder %s81, %s82
    %p96 = scmp.eq.s32.totalorder %s14, 3
    %p97 = por %p95, %p96
    %p99 = scmp.ne.s32.totalorder %s82, %s98
    %p100 = scmp.eq.s32.totalorder %s14, 0
    %p101 = por %p99, %p100
    %s102 = ssub.s32 %s15, %s41
    %s103 = ssub.s32 %s16, %s37
    %s104 = sor.u32 %s102, %s103
    %s105 = ssub.s32 %s17, %s33
    %s106 = sor.u32 %s104, %s105
    %p107 = scmp.eq.s32.totalorder %s106, 0
    %s109 = sadd.s32 %s108, 1
    %s110 = scalar_select %p107, %s108, %s109
    %p113 = pneg %p107
    %p114 = scmp.eq.s32.totalorder %s8, 3
    %p115 = por %p113, %p114
    %p116 = scmp.ne.s32.totalorder %s108, %s111
    %p117 = scmp.eq.s32.totalorder %s8, 0
    %p118 = por %p116, %p117
    %p119 = scmp.ne.s32.totalorder %s108, %s111
    %p120 = scmp.eq.s32.totalorder %s13, 3
    %p121 = por %p119, %p120
    %p122 = scmp.ne.s32.totalorder %s111, %s112
    %p123 = scmp.eq.s32.totalorder %s13, 0
    %p124 = por %p122, %p123
    %p125 = scmp.ne.s32.totalorder %s111, %s112
    %p126 = scmp.eq.s32.totalorder %s14, 3
    %p127 = por %p125, %p126
    %p129 = scmp.ne.s32.totalorder %s112, %s128
    %p130 = scmp.eq.s32.totalorder %s14, 0
    %p131 = por %p129, %p130
    %p132 = scmp.le.s32.totalorder 1, %s8
    %p133 = scmp.lt.s32.totalorder %s8, 5
    %p134 = pnand %p132, %p133
    %p135 = pneg %p134
    // Predicated region
    $region9: #{generator_forward.6} parent=5 // pred_check
      _
    $region10: #{generator_forward.6} parent=5 // pred_check_branch
      %137 = sbr.rel (%p134) target = $region12
    $region11: #{generator_forward.6} parent=5 // pred_region
      %s138 = ssub.s32 %s8, 1
    $region12: #{generator_forward.6} parent=5 // pred_fallthru
      _
    %p139 = scmp.lt.s32.totalorder %s8, 4
    // Predicated region
    $region13: #{generator_forward.6} parent=5 // pred_check
      %p140 = pneg %p139
    $region14: #{generator_forward.6} parent=5 // pred_check_branch
      %142 = sbr.rel (%p140) target = $region16
    $region15: #{generator_forward.6} parent=5 // pred_region
      // Predicated region
      $region17: #{generator_forward.6} parent=15 // pred_check
        %p143 = pneg %p58
      $region18: #{generator_forward.6} parent=15 // pred_check_branch
        %145 = sbr.rel (%p143) target = $region20
      $region19: #{generator_forward.6} parent=15 // pred_region
        %s146 = smul.u32 4, %s16
        %s147 = smul.u32 2, %s18
        %p148 = scmp.lt.s32.totalorder %s15, 3
        %s149 = scalar_select %p148, %s15, 3
        %p150 = scmp.lt.s32.totalorder %s146, 3
        %s151 = scalar_select %p150, %s146, 3
        %p152 = scmp.lt.s32.totalorder %s147, 1
        %s153 = scalar_select %p152, %s147, 1
        %s154 = smul.addr %s151, 2
        %s155 = sadd.s32 %s153, %s154
        %s156 = smul.addr %s149, 8
        %s157 = sadd.s32 %s155, %s156
        %s158 = smul.addr %s157, 4
        %s159 = scalar_lea.vmem %s0, %s158
        %s160 = smul.u32 4, %s16
        %s161 = smul.u32 2, %s18
      $region20: #{generator_forward.6} parent=15 // pred_fallthru
        _
      // Predicated region
      $region21: #{generator_forward.6} parent=15 // pred_check
        %p162 = pneg %p88
      $region22: #{generator_forward.6} parent=15 // pred_check_branch
        %164 = sbr.rel (%p162) target = $region24
      $region23: #{generator_forward.6} parent=15 // pred_region
        %s165 = smul.u32 32, %s18
        %p166 = scmp.lt.s32.totalorder %s15, 3
        %s167 = scalar_select %p166, %s15, 3
        %p168 = scmp.lt.s32.totalorder %s165, 31
        %s169 = scalar_select %p168, %s165, 31
        %p170 = scmp.lt.s32.totalorder %s17, 0
        %s171 = scalar_select %p170, %s17, 0
        %s172 = sadd.s32 %s171, %s169
        %s173 = smul.addr %s167, 32
        %s174 = sadd.s32 %s172, %s173
        %s175 = smul.addr %s174, 4
        %s176 = scalar_lea.vmem %s1, %s175
        %s177 = smul.u32 32, %s18
      $region24: #{generator_forward.6} parent=15 // pred_fallthru
        _
    $region16: #{generator_forward.6} parent=5 // pred_fallthru
      _
    %p178 = scmp.le.s32.totalorder 1, %s8
    %p179 = scmp.lt.s32.totalorder %s8, 5
    %p180 = pnand %p178, %p179
    %p181 = pneg %p180
    // Predicated region
    $region25: #{generator_forward.6} parent=5 // pred_check
      _
    $region26: #{generator_forward.6} parent=5 // pred_check_branch
      %183 = sbr.rel (%p180) target = $region28
    $region27: #{generator_forward.6} parent=5 // pred_region
      %s184 = ssub.s32 %s8, 1
      %s185 = smul.u32 4, %s20
      %s186 = smul.u32 2, %s22
      %p187 = scmp.lt.s32.totalorder %s19, 3
      %s188 = scalar_select %p187, %s19, 3
      %p189 = scmp.lt.s32.totalorder %s185, 3
      %s190 = scalar_select %p189, %s185, 3
      %p191 = scmp.lt.s32.totalorder %s186, 1
      %s192 = scalar_select %p191, %s186, 1
      %s193 = smul.addr %s190, 2
      %s194 = sadd.s32 %s192, %s193
      %s195 = smul.addr %s188, 8
      %s196 = sadd.s32 %s194, %s195
      %s197 = smul.addr %s196, 4
      %s198 = scalar_lea.vmem %s0, %s197
      %p199 = pneg %p64
      %p200 = pneg %p61
      %s201 = smul.u32 32, %s22
      %p202 = scmp.lt.s32.totalorder %s19, 3
      %s203 = scalar_select %p202, %s19, 3
      %p204 = scmp.lt.s32.totalorder %s201, 31
      %s205 = scalar_select %p204, %s201, 31
      %p206 = scmp.lt.s32.totalorder %s21, 0
      %s207 = scalar_select %p206, %s21, 0
      %s208 = sadd.s32 %s207, %s205
      %s209 = smul.addr %s203, 32
      %s210 = sadd.s32 %s208, %s209
      %s211 = smul.addr %s210, 4
      %s212 = scalar_lea.vmem %s1, %s211
      %p213 = pneg %p94
      %p214 = pneg %p91
      %p215 = pneg %p124
      %p216 = pneg %p121
      %s217 = smul.u32 4, %s20
      %p218 = scmp.lt.s32.totalorder %s19, 3
      %s219 = scalar_select %p218, %s19, 3
      %p220 = scmp.lt.s32.totalorder %s217, 3
      %s221 = scalar_select %p220, %s217, 3
      %p222 = scmp.lt.s32.totalorder %s21, 0
      %s223 = scalar_select %p222, %s21, 0
      %s224 = sadd.s32 %s223, %s221
      %s225 = smul.addr %s219, 4
      %s226 = sadd.s32 %s224, %s225
      %s227 = smul.addr %s226, 4
      %s228 = scalar_lea.vmem %s2, %s227
      %s229 = smul.u32 4, %s20
      %s230 = smul.u32 2, %s22
      %p231 = scmp.lt.s32.totalorder %s19, 3
      %s232 = scalar_select %p231, %s19, 3
      %p233 = scmp.lt.s32.totalorder %s229, 3
      %s234 = scalar_select %p233, %s229, 3
      %p235 = scmp.lt.s32.totalorder %s230, 1
      %s236 = scalar_select %p235, %s230, 1
      %s237 = smul.addr %s234, 2
      %s238 = sadd.s32 %s236, %s237
      %s239 = smul.addr %s232, 8
      %s240 = sadd.s32 %s238, %s239
      %s241 = smul.addr %s240, 4
      %s242 = scalar_lea.vmem %s0, %s241
      %s243 = smul.u32 4, %s20
      %s244 = smul.u32 2, %s22
      %s245 = smul.u32 32, %s22
      %p246 = scmp.lt.s32.totalorder %s19, 3
      %s247 = scalar_select %p246, %s19, 3
      %p248 = scmp.lt.s32.totalorder %s245, 31
      %s249 = scalar_select %p248, %s245, 31
      %p250 = scmp.lt.s32.totalorder %s21, 0
      %s251 = scalar_select %p250, %s21, 0
      %s252 = sadd.s32 %s251, %s249
      %s253 = smul.addr %s247, 32
      %s254 = sadd.s32 %s252, %s253
      %s255 = smul.addr %s254, 4
      %s256 = scalar_lea.vmem %s1, %s255
      %s257 = smul.u32 32, %s22
      %s258 = smul.u32 4, %s20
      %p259 = scmp.lt.s32.totalorder %s19, 3
      %s260 = scalar_select %p259, %s19, 3
      %p261 = scmp.lt.s32.totalorder %s258, 3
      %s262 = scalar_select %p261, %s258, 3
      %p263 = scmp.lt.s32.totalorder %s21, 0
      %s264 = scalar_select %p263, %s21, 0
      %s265 = sadd.s32 %s264, %s262
      %s266 = smul.addr %s260, 4
      %s267 = sadd.s32 %s265, %s266
      %s268 = smul.addr %s267, 4
      %s269 = scalar_lea.vmem %s2, %s268
      %s270 = smul.u32 4, %s20
      %p272 = scmp.eq.s32.totalorder %s22, 0
      // Predicated region
      $region29: #{generator_forward.6} parent=27 // pred_check
        %p273 = pneg %p272
      $region30: #{generator_forward.6} parent=27 // pred_check_branch
        %275 = sbr.rel (%p273) target = $region32
      $region31: #{generator_forward.6} parent=27 // pred_region
        %276 = vst [vmem:[#allocation2] sm:$0xff] 0.0
        %277 = vst [vmem:[#allocation2 + $0x8] sm:$0xff] 0.0
        %278 = vst [vmem:[#allocation2 + $0x10] sm:$0xff] 0.0
        %279 = vst [vmem:[#allocation2 + $0x18] sm:$0xff] 0.0
      $region32: #{generator_forward.6} parent=27 // pred_fallthru
        _
      %v280 = vld [vmem:[#allocation2] sm:$0xff]
      %v281 = vld [vmem:[#allocation2 + $0x8] sm:$0xff]
      %v282 = vld [vmem:[#allocation2 + $0x10] sm:$0xff]
      %v283 = vld [vmem:[#allocation2 + $0x18] sm:$0xff]
      %v284 = vld [vmem:[%s242] sm:$0xff]
      %v285 = vld [vmem:[%s242 + $0x8] sm:$0xff]
      %v286 = vld [vmem:[%s242 + $0x10] sm:$0xff]
      %v287 = vld [vmem:[%s242 + $0x18] sm:$0xff]
      %v288 = vld [vmem:[%s256] sm:$0xf]
      %v289 = vld [vmem:[%s256 + $0x4] sm:$0xf]
      %v290 = vld [vmem:[%s256 + $0x8] sm:$0xf]
      %v291 = vld [vmem:[%s256 + $0xc] sm:$0xf]
      %v292 = vld [vmem:[%s256 + $0x10] sm:$0xf]
      %v293 = vld [vmem:[%s256 + $0x14] sm:$0xf]
      %v294 = vld [vmem:[%s256 + $0x18] sm:$0xf]
      %v295 = vld [vmem:[%s256 + $0x1c] sm:$0xf]
      %v296 = vld [vmem:[%s256 + $0x20] sm:$0xf]
      %v297 = vld [vmem:[%s256 + $0x24] sm:$0xf]
      %v298 = vld [vmem:[%s256 + $0x28] sm:$0xf]
      %v299 = vld [vmem:[%s256 + $0x2c] sm:$0xf]
      %v300 = vld [vmem:[%s256 + $0x30] sm:$0xf]
      %v301 = vld [vmem:[%s256 + $0x34] sm:$0xf]
      %v302 = vld [vmem:[%s256 + $0x38] sm:$0xf]
      %v303 = vld [vmem:[%s256 + $0x3c] sm:$0xf]
      %v304 = vld [vmem:[%s256 + $0x40] sm:$0xf]
      %v305 = vld [vmem:[%s256 + $0x44] sm:$0xf]
      %v306 = vld [vmem:[%s256 + $0x48] sm:$0xf]
      %v307 = vld [vmem:[%s256 + $0x4c] sm:$0xf]
      %v308 = vld [vmem:[%s256 + $0x50] sm:$0xf]
      %v309 = vld [vmem:[%s256 + $0x54] sm:$0xf]
      %v310 = vld [vmem:[%s256 + $0x58] sm:$0xf]
      %v311 = vld [vmem:[%s256 + $0x5c] sm:$0xf]
      %v312 = vld [vmem:[%s256 + $0x60] sm:$0xf]
      %v313 = vld [vmem:[%s256 + $0x64] sm:$0xf]
      %v314 = vld [vmem:[%s256 + $0x68] sm:$0xf]
      %v315 = vld [vmem:[%s256 + $0x6c] sm:$0xf]
      %v316 = vld [vmem:[%s256 + $0x70] sm:$0xf]
      %v317 = vld [vmem:[%s256 + $0x74] sm:$0xf]
      %v318 = vld [vmem:[%s256 + $0x78] sm:$0xf]
      %v319 = vld [vmem:[%s256 + $0x7c] sm:$0xf]
      %v324 = vunpack.c.l.b16 %v284
      %v325 = vunpack.c.h.b16 %v284
      %v326 = vunpack.c.l.b16 %v285
      %v327 = vunpack.c.h.b16 %v285
      %v328 = vunpack.c.l.b16 %v286
      %v329 = vunpack.c.h.b16 %v286
      %v330 = vunpack.c.l.b16 %v287
      %v331 = vunpack.c.h.b16 %v287
      %v332 = vpack.c.b16 %v326, %v324
      %v333 = vpack.c.b16 %v327, %v325
      %v334 = vpack.c.b16 %v330, %v328
      %v335 = vpack.c.b16 %v331, %v329
      %v372 = vunpack.c.l.b16 %v288
      %v373 = vunpack.c.l.b16 %v289
      %v374 = vunpack.c.l.b16 %v290
      %v375 = vunpack.c.l.b16 %v291
      %v376 = vunpack.c.l.b16 %v292
      %v377 = vunpack.c.l.b16 %v293
      %v378 = vunpack.c.l.b16 %v294
      %v379 = vunpack.c.l.b16 %v295
      %v380 = vunpack.c.l.b16 %v296
      %v381 = vunpack.c.l.b16 %v297
      %v382 = vunpack.c.l.b16 %v298
      %v383 = vunpack.c.l.b16 %v299
      %v384 = vunpack.c.l.b16 %v300
      %v385 = vunpack.c.l.b16 %v301
      %v386 = vunpack.c.l.b16 %v302
      %v387 = vunpack.c.l.b16 %v303
      %v388 = vunpack.c.l.b16 %v304
      %v389 = vunpack.c.l.b16 %v305
      %v390 = vunpack.c.l.b16 %v306
      %v391 = vunpack.c.l.b16 %v307
      %v392 = vunpack.c.l.b16 %v308
      %v393 = vunpack.c.l.b16 %v309
      %v394 = vunpack.c.l.b16 %v310
      %v395 = vunpack.c.l.b16 %v311
      %v396 = vunpack.c.l.b16 %v312
      %v397 = vunpack.c.l.b16 %v313
      %v398 = vunpack.c.l.b16 %v314
      %v399 = vunpack.c.l.b16 %v315
      %v400 = vunpack.c.l.b16 %v316
      %v401 = vunpack.c.l.b16 %v317
      %v402 = vunpack.c.l.b16 %v318
      %v403 = vunpack.c.l.b16 %v319
      %v404 = vpack.c.b16 %v373, %v372
      %v405 = vpack.c.b16 %v375, %v374
      %v406 = vpack.c.b16 %v377, %v376
      %v407 = vpack.c.b16 %v379, %v378
      %v408 = vpack.c.b16 %v381, %v380
      %v409 = vpack.c.b16 %v383, %v382
      %v410 = vpack.c.b16 %v385, %v384
      %v411 = vpack.c.b16 %v387, %v386
      %v412 = vpack.c.b16 %v389, %v388
      %v413 = vpack.c.b16 %v391, %v390
      %v414 = vpack.c.b16 %v393, %v392
      %v415 = vpack.c.b16 %v395, %v394
      %v416 = vpack.c.b16 %v397, %v396
      %v417 = vpack.c.b16 %v399, %v398
      %v418 = vpack.c.b16 %v401, %v400
      %v419 = vpack.c.b16 %v403, %v402
      %436 = vmatprep.subr.bf16.mxu0 0
      %437 = vmatpush1.bf16.msra.mxu0 %v404
      %438 = vmatprep.subr.bf16.mxu0 0
      %439 = vmatpush1.bf16.msra.mxu0 %v405
      %440 = vmatprep.subr.bf16.mxu0 0
      %441 = vmatpush1.bf16.msra.mxu0 %v406
      %442 = vmatprep.subr.bf16.mxu0 0
      %443 = vmatpush1.bf16.msra.mxu0 %v407
      %444 = vmatprep.subr.bf16.mxu0 0
      %445 = vmatpush1.bf16.msra.mxu0 %v408
      %446 = vmatprep.subr.bf16.mxu0 0
      %447 = vmatpush1.bf16.msra.mxu0 %v409
      %448 = vmatprep.subr.bf16.mxu0 0
      %449 = vmatpush1.bf16.msra.mxu0 %v410
      %450 = vmatprep.subr.bf16.mxu0 0
      %451 = vmatpush1.bf16.msra.mxu0 %v411
      %452 = vmatprep.subr.bf16.mxu0 0
      %453 = vmatpush1.bf16.msra.mxu0 %v412
      %454 = vmatprep.subr.bf16.mxu0 0
      %455 = vmatpush1.bf16.msra.mxu0 %v413
      %456 = vmatprep.subr.bf16.mxu0 0
      %457 = vmatpush1.bf16.msra.mxu0 %v414
      %458 = vmatprep.subr.bf16.mxu0 0
      %459 = vmatpush1.bf16.msra.mxu0 %v415
      %460 = vmatprep.subr.bf16.mxu0 0
      %461 = vmatpush1.bf16.msra.mxu0 %v416
      %462 = vmatprep.subr.bf16.mxu0 0
      %463 = vmatpush1.bf16.msra.mxu0 %v417
      %464 = vmatprep.subr.bf16.mxu0 0
      %465 = vmatpush1.bf16.msra.mxu0 %v418
      %466 = vmatprep.subr.bf16.mxu0 0
      %467 = vmatpush1.bf16.msra.mxu0 %v419
      %468 = vmatprep.mubr.bf16.mxu0 %v333
      %469 = vmatmul.mubr.bf16.gmra.mrb[0].mxu0 %v332
      %v470 = vpop.f32.mrb[0].mxu0
      %v471 = vadd.f32 0.0, %v470
      %v472 = vpop.f32.mrb[0].mxu0
      %v473 = vpop.f32.mrb[0].mxu0
      %v474 = vadd.f32 0.0, %v473
      %v475 = vpop.f32.mrb[0].mxu0
      %476 = vmatprep.mubr.bf16.mxu0 %v335
      %477 = vmatmul.mubr.bf16.gmra.mrb[0].mxu0 %v334
      %v478 = vpop.f32.mrb[0].mxu0
      %v479 = vadd.f32 0.0, %v478
      %v480 = vpop.f32.mrb[0].mxu0
      %v481 = vpop.f32.mrb[0].mxu0
      %v482 = vadd.f32 0.0, %v481
      %v483 = vpop.f32.mrb[0].mxu0
      %484 = vdwg.mxu0
      %v485 = vadd.f32 %v280, %v471
      %v486 = vadd.f32 %v281, %v474
      %v487 = vadd.f32 %v282, %v479
      %v488 = vadd.f32 %v283, %v482
      %489 = vst [vmem:[#allocation2] sm:$0xff] %v485
      %490 = vst [vmem:[#allocation2 + $0x8] sm:$0xff] %v486
      %491 = vst [vmem:[#allocation2 + $0x10] sm:$0xff] %v487
      %492 = vst [vmem:[#allocation2 + $0x18] sm:$0xff] %v488
      // Predicated region
      $region33: #{generator_forward.6} parent=27 // pred_check
        %p493 = pneg %p272
      $region34: #{generator_forward.6} parent=27 // pred_check_branch
        %495 = sbr.rel (%p493) target = $region36
      $region35: #{generator_forward.6} parent=27 // pred_region
        %v496 = vld [vmem:[#allocation2] sm:$0xff]
        %v497 = vld [vmem:[#allocation2 + $0x8] sm:$0xff]
        %v498 = vld [vmem:[#allocation2 + $0x10] sm:$0xff]
        %v499 = vld [vmem:[#allocation2 + $0x18] sm:$0xff]
        %v500 = vmax.f32 %v496, 0.0
        %v501 = vmax.f32 %v497, 0.0
        %v502 = vmax.f32 %v498, 0.0
        %v503 = vmax.f32 %v499, 0.0
        %v504 = vpack.c.bf16 %v501, %v500
        %v505 = vpack.c.bf16 %v503, %v502
        %v508 = vunpack.c.l.b16 %v504
        %v509 = vunpack.c.h.b16 %v504
        %v510 = vunpack.c.l.b16 %v505
        %v511 = vunpack.c.h.b16 %v505
        %v512 = vpack.c.b16 %v508, %v508
        %v513 = vpack.c.b16 %v509, %v509
        %v514 = vpack.c.b16 %v510, %v510
        %v515 = vpack.c.b16 %v511, %v511
        %520 = vst [vmem:[%s269] sm:$0xf] %v512
        %521 = vst [vmem:[%s269 + $0x4] sm:$0xf] %v513
        %522 = vst [vmem:[%s269 + $0x8] sm:$0xf] %v514
        %523 = vst [vmem:[%s269 + $0xc] sm:$0xf] %v515
      $region36: #{generator_forward.6} parent=27 // pred_fallthru
        _
      %s524 = smul.u32 4, %s20
      %p525 = scmp.lt.s32.totalorder %s19, 3
      %s526 = scalar_select %p525, %s19, 3
      %p527 = scmp.lt.s32.totalorder %s524, 3
      %s528 = scalar_select %p527, %s524, 3
      %p529 = scmp.lt.s32.totalorder %s21, 0
      %s530 = scalar_select %p529, %s21, 0
      %s531 = sadd.s32 %s530, %s528
      %s532 = smul.addr %s526, 4
      %s533 = sadd.s32 %s531, %s532
      %s534 = smul.addr %s533, 4
      %s535 = scalar_lea.vmem %s2, %s534
      // Predicated region
      $region37: #{generator_forward.6} parent=27 // pred_check
        %p536 = pneg %p121
      $region38: #{generator_forward.6} parent=27 // pred_check_branch
        %538 = sbr.rel (%p536) target = $region40
      $region39: #{generator_forward.6} parent=27 // pred_region
        %s539 = smul.u32 4, %s20
      $region40: #{generator_forward.6} parent=27 // pred_fallthru
        _
    $region28: #{generator_forward.6} parent=5 // pred_fallthru
      _
    %p540 = scmp.le.s32.totalorder 2, %s8
    // Predicated region
    $region41: #{generator_forward.6} parent=5 // pred_check
      %p541 = pneg %p540
    $region42: #{generator_forward.6} parent=5 // pred_check_branch
      %543 = sbr.rel (%p541) target = $region44
    $region43: #{generator_forward.6} parent=5 // pred_region
      %s544 = ssub.s32 %s8, 2
      // Predicated region
      $region45: #{generator_forward.6} parent=43 // pred_check
        %p545 = pneg %p127
      $region46: #{generator_forward.6} parent=43 // pred_check_branch
        %547 = sbr.rel (%p545) target = $region48
      $region47: #{generator_forward.6} parent=43 // pred_region
        %s548 = smul.u32 4, %s24
        %p549 = scmp.lt.s32.totalorder %s23, 3
        %s550 = scalar_select %p549, %s23, 3
        %p551 = scmp.lt.s32.totalorder %s548, 3
        %s552 = scalar_select %p551, %s548, 3
        %p553 = scmp.lt.s32.totalorder %s25, 0
        %s554 = scalar_select %p553, %s25, 0
        %s555 = sadd.s32 %s554, %s552
        %s556 = smul.addr %s550, 4
        %s557 = sadd.s32 %s555, %s556
        %s558 = smul.addr %s557, 4
        %s559 = scalar_lea.vmem %s2, %s558
      $region48: #{generator_forward.6} parent=43 // pred_fallthru
        _
    $region44: #{generator_forward.6} parent=5 // pred_fallthru
      _
  $region6: #{generator_forward.6} parent=0 // loop_footer
    %s12 = sadd.s32 1, %s8
  $region7: #{generator_forward.6} parent=0 // loop_footer_branch
    %7 = sbr.rel target = $region3
  $region8: #{generator_forward.6} parent=0 // loop_exit
    _

// kernel: generator_forward.7
$region0: #{generator_forward.7}
  #allocation0 [shape = 'u32[]', space=smem, size = 0x4, offset = 0x4, fixed_abs, tag = 'smem constant byte address 0x4 - core index']
  #allocation1 [shape = 'u32[144,128]{1,0:T(1,128)}', space=vmem, size = 0x12000, scoped, tag = 'internal scratch']
  #allocation2 [shape = 'f32[128,128]{1,0:T(8,128)}', space=vmem, size = 0x10000, scoped, tag = 'scratch operand']
  %s0 = inlined_call_operand.vmem [shape: bf16[4,128,128], index: 0, kind: input, shape index: {}]
  %s1 = inlined_call_operand.vmem [shape: bf16[4,128,128], index: 1, kind: input, shape index: {}]
  %s2 = inlined_call_operand.vmem [shape: bf16[4,128,128], index: 2, kind: output, shape index: {}]
  %s3 = sld [smem:[#allocation0]]
  $region49: #{generator_forward.7} parent=0
    _
  %s5 = ssub.s32 1, %s3
  %s6 = scalar_select 0, %s5, %s3
  loop: start=0, step=1, limit=6
  $region2: #{generator_forward.7} parent=0 // loop_pre_header
    _
  $region3: #{generator_forward.7} parent=0 // loop_header
    %s8 = sphi 0, %s12
    %p9 = scmp.ge.s32.totalorder %s8, 6
    %s15 = sphi 0, %s41
    %s16 = sphi 0, %s37
    %s17 = sphi 0, %s33
    %s18 = sphi 0, %s29
    %s19 = sphi 0, %s15
    %s20 = sphi 0, %s16
    %s21 = sphi 0, %s17
    %s22 = sphi 0, %s18
    %s23 = sphi 0, %s19
    %s24 = sphi 0, %s20
    %s25 = sphi 0, %s21
    %s26 = sphi 0, %s22
    %s48 = sphi 0, %s50
    %s51 = sphi 0, %s48
    %s52 = sphi 0, %s51
    %s68 = sphi 0, %s52
    %s78 = sphi 0, %s80
    %s81 = sphi 0, %s78
    %s82 = sphi 0, %s81
    %s98 = sphi 0, %s82
    %s108 = sphi 0, %s110
    %s111 = sphi 0, %s108
    %s112 = sphi 0, %s111
    %s128 = sphi 0, %s112
  $region4: #{generator_forward.7} parent=0 // loop_header_branch
    %11 = sbr.rel (%p9) target = $region8
  $region5: #{generator_forward.7} parent=0 // loop_body
    %s13 = ssub.s32 %s8, 1
    %s14 = ssub.s32 %s8, 2
    %s27 = sadd.s32 1, %s18
    %p28 = scmp.ge.s32.totalorder %s27, 1
    %s29 = scalar_select %p28, 0, %s27
    %s30 = sadd.s32 1, %s17
    %s31 = scalar_select %p28, %s30, %s17
    %p32 = scmp.ge.s32.totalorder %s31, 1
    %s33 = scalar_select %p32, 0, %s31
    %s34 = sadd.s32 1, %s16
    %s35 = scalar_select %p32, %s34, %s16
    %p36 = scmp.ge.s32.totalorder %s35, 1
    %s37 = scalar_select %p36, 0, %s35
    %s38 = sadd.s32 1, %s15
    %s39 = scalar_select %p36, %s38, %s15
    %p40 = scmp.ge.s32.totalorder %s39, 4
    %s41 = scalar_select %p40, 0, %s39
    %s42 = ssub.s32 %s15, %s41
    %s43 = ssub.s32 %s16, %s37
    %s44 = sor.u32 %s42, %s43
    %s45 = ssub.s32 %s18, %s29
    %s46 = sor.u32 %s44, %s45
    %p47 = scmp.eq.s32.totalorder %s46, 0
    %s49 = sadd.s32 %s48, 1
    %s50 = scalar_select %p47, %s48, %s49
    %p53 = pneg %p47
    %p54 = scmp.eq.s32.totalorder %s8, 3
    %p55 = por %p53, %p54
    %p56 = scmp.ne.s32.totalorder %s48, %s51
    %p57 = scmp.eq.s32.totalorder %s8, 0
    %p58 = por %p56, %p57
    %p59 = scmp.ne.s32.totalorder %s48, %s51
    %p60 = scmp.eq.s32.totalorder %s13, 3
    %p61 = por %p59, %p60
    %p62 = scmp.ne.s32.totalorder %s51, %s52
    %p63 = scmp.eq.s32.totalorder %s13, 0
    %p64 = por %p62, %p63
    %p65 = scmp.ne.s32.totalorder %s51, %s52
    %p66 = scmp.eq.s32.totalorder %s14, 3
    %p67 = por %p65, %p66
    %p69 = scmp.ne.s32.totalorder %s52, %s68
    %p70 = scmp.eq.s32.totalorder %s14, 0
    %p71 = por %p69, %p70
    %s72 = ssub.s32 %s15, %s41
    %s73 = ssub.s32 %s18, %s29
    %s74 = sor.u32 %s72, %s73
    %s75 = ssub.s32 %s17, %s33
    %s76 = sor.u32 %s74, %s75
    %p77 = scmp.eq.s32.totalorder %s76, 0
    %s79 = sadd.s32 %s78, 1
    %s80 = scalar_select %p77, %s78, %s79
    %p83 = pneg %p77
    %p84 = scmp.eq.s32.totalorder %s8, 3
    %p85 = por %p83, %p84
    %p86 = scmp.ne.s32.totalorder %s78, %s81
    %p87 = scmp.eq.s32.totalorder %s8, 0
    %p88 = por %p86, %p87
    %p89 = scmp.ne.s32.totalorder %s78, %s81
    %p90 = scmp.eq.s32.totalorder %s13, 3
    %p91 = por %p89, %p90
    %p92 = scmp.ne.s32.totalorder %s81, %s82
    %p93 = scmp.eq.s32.totalorder %s13, 0
    %p94 = por %p92, %p93
    %p95 = scmp.ne.s32.totalorder %s81, %s82
    %p96 = scmp.eq.s32.totalorder %s14, 3
    %p97 = por %p95, %p96
    %p99 = scmp.ne.s32.totalorder %s82, %s98
    %p100 = scmp.eq.s32.totalorder %s14, 0
    %p101 = por %p99, %p100
    %s102 = ssub.s32 %s15, %s41
    %s103 = ssub.s32 %s16, %s37
    %s104 = sor.u32 %s102, %s103
    %s105 = ssub.s32 %s17, %s33
    %s106 = sor.u32 %s104, %s105
    %p107 = scmp.eq.s32.totalorder %s106, 0
    %s109 = sadd.s32 %s108, 1
    %s110 = scalar_select %p107, %s108, %s109
    %p113 = pneg %p107
    %p114 = scmp.eq.s32.totalorder %s8, 3
    %p115 = por %p113, %p114
    %p116 = scmp.ne.s32.totalorder %s108, %s111
    %p117 = scmp.eq.s32.totalorder %s8, 0
    %p118 = por %p116, %p117
    %p119 = scmp.ne.s32.totalorder %s108, %s111
    %p120 = scmp.eq.s32.totalorder %s13, 3
    %p121 = por %p119, %p120
    %p122 = scmp.ne.s32.totalorder %s111, %s112
    %p123 = scmp.eq.s32.totalorder %s13, 0
    %p124 = por %p122, %p123
    %p125 = scmp.ne.s32.totalorder %s111, %s112
    %p126 = scmp.eq.s32.totalorder %s14, 3
    %p127 = por %p125, %p126
    %p129 = scmp.ne.s32.totalorder %s112, %s128
    %p130 = scmp.eq.s32.totalorder %s14, 0
    %p131 = por %p129, %p130
    %p132 = scmp.le.s32.totalorder 1, %s8
    %p133 = scmp.lt.s32.totalorder %s8, 5
    %p134 = pnand %p132, %p133
    %p135 = pneg %p134
    // Predicated region
    $region9: #{generator_forward.7} parent=5 // pred_check
      _
    $region10: #{generator_forward.7} parent=5 // pred_check_branch
      %137 = sbr.rel (%p134) target = $region12
    $region11: #{generator_forward.7} parent=5 // pred_region
      %s138 = ssub.s32 %s8, 1
    $region12: #{generator_forward.7} parent=5 // pred_fallthru
      _
    %p139 = scmp.lt.s32.totalorder %s8, 4
    // Predicated region
    $region13: #{generator_forward.7} parent=5 // pred_check
      %p140 = pneg %p139
    $region14: #{generator_forward.7} parent=5 // pred_check_branch
      %142 = sbr.rel (%p140) target = $region16
    $region15: #{generator_forward.7} parent=5 // pred_region
      // Predicated region
      $region17: #{generator_forward.7} parent=15 // pred_check
        %p143 = pneg %p58
      $region18: #{generator_forward.7} parent=15 // pred_check_branch
        %145 = sbr.rel (%p143) target = $region20
      $region19: #{generator_forward.7} parent=15 // pred_region
        %s146 = smul.u32 16, %s16
        %p147 = scmp.lt.s32.totalorder %s15, 3
        %s148 = scalar_select %p147, %s15, 3
        %p149 = scmp.lt.s32.totalorder %s146, 15
        %s150 = scalar_select %p149, %s146, 15
        %p151 = scmp.lt.s32.totalorder %s18, 0
        %s152 = scalar_select %p151, %s18, 0
        %s153 = sadd.s32 %s152, %s150
        %s154 = smul.addr %s148, 16
        %s155 = sadd.s32 %s153, %s154
        %s156 = smul.addr %s155, 4
        %s157 = scalar_lea.vmem %s0, %s156
        %s158 = smul.u32 16, %s16
      $region20: #{generator_forward.7} parent=15 // pred_fallthru
        _
      // Predicated region
      $region21: #{generator_forward.7} parent=15 // pred_check
        %p159 = pneg %p88
      $region22: #{generator_forward.7} parent=15 // pred_check_branch
        %161 = sbr.rel (%p159) target = $region24
      $region23: #{generator_forward.7} parent=15 // pred_region
        %s162 = smul.u32 16, %s18
        %p163 = scmp.lt.s32.totalorder %s15, 3
        %s164 = scalar_select %p163, %s15, 3
        %p165 = scmp.lt.s32.totalorder %s162, 15
        %s166 = scalar_select %p165, %s162, 15
        %p167 = scmp.lt.s32.totalorder %s17, 0
        %s168 = scalar_select %p167, %s17, 0
        %s169 = sadd.s32 %s168, %s166
        %s170 = smul.addr %s164, 16
        %s171 = sadd.s32 %s169, %s170
        %s172 = smul.addr %s171, 4
        %s173 = scalar_lea.vmem %s1, %s172
        %s174 = smul.u32 16, %s18
      $region24: #{generator_forward.7} parent=15 // pred_fallthru
        _
    $region16: #{generator_forward.7} parent=5 // pred_fallthru
      _
    %p175 = scmp.le.s32.totalorder 1, %s8
    %p176 = scmp.lt.s32.totalorder %s8, 5
    %p177 = pnand %p175, %p176
    %p178 = pneg %p177
    // Predicated region
    $region25: #{generator_forward.7} parent=5 // pred_check
      _
    $region26: #{generator_forward.7} parent=5 // pred_check_branch
      %180 = sbr.rel (%p177) target = $region28
    $region27: #{generator_forward.7} parent=5 // pred_region
      %s181 = ssub.s32 %s8, 1
      %s182 = smul.u32 16, %s20
      %p183 = scmp.lt.s32.totalorder %s19, 3
      %s184 = scalar_select %p183, %s19, 3
      %p185 = scmp.lt.s32.totalorder %s182, 15
      %s186 = scalar_select %p185, %s182, 15
      %p187 = scmp.lt.s32.totalorder %s22, 0
      %s188 = scalar_select %p187, %s22, 0
      %s189 = sadd.s32 %s188, %s186
      %s190 = smul.addr %s184, 16
      %s191 = sadd.s32 %s189, %s190
      %s192 = smul.addr %s191, 4
      %s193 = scalar_lea.vmem %s0, %s192
      %p194 = pneg %p64
      %p195 = pneg %p61
      %s196 = smul.u32 16, %s22
      %p197 = scmp.lt.s32.totalorder %s19, 3
      %s198 = scalar_select %p197, %s19, 3
      %p199 = scmp.lt.s32.totalorder %s196, 15
      %s200 = scalar_select %p199, %s196, 15
      %p201 = scmp.lt.s32.totalorder %s21, 0
      %s202 = scalar_select %p201, %s21, 0
      %s203 = sadd.s32 %s202, %s200
      %s204 = smul.addr %s198, 16
      %s205 = sadd.s32 %s203, %s204
      %s206 = smul.addr %s205, 4
      %s207 = scalar_lea.vmem %s1, %s206
      %p208 = pneg %p94
      %p209 = pneg %p91
      %p210 = pneg %p124
      %p211 = pneg %p121
      %s212 = smul.u32 16, %s20
      %p213 = scmp.lt.s32.totalorder %s19, 3
      %s214 = scalar_select %p213, %s19, 3
      %p215 = scmp.lt.s32.totalorder %s212, 15
      %s216 = scalar_select %p215, %s212, 15
      %p217 = scmp.lt.s32.totalorder %s21, 0
      %s218 = scalar_select %p217, %s21, 0
      %s219 = sadd.s32 %s218, %s216
      %s220 = smul.addr %s214, 16
      %s221 = sadd.s32 %s219, %s220
      %s222 = smul.addr %s221, 4
      %s223 = scalar_lea.vmem %s2, %s222
      %s224 = smul.u32 16, %s20
      %p225 = scmp.lt.s32.totalorder %s19, 3
      %s226 = scalar_select %p225, %s19, 3
      %p227 = scmp.lt.s32.totalorder %s224, 15
      %s228 = scalar_select %p227, %s224, 15
      %p229 = scmp.lt.s32.totalorder %s22, 0
      %s230 = scalar_select %p229, %s22, 0
      %s231 = sadd.s32 %s230, %s228
      %s232 = smul.addr %s226, 16
      %s233 = sadd.s32 %s231, %s232
      %s234 = smul.addr %s233, 4
      %s235 = scalar_lea.vmem %s0, %s234
      %s236 = smul.u32 16, %s20
      %s237 = smul.u32 16, %s22
      %p238 = scmp.lt.s32.totalorder %s19, 3
      %s239 = scalar_select %p238, %s19, 3
      %p240 = scmp.lt.s32.totalorder %s237, 15
      %s241 = scalar_select %p240, %s237, 15
      %p242 = scmp.lt.s32.totalorder %s21, 0
      %s243 = scalar_select %p242, %s21, 0
      %s244 = sadd.s32 %s243, %s241
      %s245 = smul.addr %s239, 16
      %s246 = sadd.s32 %s244, %s245
      %s247 = smul.addr %s246, 4
      %s248 = scalar_lea.vmem %s1, %s247
      %s249 = smul.u32 16, %s22
      %s250 = smul.u32 16, %s20
      %p251 = scmp.lt.s32.totalorder %s19, 3
      %s252 = scalar_select %p251, %s19, 3
      %p253 = scmp.lt.s32.totalorder %s250, 15
      %s254 = scalar_select %p253, %s250, 15
      %p255 = scmp.lt.s32.totalorder %s21, 0
      %s256 = scalar_select %p255, %s21, 0
      %s257 = sadd.s32 %s256, %s254
      %s258 = smul.addr %s252, 16
      %s259 = sadd.s32 %s257, %s258
      %s260 = smul.addr %s259, 4
      %s261 = scalar_lea.vmem %s2, %s260
      %s262 = smul.u32 16, %s20
      %p264 = scmp.eq.s32.totalorder %s22, 0
      // Predicated region
      $region29: #{generator_forward.7} parent=27 // pred_check
        %p265 = pneg %p264
      $region30: #{generator_forward.7} parent=27 // pred_check_branch
        %267 = sbr.rel (%p265) target = $region32
      $region31: #{generator_forward.7} parent=27 // pred_region
        %268 = vst [vmem:[#allocation2] sm:$0xff] 0.0
        %269 = vst [vmem:[#allocation2 + $0x8] sm:$0xff] 0.0
        %270 = vst [vmem:[#allocation2 + $0x10] sm:$0xff] 0.0
        %271 = vst [vmem:[#allocation2 + $0x18] sm:$0xff] 0.0
        %272 = vst [vmem:[#allocation2 + $0x20] sm:$0xff] 0.0
        %273 = vst [vmem:[#allocation2 + $0x28] sm:$0xff] 0.0
        %274 = vst [vmem:[#allocation2 + $0x30] sm:$0xff] 0.0
        %275 = vst [vmem:[#allocation2 + $0x38] sm:$0xff] 0.0
        %276 = vst [vmem:[#allocation2 + $0x40] sm:$0xff] 0.0
        %277 = vst [vmem:[#allocation2 + $0x48] sm:$0xff] 0.0
        %278 = vst [vmem:[#allocation2 + $0x50] sm:$0xff] 0.0
        %279 = vst [vmem:[#allocation2 + $0x58] sm:$0xff] 0.0
        %280 = vst [vmem:[#allocation2 + $0x60] sm:$0xff] 0.0
        %281 = vst [vmem:[#allocation2 + $0x68] sm:$0xff] 0.0
        %282 = vst [vmem:[#allocation2 + $0x70] sm:$0xff] 0.0
        %283 = vst [vmem:[#allocation2 + $0x78] sm:$0xff] 0.0
      $region32: #{generator_forward.7} parent=27 // pred_fallthru
        _
      %v284 = vld [vmem:[#allocation2] sm:$0xff]
      %v285 = vld [vmem:[#allocation2 + $0x8] sm:$0xff]
      %v286 = vld [vmem:[#allocation2 + $0x10] sm:$0xff]
      %v287 = vld [vmem:[#allocation2 + $0x18] sm:$0xff]
      %v288 = vld [vmem:[#allocation2 + $0x20] sm:$0xff]
      %v289 = vld [vmem:[#allocation2 + $0x28] sm:$0xff]
      %v290 = vld [vmem:[#allocation2 + $0x30] sm:$0xff]
      %v291 = vld [vmem:[#allocation2 + $0x38] sm:$0xff]
      %v292 = vld [vmem:[#allocation2 + $0x40] sm:$0xff]
      %v293 = vld [vmem:[#allocation2 + $0x48] sm:$0xff]
      %v294 = vld [vmem:[#allocation2 + $0x50] sm:$0xff]
      %v295 = vld [vmem:[#allocation2 + $0x58] sm:$0xff]
      %v296 = vld [vmem:[#allocation2 + $0x60] sm:$0xff]
      %v297 = vld [vmem:[#allocation2 + $0x68] sm:$0xff]
      %v298 = vld [vmem:[#allocation2 + $0x70] sm:$0xff]
      %v299 = vld [vmem:[#allocation2 + $0x78] sm:$0xff]
      %v300 = vld [vmem:[%s235] sm:$0xf]
      %v301 = vld [vmem:[%s235 + $0x4] sm:$0xf]
      %v302 = vld [vmem:[%s235 + $0x8] sm:$0xf]
      %v303 = vld [vmem:[%s235 + $0xc] sm:$0xf]
      %v304 = vld [vmem:[%s235 + $0x10] sm:$0xf]
      %v305 = vld [vmem:[%s235 + $0x14] sm:$0xf]
      %v306 = vld [vmem:[%s235 + $0x18] sm:$0xf]
      %v307 = vld [vmem:[%s235 + $0x1c] sm:$0xf]
      %v308 = vld [vmem:[%s235 + $0x20] sm:$0xf]
      %v309 = vld [vmem:[%s235 + $0x24] sm:$0xf]
      %v310 = vld [vmem:[%s235 + $0x28] sm:$0xf]
      %v311 = vld [vmem:[%s235 + $0x2c] sm:$0xf]
      %v312 = vld [vmem:[%s235 + $0x30] sm:$0xf]
      %v313 = vld [vmem:[%s235 + $0x34] sm:$0xf]
      %v314 = vld [vmem:[%s235 + $0x38] sm:$0xf]
      %v315 = vld [vmem:[%s235 + $0x3c] sm:$0xf]
      %v316 = vld [vmem:[%s248] sm:$0xf]
      %v317 = vld [vmem:[%s248 + $0x4] sm:$0xf]
      %v318 = vld [vmem:[%s248 + $0x8] sm:$0xf]
      %v319 = vld [vmem:[%s248 + $0xc] sm:$0xf]
      %v320 = vld [vmem:[%s248 + $0x10] sm:$0xf]
      %v321 = vld [vmem:[%s248 + $0x14] sm:$0xf]
      %v322 = vld [vmem:[%s248 + $0x18] sm:$0xf]
      %v323 = vld [vmem:[%s248 + $0x1c] sm:$0xf]
      %v324 = vld [vmem:[%s248 + $0x20] sm:$0xf]
      %v325 = vld [vmem:[%s248 + $0x24] sm:$0xf]
      %v326 = vld [vmem:[%s248 + $0x28] sm:$0xf]
      %v327 = vld [vmem:[%s248 + $0x2c] sm:$0xf]
      %v328 = vld [vmem:[%s248 + $0x30] sm:$0xf]
      %v329 = vld [vmem:[%s248 + $0x34] sm:$0xf]
      %v330 = vld [vmem:[%s248 + $0x38] sm:$0xf]
      %v331 = vld [vmem:[%s248 + $0x3c] sm:$0xf]
      %v348 = vunpack.c.l.b16 %v300
      %v349 = vunpack.c.l.b16 %v301
      %v350 = vunpack.c.l.b16 %v302
      %v351 = vunpack.c.l.b16 %v303
      %v352 = vunpack.c.l.b16 %v304
      %v353 = vunpack.c.l.b16 %v305
      %v354 = vunpack.c.l.b16 %v306
      %v355 = vunpack.c.l.b16 %v307
      %v356 = vunpack.c.l.b16 %v308
      %v357 = vunpack.c.l.b16 %v309
      %v358 = vunpack.c.l.b16 %v310
      %v359 = vunpack.c.l.b16 %v311
      %v360 = vunpack.c.l.b16 %v312
      %v361 = vunpack.c.l.b16 %v313
      %v362 = vunpack.c.l.b16 %v314
      %v363 = vunpack.c.l.b16 %v315
      %v364 = vpack.c.b16 %v349, %v348
      %v365 = vpack.c.b16 %v351, %v350
      %v366 = vpack.c.b16 %v353, %v352
      %v367 = vpack.c.b16 %v355, %v354
      %v368 = vpack.c.b16 %v357, %v356
      %v369 = vpack.c.b16 %v359, %v358
      %v370 = vpack.c.b16 %v361, %v360
      %v371 = vpack.c.b16 %v363, %v362
      %v396 = vunpack.c.l.b16 %v316
      %v397 = vunpack.c.l.b16 %v317
      %v398 = vunpack.c.l.b16 %v318
      %v399 = vunpack.c.l.b16 %v319
      %v400 = vunpack.c.l.b16 %v320
      %v401 = vunpack.c.l.b16 %v321
      %v402 = vunpack.c.l.b16 %v322
      %v403 = vunpack.c.l.b16 %v323
      %v404 = vunpack.c.l.b16 %v324
      %v405 = vunpack.c.l.b16 %v325
      %v406 = vunpack.c.l.b16 %v326
      %v407 = vunpack.c.l.b16 %v327
      %v408 = vunpack.c.l.b16 %v328
      %v409 = vunpack.c.l.b16 %v329
      %v410 = vunpack.c.l.b16 %v330
      %v411 = vunpack.c.l.b16 %v331
      %v412 = vpack.c.b16 %v397, %v396
      %v413 = vpack.c.b16 %v399, %v398
      %v414 = vpack.c.b16 %v401, %v400
      %v415 = vpack.c.b16 %v403, %v402
      %v416 = vpack.c.b16 %v405, %v404
      %v417 = vpack.c.b16 %v407, %v406
      %v418 = vpack.c.b16 %v409, %v408
      %v419 = vpack.c.b16 %v411, %v410
      %428 = vmatprep.subr.bf16.mxu0 0
      %429 = vmatpush1.bf16.msra.mxu0 %v412
      %430 = vmatprep.subr.bf16.mxu0 0
      %431 = vmatpush1.bf16.msra.mxu0 %v413
      %432 = vmatprep.subr.bf16.mxu0 0
      %433 = vmatpush1.bf16.msra.mxu0 %v414
      %434 = vmatprep.subr.bf16.mxu0 0
      %435 = vmatpush1.bf16.msra.mxu0 %v415
      %436 = vmatprep.subr.bf16.mxu0 0
      %437 = vmatpush1.bf16.msra.mxu0 %v416
      %438 = vmatprep.subr.bf16.mxu0 0
      %439 = vmatpush1.bf16.msra.mxu0 %v417
      %440 = vmatprep.subr.bf16.mxu0 0
      %441 = vmatpush1.bf16.msra.mxu0 %v418
      %442 = vmatprep.subr.bf16.mxu0 0
      %443 = vmatpush1.bf16.msra.mxu0 %v419
      %444 = vmatprep.subr.bf16.mxu0 0
      %445 = vmatpush1.bf16.msra.mxu0 0
      %446 = vmatprep.subr.bf16.mxu0 0
      %447 = vmatpush1.bf16.msra.mxu0 0
      %448 = vmatprep.subr.bf16.mxu0 0
      %449 = vmatpush1.bf16.msra.mxu0 0
      %450 = vmatprep.subr.bf16.mxu0 0
      %451 = vmatpush1.bf16.msra.mxu0 0
      %452 = vmatprep.subr.bf16.mxu0 0
      %453 = vmatpush1.bf16.msra.mxu0 0
      %454 = vmatprep.subr.bf16.mxu0 0
      %455 = vmatpush1.bf16.msra.mxu0 0
      %456 = vmatprep.subr.bf16.mxu0 0
      %457 = vmatpush1.bf16.msra.mxu0 0
      %458 = vmatprep.subr.bf16.mxu0 0
      %459 = vmatpush1.bf16.msra.mxu0 0
      %460 = vmatprep.mubr.bf16.mxu0 0
      %461 = vmatmul.mubr.bf16.gmra.mrb[0].mxu0 %v364
      %v462 = vpop.f32.mrb[0].mxu0
      %v463 = vadd.f32 0.0, %v462
      %v464 = vpop.f32.mrb[0].mxu0
      %v465 = vpop.f32.mrb[0].mxu0
      %v466 = vadd.f32 0.0, %v465
      %v467 = vpop.f32.mrb[0].mxu0
      %468 = vmatprep.mubr.bf16.mxu0 0
      %469 = vmatmul.mubr.bf16.gmra.mrb[0].mxu0 %v365
      %v470 = vpop.f32.mrb[0].mxu0
      %v471 = vadd.f32 0.0, %v470
      %v472 = vpop.f32.mrb[0].mxu0
      %v473 = vpop.f32.mrb[0].mxu0
      %v474 = vadd.f32 0.0, %v473
      %v475 = vpop.f32.mrb[0].mxu0
      %476 = vmatprep.mubr.bf16.mxu0 0
      %477 = vmatmul.mubr.bf16.gmra.mrb[0].mxu0 %v366
      %v478 = vpop.f32.mrb[0].mxu0
      %v479 = vadd.f32 0.0, %v478
      %v480 = vpop.f32.mrb[0].mxu0
      %v481 = vpop.f32.mrb[0].mxu0
      %v482 = vadd.f32 0.0, %v481
      %v483 = vpop.f32.mrb[0].mxu0
      %484 = vmatprep.mubr.bf16.mxu0 0
      %485 = vmatmul.mubr.bf16.gmra.mrb[0].mxu0 %v367
      %v486 = vpop.f32.mrb[0].mxu0
      %v487 = vadd.f32 0.0, %v486
      %v488 = vpop.f32.mrb[0].mxu0
      %v489 = vpop.f32.mrb[0].mxu0
      %v490 = vadd.f32 0.0, %v489
      %v491 = vpop.f32.mrb[0].mxu0
      %492 = vmatprep.mubr.bf16.mxu0 0
      %493 = vmatmul.mubr.bf16.gmra.mrb[0].mxu0 %v368
      %v494 = vpop.f32.mrb[0].mxu0
      %v495 = vadd.f32 0.0, %v494
      %v496 = vpop.f32.mrb[0].mxu0
      %v497 = vpop.f32.mrb[0].mxu0
      %v498 = vadd.f32 0.0, %v497
      %v499 = vpop.f32.mrb[0].mxu0
      %500 = vmatprep.mubr.bf16.mxu0 0
      %501 = vmatmul.mubr.bf16.gmra.mrb[0].mxu0 %v369
      %v502 = vpop.f32.mrb[0].mxu0
      %v503 = vadd.f32 0.0, %v502
      %v504 = vpop.f32.mrb[0].mxu0
      %v505 = vpop.f32.mrb[0].mxu0
      %v506 = vadd.f32 0.0, %v505
      %v507 = vpop.f32.mrb[0].mxu0
      %508 = vmatprep.mubr.bf16.mxu0 0
      %509 = vmatmul.mubr.bf16.gmra.mrb[0].mxu0 %v370
      %v510 = vpop.f32.mrb[0].mxu0
      %v511 = vadd.f32 0.0, %v510
      %v512 = vpop.f32.mrb[0].mxu0
      %v513 = vpop.f32.mrb[0].mxu0
      %v514 = vadd.f32 0.0, %v513
      %v515 = vpop.f32.mrb[0].mxu0
      %516 = vmatprep.mubr.bf16.mxu0 0
      %517 = vmatmul.mubr.bf16.gmra.mrb[0].mxu0 %v371
      %v518 = vpop.f32.mrb[0].mxu0
      %v519 = vadd.f32 0.0, %v518
      %v520 = vpop.f32.mrb[0].mxu0
      %v521 = vpop.f32.mrb[0].mxu0
      %v522 = vadd.f32 0.0, %v521
      %v523 = vpop.f32.mrb[0].mxu0
      %524 = vdwg.mxu0
      %v525 = vadd.f32 %v284, %v463
      %v526 = vadd.f32 %v285, %v466
      %v527 = vadd.f32 %v286, %v471
      %v528 = vadd.f32 %v287, %v474
      %v529 = vadd.f32 %v288, %v479
      %v530 = vadd.f32 %v289, %v482
      %v531 = vadd.f32 %v290, %v487
      %v532 = vadd.f32 %v291, %v490
      %v533 = vadd.f32 %v292, %v495
      %v534 = vadd.f32 %v293, %v498
      %v535 = vadd.f32 %v294, %v503
      %v536 = vadd.f32 %v295, %v506
      %v537 = vadd.f32 %v296, %v511
      %v538 = vadd.f32 %v297, %v514
      %v539 = vadd.f32 %v298, %v519
      %v540 = vadd.f32 %v299, %v522
      %541 = vst [vmem:[#allocation2] sm:$0xff] %v525
      %542 = vst [vmem:[#allocation2 + $0x8] sm:$0xff] %v526
      %543 = vst [vmem:[#allocation2 + $0x10] sm:$0xff] %v527
      %544 = vst [vmem:[#allocation2 + $0x18] sm:$0xff] %v528
      %545 = vst [vmem:[#allocation2 + $0x20] sm:$0xff] %v529
      %546 = vst [vmem:[#allocation2 + $0x28] sm:$0xff] %v530
      %547 = vst [vmem:[#allocation2 + $0x30] sm:$0xff] %v531
      %548 = vst [vmem:[#allocation2 + $0x38] sm:$0xff] %v532
      %549 = vst [vmem:[#allocation2 + $0x40] sm:$0xff] %v533
      %550 = vst [vmem:[#allocation2 + $0x48] sm:$0xff] %v534
      %551 = vst [vmem:[#allocation2 + $0x50] sm:$0xff] %v535
      %552 = vst [vmem:[#allocation2 + $0x58] sm:$0xff] %v536
      %553 = vst [vmem:[#allocation2 + $0x60] sm:$0xff] %v537
      %554 = vst [vmem:[#allocation2 + $0x68] sm:$0xff] %v538
      %555 = vst [vmem:[#allocation2 + $0x70] sm:$0xff] %v539
      %556 = vst [vmem:[#allocation2 + $0x78] sm:$0xff] %v540
      // Predicated region
      $region33: #{generator_forward.7} parent=27 // pred_check
        %p557 = pneg %p264
      $region34: #{generator_forward.7} parent=27 // pred_check_branch
        %559 = sbr.rel (%p557) target = $region36
      $region35: #{generator_forward.7} parent=27 // pred_region
        %v560 = vld [vmem:[#allocation2] sm:$0xff]
        %v561 = vld [vmem:[#allocation2 + $0x8] sm:$0xff]
        %v562 = vld [vmem:[#allocation2 + $0x10] sm:$0xff]
        %v563 = vld [vmem:[#allocation2 + $0x18] sm:$0xff]
        %v564 = vld [vmem:[#allocation2 + $0x20] sm:$0xff]
        %v565 = vld [vmem:[#allocation2 + $0x28] sm:$0xff]
        %v566 = vld [vmem:[#allocation2 + $0x30] sm:$0xff]
        %v567 = vld [vmem:[#allocation2 + $0x38] sm:$0xff]
        %v568 = vld [vmem:[#allocation2 + $0x40] sm:$0xff]
        %v569 = vld [vmem:[#allocation2 + $0x48] sm:$0xff]
        %v570 = vld [vmem:[#allocation2 + $0x50] sm:$0xff]
        %v571 = vld [vmem:[#allocation2 + $0x58] sm:$0xff]
        %v572 = vld [vmem:[#allocation2 + $0x60] sm:$0xff]
        %v573 = vld [vmem:[#allocation2 + $0x68] sm:$0xff]
        %v574 = vld [vmem:[#allocation2 + $0x70] sm:$0xff]
        %v575 = vld [vmem:[#allocation2 + $0x78] sm:$0xff]
        %v576 = vmax.f32 %v560, 0.0
        %v577 = vmax.f32 %v561, 0.0
        %v578 = vmax.f32 %v562, 0.0
        %v579 = vmax.f32 %v563, 0.0
        %v580 = vmax.f32 %v564, 0.0
        %v581 = vmax.f32 %v565, 0.0
        %v582 = vmax.f32 %v566, 0.0
        %v583 = vmax.f32 %v567, 0.0
        %v584 = vmax.f32 %v568, 0.0
        %v585 = vmax.f32 %v569, 0.0
        %v586 = vmax.f32 %v570, 0.0
        %v587 = vmax.f32 %v571, 0.0
        %v588 = vmax.f32 %v572, 0.0
        %v589 = vmax.f32 %v573, 0.0
        %v590 = vmax.f32 %v574, 0.0
        %v591 = vmax.f32 %v575, 0.0
        %v592 = vpack.c.bf16 %v577, %v576
        %v593 = vpack.c.bf16 %v579, %v578
        %v594 = vpack.c.bf16 %v581, %v580
        %v595 = vpack.c.bf16 %v583, %v582
        %v596 = vpack.c.bf16 %v585, %v584
        %v597 = vpack.c.bf16 %v587, %v586
        %v598 = vpack.c.bf16 %v589, %v588
        %v599 = vpack.c.bf16 %v591, %v590
        %v608 = vunpack.c.l.b16 %v592
        %v609 = vunpack.c.h.b16 %v592
        %v610 = vunpack.c.l.b16 %v593
        %v611 = vunpack.c.h.b16 %v593
        %v612 = vunpack.c.l.b16 %v594
        %v613 = vunpack.c.h.b16 %v594
        %v614 = vunpack.c.l.b16 %v595
        %v615 = vunpack.c.h.b16 %v595
        %v616 = vunpack.c.l.b16 %v596
        %v617 = vunpack.c.h.b16 %v596
        %v618 = vunpack.c.l.b16 %v597
        %v619 = vunpack.c.h.b16 %v597
        %v620 = vunpack.c.l.b16 %v598
        %v621 = vunpack.c.h.b16 %v598
        %v622 = vunpack.c.l.b16 %v599
        %v623 = vunpack.c.h.b16 %v599
        %v624 = vpack.c.b16 %v608, %v608
        %v625 = vpack.c.b16 %v609, %v609
        %v626 = vpack.c.b16 %v610, %v610
        %v627 = vpack.c.b16 %v611, %v611
        %v628 = vpack.c.b16 %v612, %v612
        %v629 = vpack.c.b16 %v613, %v613
        %v630 = vpack.c.b16 %v614, %v614
        %v631 = vpack.c.b16 %v615, %v615
        %v632 = vpack.c.b16 %v616, %v616
        %v633 = vpack.c.b16 %v617, %v617
        %v634 = vpack.c.b16 %v618, %v618
        %v635 = vpack.c.b16 %v619, %v619
        %v636 = vpack.c.b16 %v620, %v620
        %v637 = vpack.c.b16 %v621, %v621
        %v638 = vpack.c.b16 %v622, %v622
        %v639 = vpack.c.b16 %v623, %v623
        %656 = vst [vmem:[%s261] sm:$0xf] %v624
        %657 = vst [vmem:[%s261 + $0x4] sm:$0xf] %v625
        %658 = vst [vmem:[%s261 + $0x8] sm:$0xf] %v626
        %659 = vst [vmem:[%s261 + $0xc] sm:$0xf] %v627
        %660 = vst [vmem:[%s261 + $0x10] sm:$0xf] %v628
        %661 = vst [vmem:[%s261 + $0x14] sm:$0xf] %v629
        %662 = vst [vmem:[%s261 + $0x18] sm:$0xf] %v630
        %663 = vst [vmem:[%s261 + $0x1c] sm:$0xf] %v631
        %664 = vst [vmem:[%s261 + $0x20] sm:$0xf] %v632
        %665 = vst [vmem:[%s261 + $0x24] sm:$0xf] %v633
        %666 = vst [vmem:[%s261 + $0x28] sm:$0xf] %v634
        %667 = vst [vmem:[%s261 + $0x2c] sm:$0xf] %v635
        %668 = vst [vmem:[%s261 + $0x30] sm:$0xf] %v636
        %669 = vst [vmem:[%s261 + $0x34] sm:$0xf] %v637
        %670 = vst [vmem:[%s261 + $0x38] sm:$0xf] %v638
        %671 = vst [vmem:[%s261 + $0x3c] sm:$0xf] %v639
      $region36: #{generator_forward.7} parent=27 // pred_fallthru
        _
      %s672 = smul.u32 16, %s20
      %p673 = scmp.lt.s32.totalorder %s19, 3
      %s674 = scalar_select %p673, %s19, 3
      %p675 = scmp.lt.s32.totalorder %s672, 15
      %s676 = scalar_select %p675, %s672, 15
      %p677 = scmp.lt.s32.totalorder %s21, 0
      %s678 = scalar_select %p677, %s21, 0
      %s679 = sadd.s32 %s678, %s676
      %s680 = smul.addr %s674, 16
      %s681 = sadd.s32 %s679, %s680
      %s682 = smul.addr %s681, 4
      %s683 = scalar_lea.vmem %s2, %s682
      // Predicated region
      $region37: #{generator_forward.7} parent=27 // pred_check
        %p684 = pneg %p121
      $region38: #{generator_forward.7} parent=27 // pred_check_branch
        %686 = sbr.rel (%p684) target = $region40
      $region39: #{generator_forward.7} parent=27 // pred_region
        %s687 = smul.u32 16, %s20
      $region40: #{generator_forward.7} parent=27 // pred_fallthru
        _
    $region28: #{generator_forward.7} parent=5 // pred_fallthru
      _
    %p688 = scmp.le.s32.totalorder 2, %s8
    // Predicated region
    $region41: #{generator_forward.7} parent=5 // pred_check
      %p689 = pneg %p688
    $region42: #{generator_forward.7} parent=5 // pred_check_branch
      %691 = sbr.rel (%p689) target = $region44
    $region43: #{generator_forward.7} parent=5 // pred_region
      %s692 = ssub.s32 %s8, 2
      // Predicated region
      $region45: #{generator_forward.7} parent=43 // pred_check
        %p693 = pneg %p127
      $region46: #{generator_forward.7} parent=43 // pred_check_branch
        %695 = sbr.rel (%p693) target = $region48
      $region47: #{generator_forward.7} parent=43 // pred_region
        %s696 = smul.u32 16, %s24
        %p697 = scmp.lt.s32.totalorder %s23, 3
        %s698 = scalar_select %p697, %s23, 3
        %p699 = scmp.lt.s32.totalorder %s696, 15
        %s700 = scalar_select %p699, %s696, 15
        %p701 = scmp.lt.s32.totalorder %s25, 0
        %s702 = scalar_select %p701, %s25, 0
        %s703 = sadd.s32 %s702, %s700
        %s704 = smul.addr %s698, 16
        %s705 = sadd.s32 %s703, %s704
        %s706 = smul.addr %s705, 4
        %s707 = scalar_lea.vmem %s2, %s706
      $region48: #{generator_forward.7} parent=43 // pred_fallthru
        _
    $region44: #{generator_forward.7} parent=5 // pred_fallthru
      _
  $region6: #{generator_forward.7} parent=0 // loop_footer
    %s12 = sadd.s32 1, %s8
  $region7: #{generator_forward.7} parent=0 // loop_footer_branch
    %7 = sbr.rel target = $region3
  $region8: #{generator_forward.7} parent=0 // loop_exit
    _

// kernel: generator_forward.8
$region0: #{generator_forward.8}
  #allocation0 [shape = 'u32[]', space=smem, size = 0x4, offset = 0x4, fixed_abs, tag = 'smem constant byte address 0x4 - core index']
  #allocation1 [shape = 'u32[144,128]{1,0:T(1,128)}', space=vmem, size = 0x12000, scoped, tag = 'internal scratch']
  #allocation2 [shape = 'f32[512,128]{1,0:T(8,128)}', space=vmem, size = 0x40000, scoped, tag = 'scratch operand']
  %s0 = inlined_call_operand.vmem [shape: bf16[4,512,64], index: 0, kind: input, shape index: {}]
  %s1 = inlined_call_operand.vmem [shape: bf16[4,64,128], index: 1, kind: input, shape index: {}]
  %s2 = inlined_call_operand.vmem [shape: bf16[4,512,128], index: 2, kind: output, shape index: {}]
  %s3 = sld [smem:[#allocation0]]
  $region49: #{generator_forward.8} parent=0
    _
  %s5 = ssub.s32 1, %s3
  %s6 = scalar_select 0, %s5, %s3
  loop: start=0, step=1, limit=6
  $region2: #{generator_forward.8} parent=0 // loop_pre_header
    _
  $region3: #{generator_forward.8} parent=0 // loop_header
    %s8 = sphi 0, %s12
    %p9 = scmp.ge.s32.totalorder %s8, 6
    %s15 = sphi 0, %s41
    %s16 = sphi 0, %s37
    %s17 = sphi 0, %s33
    %s18 = sphi 0, %s29
    %s19 = sphi 0, %s15
    %s20 = sphi 0, %s16
    %s21 = sphi 0, %s17
    %s22 = sphi 0, %s18
    %s23 = sphi 0, %s19
    %s24 = sphi 0, %s20
    %s25 = sphi 0, %s21
    %s26 = sphi 0, %s22
    %s48 = sphi 0, %s50
    %s51 = sphi 0, %s48
    %s52 = sphi 0, %s51
    %s68 = sphi 0, %s52
    %s78 = sphi 0, %s80
    %s81 = sphi 0, %s78
    %s82 = sphi 0, %s81
    %s98 = sphi 0, %s82
    %s108 = sphi 0, %s110
    %s111 = sphi 0, %s108
    %s112 = sphi 0, %s111
    %s128 = sphi 0, %s112
  $region4: #{generator_forward.8} parent=0 // loop_header_branch
    %11 = sbr.rel (%p9) target = $region8
  $region5: #{generator_forward.8} parent=0 // loop_body
    %s13 = ssub.s32 %s8, 1
    %s14 = ssub.s32 %s8, 2
    %s27 = sadd.s32 1, %s18
    %p28 = scmp.ge.s32.totalorder %s27, 1
    %s29 = scalar_select %p28, 0, %s27
    %s30 = sadd.s32 1, %s17
    %s31 = scalar_select %p28, %s30, %s17
    %p32 = scmp.ge.s32.totalorder %s31, 1
    %s33 = scalar_select %p32, 0, %s31
    %s34 = sadd.s32 1, %s16
    %s35 = scalar_select %p32, %s34, %s16
    %p36 = scmp.ge.s32.totalorder %s35, 1
    %s37 = scalar_select %p36, 0, %s35
    %s38 = sadd.s32 1, %s15
    %s39 = scalar_select %p36, %s38, %s15
    %p40 = scmp.ge.s32.totalorder %s39, 4
    %s41 = scalar_select %p40, 0, %s39
    %s42 = ssub.s32 %s15, %s41
    %s43 = ssub.s32 %s16, %s37
    %s44 = sor.u32 %s42, %s43
    %s45 = ssub.s32 %s18, %s29
    %s46 = sor.u32 %s44, %s45
    %p47 = scmp.eq.s32.totalorder %s46, 0
    %s49 = sadd.s32 %s48, 1
    %s50 = scalar_select %p47, %s48, %s49
    %p53 = pneg %p47
    %p54 = scmp.eq.s32.totalorder %s8, 3
    %p55 = por %p53, %p54
    %p56 = scmp.ne.s32.totalorder %s48, %s51
    %p57 = scmp.eq.s32.totalorder %s8, 0
    %p58 = por %p56, %p57
    %p59 = scmp.ne.s32.totalorder %s48, %s51
    %p60 = scmp.eq.s32.totalorder %s13, 3
    %p61 = por %p59, %p60
    %p62 = scmp.ne.s32.totalorder %s51, %s52
    %p63 = scmp.eq.s32.totalorder %s13, 0
    %p64 = por %p62, %p63
    %p65 = scmp.ne.s32.totalorder %s51, %s52
    %p66 = scmp.eq.s32.totalorder %s14, 3
    %p67 = por %p65, %p66
    %p69 = scmp.ne.s32.totalorder %s52, %s68
    %p70 = scmp.eq.s32.totalorder %s14, 0
    %p71 = por %p69, %p70
    %s72 = ssub.s32 %s15, %s41
    %s73 = ssub.s32 %s18, %s29
    %s74 = sor.u32 %s72, %s73
    %s75 = ssub.s32 %s17, %s33
    %s76 = sor.u32 %s74, %s75
    %p77 = scmp.eq.s32.totalorder %s76, 0
    %s79 = sadd.s32 %s78, 1
    %s80 = scalar_select %p77, %s78, %s79
    %p83 = pneg %p77
    %p84 = scmp.eq.s32.totalorder %s8, 3
    %p85 = por %p83, %p84
    %p86 = scmp.ne.s32.totalorder %s78, %s81
    %p87 = scmp.eq.s32.totalorder %s8, 0
    %p88 = por %p86, %p87
    %p89 = scmp.ne.s32.totalorder %s78, %s81
    %p90 = scmp.eq.s32.totalorder %s13, 3
    %p91 = por %p89, %p90
    %p92 = scmp.ne.s32.totalorder %s81, %s82
    %p93 = scmp.eq.s32.totalorder %s13, 0
    %p94 = por %p92, %p93
    %p95 = scmp.ne.s32.totalorder %s81, %s82
    %p96 = scmp.eq.s32.totalorder %s14, 3
    %p97 = por %p95, %p96
    %p99 = scmp.ne.s32.totalorder %s82, %s98
    %p100 = scmp.eq.s32.totalorder %s14, 0
    %p101 = por %p99, %p100
    %s102 = ssub.s32 %s15, %s41
    %s103 = ssub.s32 %s16, %s37
    %s104 = sor.u32 %s102, %s103
    %s105 = ssub.s32 %s17, %s33
    %s106 = sor.u32 %s104, %s105
    %p107 = scmp.eq.s32.totalorder %s106, 0
    %s109 = sadd.s32 %s108, 1
    %s110 = scalar_select %p107, %s108, %s109
    %p113 = pneg %p107
    %p114 = scmp.eq.s32.totalorder %s8, 3
    %p115 = por %p113, %p114
    %p116 = scmp.ne.s32.totalorder %s108, %s111
    %p117 = scmp.eq.s32.totalorder %s8, 0
    %p118 = por %p116, %p117
    %p119 = scmp.ne.s32.totalorder %s108, %s111
    %p120 = scmp.eq.s32.totalorder %s13, 3
    %p121 = por %p119, %p120
    %p122 = scmp.ne.s32.totalorder %s111, %s112
    %p123 = scmp.eq.s32.totalorder %s13, 0
    %p124 = por %p122, %p123
    %p125 = scmp.ne.s32.totalorder %s111, %s112
    %p126 = scmp.eq.s32.totalorder %s14, 3
    %p127 = por %p125, %p126
    %p129 = scmp.ne.s32.totalorder %s112, %s128
    %p130 = scmp.eq.s32.totalorder %s14, 0
    %p131 = por %p129, %p130
    %p132 = scmp.le.s32.totalorder 1, %s8
    %p133 = scmp.lt.s32.totalorder %s8, 5
    %p134 = pnand %p132, %p133
    %p135 = pneg %p134
    // Predicated region
    $region9: #{generator_forward.8} parent=5 // pred_check
      _
    $region10: #{generator_forward.8} parent=5 // pred_check_branch
      %137 = sbr.rel (%p134) target = $region12
    $region11: #{generator_forward.8} parent=5 // pred_region
      %s138 = ssub.s32 %s8, 1
    $region12: #{generator_forward.8} parent=5 // pred_fallthru
      _
    %p139 = scmp.lt.s32.totalorder %s8, 4
    // Predicated region
    $region13: #{generator_forward.8} parent=5 // pred_check
      %p140 = pneg %p139
    $region14: #{generator_forward.8} parent=5 // pred_check_branch
      %142 = sbr.rel (%p140) target = $region16
    $region15: #{generator_forward.8} parent=5 // pred_region
      // Predicated region
      $region17: #{generator_forward.8} parent=15 // pred_check
        %p143 = pneg %p58
      $region18: #{generator_forward.8} parent=15 // pred_check_branch
        %145 = sbr.rel (%p143) target = $region20
      $region19: #{generator_forward.8} parent=15 // pred_region
        %s146 = smul.u32 64, %s16
        %p147 = scmp.lt.s32.totalorder %s15, 3
        %s148 = scalar_select %p147, %s15, 3
        %p149 = scmp.lt.s32.totalorder %s146, 63
        %s150 = scalar_select %p149, %s146, 63
        %p151 = scmp.lt.s32.totalorder %s18, 0
        %s152 = scalar_select %p151, %s18, 0
        %s153 = sadd.s32 %s152, %s150
        %s154 = smul.addr %s148, 64
        %s155 = sadd.s32 %s153, %s154
        %s156 = smul.addr %s155, 4
        %s157 = scalar_lea.vmem %s0, %s156
        %s158 = smul.u32 64, %s16
      $region20: #{generator_forward.8} parent=15 // pred_fallthru
        _
      // Predicated region
      $region21: #{generator_forward.8} parent=15 // pred_check
        %p159 = pneg %p88
      $region22: #{generator_forward.8} parent=15 // pred_check_branch
        %161 = sbr.rel (%p159) target = $region24
      $region23: #{generator_forward.8} parent=15 // pred_region
        %s162 = smul.u32 8, %s18
        %p163 = scmp.lt.s32.totalorder %s15, 3
        %s164 = scalar_select %p163, %s15, 3
        %p165 = scmp.lt.s32.totalorder %s162, 7
        %s166 = scalar_select %p165, %s162, 7
        %p167 = scmp.lt.s32.totalorder %s17, 0
        %s168 = scalar_select %p167, %s17, 0
        %s169 = sadd.s32 %s168, %s166
        %s170 = smul.addr %s164, 8
        %s171 = sadd.s32 %s169, %s170
        %s172 = smul.addr %s171, 4
        %s173 = scalar_lea.vmem %s1, %s172
        %s174 = smul.u32 8, %s18
      $region24: #{generator_forward.8} parent=15 // pred_fallthru
        _
    $region16: #{generator_forward.8} parent=5 // pred_fallthru
      _
    %p175 = scmp.le.s32.totalorder 1, %s8
    %p176 = scmp.lt.s32.totalorder %s8, 5
    %p177 = pnand %p175, %p176
    %p178 = pneg %p177
    // Predicated region
    $region25: #{generator_forward.8} parent=5 // pred_check
      _
    $region26: #{generator_forward.8} parent=5 // pred_check_branch
      %180 = sbr.rel (%p177) target = $region28
    $region27: #{generator_forward.8} parent=5 // pred_region
      %s181 = ssub.s32 %s8, 1
      %s182 = smul.u32 64, %s20
      %p183 = scmp.lt.s32.totalorder %s19, 3
      %s184 = scalar_select %p183, %s19, 3
      %p185 = scmp.lt.s32.totalorder %s182, 63
      %s186 = scalar_select %p185, %s182, 63
      %p187 = scmp.lt.s32.totalorder %s22, 0
      %s188 = scalar_select %p187, %s22, 0
      %s189 = sadd.s32 %s188, %s186
      %s190 = smul.addr %s184, 64
      %s191 = sadd.s32 %s189, %s190
      %s192 = smul.addr %s191, 4
      %s193 = scalar_lea.vmem %s0, %s192
      %p194 = pneg %p64
      %p195 = pneg %p61
      %s196 = smul.u32 8, %s22
      %p197 = scmp.lt.s32.totalorder %s19, 3
      %s198 = scalar_select %p197, %s19, 3
      %p199 = scmp.lt.s32.totalorder %s196, 7
      %s200 = scalar_select %p199, %s196, 7
      %p201 = scmp.lt.s32.totalorder %s21, 0
      %s202 = scalar_select %p201, %s21, 0
      %s203 = sadd.s32 %s202, %s200
      %s204 = smul.addr %s198, 8
      %s205 = sadd.s32 %s203, %s204
      %s206 = smul.addr %s205, 4
      %s207 = scalar_lea.vmem %s1, %s206
      %p208 = pneg %p94
      %p209 = pneg %p91
      %p210 = pneg %p124
      %p211 = pneg %p121
      %s212 = smul.u32 64, %s20
      %p213 = scmp.lt.s32.totalorder %s19, 3
      %s214 = scalar_select %p213, %s19, 3
      %p215 = scmp.lt.s32.totalorder %s212, 63
      %s216 = scalar_select %p215, %s212, 63
      %p217 = scmp.lt.s32.totalorder %s21, 0
      %s218 = scalar_select %p217, %s21, 0
      %s219 = sadd.s32 %s218, %s216
      %s220 = smul.addr %s214, 64
      %s221 = sadd.s32 %s219, %s220
      %s222 = smul.addr %s221, 4
      %s223 = scalar_lea.vmem %s2, %s222
      %s224 = smul.u32 64, %s20
      %p225 = scmp.lt.s32.totalorder %s19, 3
      %s226 = scalar_select %p225, %s19, 3
      %p227 = scmp.lt.s32.totalorder %s224, 63
      %s228 = scalar_select %p227, %s224, 63
      %p229 = scmp.lt.s32.totalorder %s22, 0
      %s230 = scalar_select %p229, %s22, 0
      %s231 = sadd.s32 %s230, %s228
      %s232 = smul.addr %s226, 64
      %s233 = sadd.s32 %s231, %s232
      %s234 = smul.addr %s233, 4
      %s235 = scalar_lea.vmem %s0, %s234
      %s236 = smul.u32 64, %s20
      %s237 = smul.u32 8, %s22
      %p238 = scmp.lt.s32.totalorder %s19, 3
      %s239 = scalar_select %p238, %s19, 3
      %p240 = scmp.lt.s32.totalorder %s237, 7
      %s241 = scalar_select %p240, %s237, 7
      %p242 = scmp.lt.s32.totalorder %s21, 0
      %s243 = scalar_select %p242, %s21, 0
      %s244 = sadd.s32 %s243, %s241
      %s245 = smul.addr %s239, 8
      %s246 = sadd.s32 %s244, %s245
      %s247 = smul.addr %s246, 4
      %s248 = scalar_lea.vmem %s1, %s247
      %s249 = smul.u32 8, %s22
      %s250 = smul.u32 64, %s20
      %p251 = scmp.lt.s32.totalorder %s19, 3
      %s252 = scalar_select %p251, %s19, 3
      %p253 = scmp.lt.s32.totalorder %s250, 63
      %s254 = scalar_select %p253, %s250, 63
      %p255 = scmp.lt.s32.totalorder %s21, 0
      %s256 = scalar_select %p255, %s21, 0
      %s257 = sadd.s32 %s256, %s254
      %s258 = smul.addr %s252, 64
      %s259 = sadd.s32 %s257, %s258
      %s260 = smul.addr %s259, 4
      %s261 = scalar_lea.vmem %s2, %s260
      %s262 = smul.u32 64, %s20
      %p264 = scmp.eq.s32.totalorder %s22, 0
      // Predicated region
      $region29: #{generator_forward.8} parent=27 // pred_check
        %p265 = pneg %p264
      $region30: #{generator_forward.8} parent=27 // pred_check_branch
        %267 = sbr.rel (%p265) target = $region32
      $region31: #{generator_forward.8} parent=27 // pred_region
        %268 = vst [vmem:[#allocation2] sm:$0xff] 0.0
        %269 = vst [vmem:[#allocation2 + $0x8] sm:$0xff] 0.0
        %270 = vst [vmem:[#allocation2 + $0x10] sm:$0xff] 0.0
        %271 = vst [vmem:[#allocation2 + $0x18] sm:$0xff] 0.0
        %272 = vst [vmem:[#allocation2 + $0x20] sm:$0xff] 0.0
        %273 = vst [vmem:[#allocation2 + $0x28] sm:$0xff] 0.0
        %274 = vst [vmem:[#allocation2 + $0x30] sm:$0xff] 0.0
        %275 = vst [vmem:[#allocation2 + $0x38] sm:$0xff] 0.0
        %276 = vst [vmem:[#allocation2 + $0x40] sm:$0xff] 0.0
        %277 = vst [vmem:[#allocation2 + $0x48] sm:$0xff] 0.0
        %278 = vst [vmem:[#allocation2 + $0x50] sm:$0xff] 0.0
        %279 = vst [vmem:[#allocation2 + $0x58] sm:$0xff] 0.0
        %280 = vst [vmem:[#allocation2 + $0x60] sm:$0xff] 0.0
        %281 = vst [vmem:[#allocation2 + $0x68] sm:$0xff] 0.0
        %282 = vst [vmem:[#allocation2 + $0x70] sm:$0xff] 0.0
        %283 = vst [vmem:[#allocation2 + $0x78] sm:$0xff] 0.0
        %284 = vst [vmem:[#allocation2 + $0x80] sm:$0xff] 0.0
        %285 = vst [vmem:[#allocation2 + $0x88] sm:$0xff] 0.0
        %286 = vst [vmem:[#allocation2 + $0x90] sm:$0xff] 0.0
        %287 = vst [vmem:[#allocation2 + $0x98] sm:$0xff] 0.0
        %288 = vst [vmem:[#allocation2 + $0xa0] sm:$0xff] 0.0
        %289 = vst [vmem:[#allocation2 + $0xa8] sm:$0xff] 0.0
        %290 = vst [vmem:[#allocation2 + $0xb0] sm:$0xff] 0.0
        %291 = vst [vmem:[#allocation2 + $0xb8] sm:$0xff] 0.0
        %292 = vst [vmem:[#allocation2 + $0xc0] sm:$0xff] 0.0
        %293 = vst [vmem:[#allocation2 + $0xc8] sm:$0xff] 0.0
        %294 = vst [vmem:[#allocation2 + $0xd0] sm:$0xff] 0.0
        %295 = vst [vmem:[#allocation2 + $0xd8] sm:$0xff] 0.0
        %296 = vst [vmem:[#allocation2 + $0xe0] sm:$0xff] 0.0
        %297 = vst [vmem:[#allocation2 + $0xe8] sm:$0xff] 0.0
        %298 = vst [vmem:[#allocation2 + $0xf0] sm:$0xff] 0.0
        %299 = vst [vmem:[#allocation2 + $0xf8] sm:$0xff] 0.0
        %300 = vst [vmem:[#allocation2 + $0x100] sm:$0xff] 0.0
        %301 = vst [vmem:[#allocation2 + $0x108] sm:$0xff] 0.0
        %302 = vst [vmem:[#allocation2 + $0x110] sm:$0xff] 0.0
        %303 = vst [vmem:[#allocation2 + $0x118] sm:$0xff] 0.0
        %304 = vst [vmem:[#allocation2 + $0x120] sm:$0xff] 0.0
        %305 = vst [vmem:[#allocation2 + $0x128] sm:$0xff] 0.0
        %306 = vst [vmem:[#allocation2 + $0x130] sm:$0xff] 0.0
        %307 = vst [vmem:[#allocation2 + $0x138] sm:$0xff] 0.0
        %308 = vst [vmem:[#allocation2 + $0x140] sm:$0xff] 0.0
        %309 = vst [vmem:[#allocation2 + $0x148] sm:$0xff] 0.0
        %310 = vst [vmem:[#allocation2 + $0x150] sm:$0xff] 0.0
        %311 = vst [vmem:[#allocation2 + $0x158] sm:$0xff] 0.0
        %312 = vst [vmem:[#allocation2 + $0x160] sm:$0xff] 0.0
        %313 = vst [vmem:[#allocation2 + $0x168] sm:$0xff] 0.0
        %314 = vst [vmem:[#allocation2 + $0x170] sm:$0xff] 0.0
        %315 = vst [vmem:[#allocation2 + $0x178] sm:$0xff] 0.0
        %316 = vst [vmem:[#allocation2 + $0x180] sm:$0xff] 0.0
        %317 = vst [vmem:[#allocation2 + $0x188] sm:$0xff] 0.0
        %318 = vst [vmem:[#allocation2 + $0x190] sm:$0xff] 0.0
        %319 = vst [vmem:[#allocation2 + $0x198] sm:$0xff] 0.0
        %320 = vst [vmem:[#allocation2 + $0x1a0] sm:$0xff] 0.0
        %321 = vst [vmem:[#allocation2 + $0x1a8] sm:$0xff] 0.0
        %322 = vst [vmem:[#allocation2 + $0x1b0] sm:$0xff] 0.0
        %323 = vst [vmem:[#allocation2 + $0x1b8] sm:$0xff] 0.0
        %324 = vst [vmem:[#allocation2 + $0x1c0] sm:$0xff] 0.0
        %325 = vst [vmem:[#allocation2 + $0x1c8] sm:$0xff] 0.0
        %326 = vst [vmem:[#allocation2 + $0x1d0] sm:$0xff] 0.0
        %327 = vst [vmem:[#allocation2 + $0x1d8] sm:$0xff] 0.0
        %328 = vst [vmem:[#allocation2 + $0x1e0] sm:$0xff] 0.0
        %329 = vst [vmem:[#allocation2 + $0x1e8] sm:$0xff] 0.0
        %330 = vst [vmem:[#allocation2 + $0x1f0] sm:$0xff] 0.0
        %331 = vst [vmem:[#allocation2 + $0x1f8] sm:$0xff] 0.0
      $region32: #{generator_forward.8} parent=27 // pred_fallthru
        _
      %v332 = vld [vmem:[#allocation2] sm:$0xff]
      %v333 = vld [vmem:[#allocation2 + $0x8] sm:$0xff]
      %v334 = vld [vmem:[#allocation2 + $0x10] sm:$0xff]
      %v335 = vld [vmem:[#allocation2 + $0x18] sm:$0xff]
      %v336 = vld [vmem:[#allocation2 + $0x20] sm:$0xff]
      %v337 = vld [vmem:[#allocation2 + $0x28] sm:$0xff]
      %v338 = vld [vmem:[#allocation2 + $0x30] sm:$0xff]
      %v339 = vld [vmem:[#allocation2 + $0x38] sm:$0xff]
      %v340 = vld [vmem:[#allocation2 + $0x40] sm:$0xff]
      %v341 = vld [vmem:[#allocation2 + $0x48] sm:$0xff]
      %v342 = vld [vmem:[#allocation2 + $0x50] sm:$0xff]
      %v343 = vld [vmem:[#allocation2 + $0x58] sm:$0xff]
      %v344 = vld [vmem:[#allocation2 + $0x60] sm:$0xff]
      %v345 = vld [vmem:[#allocation2 + $0x68] sm:$0xff]
      %v346 = vld [vmem:[#allocation2 + $0x70] sm:$0xff]
      %v347 = vld [vmem:[#allocation2 + $0x78] sm:$0xff]
      %v348 = vld [vmem:[#allocation2 + $0x80] sm:$0xff]
      %v349 = vld [vmem:[#allocation2 + $0x88] sm:$0xff]
      %v350 = vld [vmem:[#allocation2 + $0x90] sm:$0xff]
      %v351 = vld [vmem:[#allocation2 + $0x98] sm:$0xff]
      %v352 = vld [vmem:[#allocation2 + $0xa0] sm:$0xff]
      %v353 = vld [vmem:[#allocation2 + $0xa8] sm:$0xff]
      %v354 = vld [vmem:[#allocation2 + $0xb0] sm:$0xff]
      %v355 = vld [vmem:[#allocation2 + $0xb8] sm:$0xff]
      %v356 = vld [vmem:[#allocation2 + $0xc0] sm:$0xff]
      %v357 = vld [vmem:[#allocation2 + $0xc8] sm:$0xff]
      %v358 = vld [vmem:[#allocation2 + $0xd0] sm:$0xff]
      %v359 = vld [vmem:[#allocation2 + $0xd8] sm:$0xff]
      %v360 = vld [vmem:[#allocation2 + $0xe0] sm:$0xff]
      %v361 = vld [vmem:[#allocation2 + $0xe8] sm:$0xff]
      %v362 = vld [vmem:[#allocation2 + $0xf0] sm:$0xff]
      %v363 = vld [vmem:[#allocation2 + $0xf8] sm:$0xff]
      %v364 = vld [vmem:[#allocation2 + $0x100] sm:$0xff]
      %v365 = vld [vmem:[#allocation2 + $0x108] sm:$0xff]
      %v366 = vld [vmem:[#allocation2 + $0x110] sm:$0xff]
      %v367 = vld [vmem:[#allocation2 + $0x118] sm:$0xff]
      %v368 = vld [vmem:[#allocation2 + $0x120] sm:$0xff]
      %v369 = vld [vmem:[#allocation2 + $0x128] sm:$0xff]
      %v370 = vld [vmem:[#allocation2 + $0x130] sm:$0xff]
      %v371 = vld [vmem:[#allocation2 + $0x138] sm:$0xff]
      %v372 = vld [vmem:[#allocation2 + $0x140] sm:$0xff]
      %v373 = vld [vmem:[#allocation2 + $0x148] sm:$0xff]
      %v374 = vld [vmem:[#allocation2 + $0x150] sm:$0xff]
      %v375 = vld [vmem:[#allocation2 + $0x158] sm:$0xff]
      %v376 = vld [vmem:[#allocation2 + $0x160] sm:$0xff]
      %v377 = vld [vmem:[#allocation2 + $0x168] sm:$0xff]
      %v378 = vld [vmem:[#allocation2 + $0x170] sm:$0xff]
      %v379 = vld [vmem:[#allocation2 + $0x178] sm:$0xff]
      %v380 = vld [vmem:[#allocation2 + $0x180] sm:$0xff]
      %v381 = vld [vmem:[#allocation2 + $0x188] sm:$0xff]
      %v382 = vld [vmem:[#allocation2 + $0x190] sm:$0xff]
      %v383 = vld [vmem:[#allocation2 + $0x198] sm:$0xff]
      %v384 = vld [vmem:[#allocation2 + $0x1a0] sm:$0xff]
      %v385 = vld [vmem:[#allocation2 + $0x1a8] sm:$0xff]
      %v386 = vld [vmem:[#allocation2 + $0x1b0] sm:$0xff]
      %v387 = vld [vmem:[#allocation2 + $0x1b8] sm:$0xff]
      %v388 = vld [vmem:[#allocation2 + $0x1c0] sm:$0xff]
      %v389 = vld [vmem:[#allocation2 + $0x1c8] sm:$0xff]
      %v390 = vld [vmem:[#allocation2 + $0x1d0] sm:$0xff]
      %v391 = vld [vmem:[#allocation2 + $0x1d8] sm:$0xff]
      %v392 = vld [vmem:[#allocation2 + $0x1e0] sm:$0xff]
      %v393 = vld [vmem:[#allocation2 + $0x1e8] sm:$0xff]
      %v394 = vld [vmem:[#allocation2 + $0x1f0] sm:$0xff]
      %v395 = vld [vmem:[#allocation2 + $0x1f8] sm:$0xff]
      %v396 = vld [vmem:[%s235] sm:$0xf]
      %v397 = vld [vmem:[%s235 + $0x4] sm:$0xf]
      %v398 = vld [vmem:[%s235 + $0x8] sm:$0xf]
      %v399 = vld [vmem:[%s235 + $0xc] sm:$0xf]
      %v400 = vld [vmem:[%s235 + $0x10] sm:$0xf]
      %v401 = vld [vmem:[%s235 + $0x14] sm:$0xf]
      %v402 = vld [vmem:[%s235 + $0x18] sm:$0xf]
      %v403 = vld [vmem:[%s235 + $0x1c] sm:$0xf]
      %v404 = vld [vmem:[%s235 + $0x20] sm:$0xf]
      %v405 = vld [vmem:[%s235 + $0x24] sm:$0xf]
      %v406 = vld [vmem:[%s235 + $0x28] sm:$0xf]
      %v407 = vld [vmem:[%s235 + $0x2c] sm:$0xf]
      %v408 = vld [vmem:[%s235 + $0x30] sm:$0xf]
      %v409 = vld [vmem:[%s235 + $0x34] sm:$0xf]
      %v410 = vld [vmem:[%s235 + $0x38] sm:$0xf]
      %v411 = vld [vmem:[%s235 + $0x3c] sm:$0xf]
      %v412 = vld [vmem:[%s235 + $0x40] sm:$0xf]
      %v413 = vld [vmem:[%s235 + $0x44] sm:$0xf]
      %v414 = vld [vmem:[%s235 + $0x48] sm:$0xf]
      %v415 = vld [vmem:[%s235 + $0x4c] sm:$0xf]
      %v416 = vld [vmem:[%s235 + $0x50] sm:$0xf]
      %v417 = vld [vmem:[%s235 + $0x54] sm:$0xf]
      %v418 = vld [vmem:[%s235 + $0x58] sm:$0xf]
      %v419 = vld [vmem:[%s235 + $0x5c] sm:$0xf]
      %v420 = vld [vmem:[%s235 + $0x60] sm:$0xf]
      %v421 = vld [vmem:[%s235 + $0x64] sm:$0xf]
      %v422 = vld [vmem:[%s235 + $0x68] sm:$0xf]
      %v423 = vld [vmem:[%s235 + $0x6c] sm:$0xf]
      %v424 = vld [vmem:[%s235 + $0x70] sm:$0xf]
      %v425 = vld [vmem:[%s235 + $0x74] sm:$0xf]
      %v426 = vld [vmem:[%s235 + $0x78] sm:$0xf]
      %v427 = vld [vmem:[%s235 + $0x7c] sm:$0xf]
      %v428 = vld [vmem:[%s235 + $0x80] sm:$0xf]
      %v429 = vld [vmem:[%s235 + $0x84] sm:$0xf]
      %v430 = vld [vmem:[%s235 + $0x88] sm:$0xf]
      %v431 = vld [vmem:[%s235 + $0x8c] sm:$0xf]
      %v432 = vld [vmem:[%s235 + $0x90] sm:$0xf]
      %v433 = vld [vmem:[%s235 + $0x94] sm:$0xf]
      %v434 = vld [vmem:[%s235 + $0x98] sm:$0xf]
      %v435 = vld [vmem:[%s235 + $0x9c] sm:$0xf]
      %v436 = vld [vmem:[%s235 + $0xa0] sm:$0xf]
      %v437 = vld [vmem:[%s235 + $0xa4] sm:$0xf]
      %v438 = vld [vmem:[%s235 + $0xa8] sm:$0xf]
      %v439 = vld [vmem:[%s235 + $0xac] sm:$0xf]
      %v440 = vld [vmem:[%s235 + $0xb0] sm:$0xf]
      %v441 = vld [vmem:[%s235 + $0xb4] sm:$0xf]
      %v442 = vld [vmem:[%s235 + $0xb8] sm:$0xf]
      %v443 = vld [vmem:[%s235 + $0xbc] sm:$0xf]
      %v444 = vld [vmem:[%s235 + $0xc0] sm:$0xf]
      %v445 = vld [vmem:[%s235 + $0xc4] sm:$0xf]
      %v446 = vld [vmem:[%s235 + $0xc8] sm:$0xf]
      %v447 = vld [vmem:[%s235 + $0xcc] sm:$0xf]
      %v448 = vld [vmem:[%s235 + $0xd0] sm:$0xf]
      %v449 = vld [vmem:[%s235 + $0xd4] sm:$0xf]
      %v450 = vld [vmem:[%s235 + $0xd8] sm:$0xf]
      %v451 = vld [vmem:[%s235 + $0xdc] sm:$0xf]
      %v452 = vld [vmem:[%s235 + $0xe0] sm:$0xf]
      %v453 = vld [vmem:[%s235 + $0xe4] sm:$0xf]
      %v454 = vld [vmem:[%s235 + $0xe8] sm:$0xf]
      %v455 = vld [vmem:[%s235 + $0xec] sm:$0xf]
      %v456 = vld [vmem:[%s235 + $0xf0] sm:$0xf]
      %v457 = vld [vmem:[%s235 + $0xf4] sm:$0xf]
      %v458 = vld [vmem:[%s235 + $0xf8] sm:$0xf]
      %v459 = vld [vmem:[%s235 + $0xfc] sm:$0xf]
      %v460 = vld [vmem:[%s248] sm:$0xf]
      %v461 = vld [vmem:[%s248 + $0x4] sm:$0xf]
      %v462 = vld [vmem:[%s248 + $0x8] sm:$0xf]
      %v463 = vld [vmem:[%s248 + $0xc] sm:$0xf]
      %v464 = vld [vmem:[%s248 + $0x10] sm:$0xf]
      %v465 = vld [vmem:[%s248 + $0x14] sm:$0xf]
      %v466 = vld [vmem:[%s248 + $0x18] sm:$0xf]
      %v467 = vld [vmem:[%s248 + $0x1c] sm:$0xf]
      %v532 = vunpack.c.l.b16 %v396
      %v533 = vunpack.c.l.b16 %v397
      %v534 = vunpack.c.l.b16 %v398
      %v535 = vunpack.c.l.b16 %v399
      %v536 = vunpack.c.l.b16 %v400
      %v537 = vunpack.c.l.b16 %v401
      %v538 = vunpack.c.l.b16 %v402
      %v539 = vunpack.c.l.b16 %v403
      %v540 = vunpack.c.l.b16 %v404
      %v541 = vunpack.c.l.b16 %v405
      %v542 = vunpack.c.l.b16 %v406
      %v543 = vunpack.c.l.b16 %v407
      %v544 = vunpack.c.l.b16 %v408
      %v545 = vunpack.c.l.b16 %v409
      %v546 = vunpack.c.l.b16 %v410
      %v547 = vunpack.c.l.b16 %v411
      %v548 = vunpack.c.l.b16 %v412
      %v549 = vunpack.c.l.b16 %v413
      %v550 = vunpack.c.l.b16 %v414
      %v551 = vunpack.c.l.b16 %v415
      %v552 = vunpack.c.l.b16 %v416
      %v553 = vunpack.c.l.b16 %v417
      %v554 = vunpack.c.l.b16 %v418
      %v555 = vunpack.c.l.b16 %v419
      %v556 = vunpack.c.l.b16 %v420
      %v557 = vunpack.c.l.b16 %v421
      %v558 = vunpack.c.l.b16 %v422
      %v559 = vunpack.c.l.b16 %v423
      %v560 = vunpack.c.l.b16 %v424
      %v561 = vunpack.c.l.b16 %v425
      %v562 = vunpack.c.l.b16 %v426
      %v563 = vunpack.c.l.b16 %v427
      %v564 = vunpack.c.l.b16 %v428
      %v565 = vunpack.c.l.b16 %v429
      %v566 = vunpack.c.l.b16 %v430
      %v567 = vunpack.c.l.b16 %v431
      %v568 = vunpack.c.l.b16 %v432
      %v569 = vunpack.c.l.b16 %v433
      %v570 = vunpack.c.l.b16 %v434
      %v571 = vunpack.c.l.b16 %v435
      %v572 = vunpack.c.l.b16 %v436
      %v573 = vunpack.c.l.b16 %v437
      %v574 = vunpack.c.l.b16 %v438
      %v575 = vunpack.c.l.b16 %v439
      %v576 = vunpack.c.l.b16 %v440
      %v577 = vunpack.c.l.b16 %v441
      %v578 = vunpack.c.l.b16 %v442
      %v579 = vunpack.c.l.b16 %v443
      %v580 = vunpack.c.l.b16 %v444
      %v581 = vunpack.c.l.b16 %v445
      %v582 = vunpack.c.l.b16 %v446
      %v583 = vunpack.c.l.b16 %v447
      %v584 = vunpack.c.l.b16 %v448
      %v585 = vunpack.c.l.b16 %v449
      %v586 = vunpack.c.l.b16 %v450
      %v587 = vunpack.c.l.b16 %v451
      %v588 = vunpack.c.l.b16 %v452
      %v589 = vunpack.c.l.b16 %v453
      %v590 = vunpack.c.l.b16 %v454
      %v591 = vunpack.c.l.b16 %v455
      %v592 = vunpack.c.l.b16 %v456
      %v593 = vunpack.c.l.b16 %v457
      %v594 = vunpack.c.l.b16 %v458
      %v595 = vunpack.c.l.b16 %v459
      %v596 = vpack.c.b16 %v533, %v532
      %v597 = vpack.c.b16 %v535, %v534
      %v598 = vpack.c.b16 %v537, %v536
      %v599 = vpack.c.b16 %v539, %v538
      %v600 = vpack.c.b16 %v541, %v540
      %v601 = vpack.c.b16 %v543, %v542
      %v602 = vpack.c.b16 %v545, %v544
      %v603 = vpack.c.b16 %v547, %v546
      %v604 = vpack.c.b16 %v549, %v548
      %v605 = vpack.c.b16 %v551, %v550
      %v606 = vpack.c.b16 %v553, %v552
      %v607 = vpack.c.b16 %v555, %v554
      %v608 = vpack.c.b16 %v557, %v556
      %v609 = vpack.c.b16 %v559, %v558
      %v610 = vpack.c.b16 %v561, %v560
      %v611 = vpack.c.b16 %v563, %v562
      %v612 = vpack.c.b16 %v565, %v564
      %v613 = vpack.c.b16 %v567, %v566
      %v614 = vpack.c.b16 %v569, %v568
      %v615 = vpack.c.b16 %v571, %v570
      %v616 = vpack.c.b16 %v573, %v572
      %v617 = vpack.c.b16 %v575, %v574
      %v618 = vpack.c.b16 %v577, %v576
      %v619 = vpack.c.b16 %v579, %v578
      %v620 = vpack.c.b16 %v581, %v580
      %v621 = vpack.c.b16 %v583, %v582
      %v622 = vpack.c.b16 %v585, %v584
      %v623 = vpack.c.b16 %v587, %v586
      %v624 = vpack.c.b16 %v589, %v588
      %v625 = vpack.c.b16 %v591, %v590
      %v626 = vpack.c.b16 %v593, %v592
      %v627 = vpack.c.b16 %v595, %v594
      %v636 = vunpack.c.l.b16 %v460
      %v637 = vunpack.c.l.b16 %v461
      %v638 = vunpack.c.l.b16 %v462
      %v639 = vunpack.c.l.b16 %v463
      %v640 = vunpack.c.l.b16 %v464
      %v641 = vunpack.c.l.b16 %v465
      %v642 = vunpack.c.l.b16 %v466
      %v643 = vunpack.c.l.b16 %v467
      %v644 = vpack.c.b16 %v637, %v636
      %v645 = vpack.c.b16 %v639, %v638
      %v646 = vpack.c.b16 %v641, %v640
      %v647 = vpack.c.b16 %v643, %v642
      %vm652 = vcmask 523264
      %v654 = vsel %vm652, %v596, 0
      %v657 = vsel %vm652, %v597, 0
      %v660 = vsel %vm652, %v598, 0
      %v663 = vsel %vm652, %v599, 0
      %v666 = vsel %vm652, %v600, 0
      %v669 = vsel %vm652, %v601, 0
      %v672 = vsel %vm652, %v602, 0
      %v675 = vsel %vm652, %v603, 0
      %v678 = vsel %vm652, %v604, 0
      %v681 = vsel %vm652, %v605, 0
      %v684 = vsel %vm652, %v606, 0
      %v687 = vsel %vm652, %v607, 0
      %v690 = vsel %vm652, %v608, 0
      %v693 = vsel %vm652, %v609, 0
      %v696 = vsel %vm652, %v610, 0
      %v699 = vsel %vm652, %v611, 0
      %v702 = vsel %vm652, %v612, 0
      %v705 = vsel %vm652, %v613, 0
      %v708 = vsel %vm652, %v614, 0
      %v711 = vsel %vm652, %v615, 0
      %v714 = vsel %vm652, %v616, 0
      %v717 = vsel %vm652, %v617, 0
      %v720 = vsel %vm652, %v618, 0
      %v723 = vsel %vm652, %v619, 0
      %v726 = vsel %vm652, %v620, 0
      %v729 = vsel %vm652, %v621, 0
      %v732 = vsel %vm652, %v622, 0
      %v735 = vsel %vm652, %v623, 0
      %v738 = vsel %vm652, %v624, 0
      %v741 = vsel %vm652, %v625, 0
      %v744 = vsel %vm652, %v626, 0
      %v747 = vsel %vm652, %v627, 0
      %749 = vmatprep.subr.bf16.mxu0 0
      %750 = vmatpush1.bf16.msra.mxu0 %v644
      %751 = vmatprep.subr.bf16.mxu0 0
      %752 = vmatpush1.bf16.msra.mxu0 %v645
      %753 = vmatprep.subr.bf16.mxu0 0
      %754 = vmatpush1.bf16.msra.mxu0 %v646
      %755 = vmatprep.subr.bf16.mxu0 0
      %756 = vmatpush1.bf16.msra.mxu0 %v647
      %757 = vmatprep.subr.bf16.mxu0 0
      %758 = vmatpush1.bf16.msra.mxu0 0
      %759 = vmatprep.subr.bf16.mxu0 0
      %760 = vmatpush1.bf16.msra.mxu0 0
      %761 = vmatprep.subr.bf16.mxu0 0
      %762 = vmatpush1.bf16.msra.mxu0 0
      %763 = vmatprep.subr.bf16.mxu0 0
      %764 = vmatpush1.bf16.msra.mxu0 0
      %765 = vmatprep.subr.bf16.mxu0 0
      %766 = vmatpush1.bf16.msra.mxu0 0
      %767 = vmatprep.subr.bf16.mxu0 0
      %768 = vmatpush1.bf16.msra.mxu0 0
      %769 = vmatprep.subr.bf16.mxu0 0
      %770 = vmatpush1.bf16.msra.mxu0 0
      %771 = vmatprep.subr.bf16.mxu0 0
      %772 = vmatpush1.bf16.msra.mxu0 0
      %773 = vmatprep.subr.bf16.mxu0 0
      %774 = vmatpush1.bf16.msra.mxu0 0
      %775 = vmatprep.subr.bf16.mxu0 0
      %776 = vmatpush1.bf16.msra.mxu0 0
      %777 = vmatprep.subr.bf16.mxu0 0
      %778 = vmatpush1.bf16.msra.mxu0 0
      %779 = vmatprep.subr.bf16.mxu0 0
      %780 = vmatpush1.bf16.msra.mxu0 0
      %781 = vmatprep.mubr.bf16.mxu0 0
      %782 = vmatmul.mubr.bf16.gmra.mrb[0].mxu0 %v654
      %v783 = vpop.f32.mrb[0].mxu0
      %v784 = vadd.f32 0.0, %v783
      %v785 = vpop.f32.mrb[0].mxu0
      %v786 = vpop.f32.mrb[0].mxu0
      %v787 = vadd.f32 0.0, %v786
      %v788 = vpop.f32.mrb[0].mxu0
      %789 = vmatprep.mubr.bf16.mxu0 0
      %790 = vmatmul.mubr.bf16.gmra.mrb[0].mxu0 %v657
      %v791 = vpop.f32.mrb[0].mxu0
      %v792 = vadd.f32 0.0, %v791
      %v793 = vpop.f32.mrb[0].mxu0
      %v794 = vpop.f32.mrb[0].mxu0
      %v795 = vadd.f32 0.0, %v794
      %v796 = vpop.f32.mrb[0].mxu0
      %797 = vmatprep.mubr.bf16.mxu0 0
      %798 = vmatmul.mubr.bf16.gmra.mrb[0].mxu0 %v660
      %v799 = vpop.f32.mrb[0].mxu0
      %v800 = vadd.f32 0.0, %v799
      %v801 = vpop.f32.mrb[0].mxu0
      %v802 = vpop.f32.mrb[0].mxu0
      %v803 = vadd.f32 0.0, %v802
      %v804 = vpop.f32.mrb[0].mxu0
      %805 = vmatprep.mubr.bf16.mxu0 0
      %806 = vmatmul.mubr.bf16.gmra.mrb[0].mxu0 %v663
      %v807 = vpop.f32.mrb[0].mxu0
      %v808 = vadd.f32 0.0, %v807
      %v809 = vpop.f32.mrb[0].mxu0
      %v810 = vpop.f32.mrb[0].mxu0
      %v811 = vadd.f32 0.0, %v810
      %v812 = vpop.f32.mrb[0].mxu0
      %813 = vmatprep.mubr.bf16.mxu0 0
      %814 = vmatmul.mubr.bf16.gmra.mrb[0].mxu0 %v666
      %v815 = vpop.f32.mrb[0].mxu0
      %v816 = vadd.f32 0.0, %v815
      %v817 = vpop.f32.mrb[0].mxu0
      %v818 = vpop.f32.mrb[0].mxu0
      %v819 = vadd.f32 0.0, %v818
      %v820 = vpop.f32.mrb[0].mxu0
      %821 = vmatprep.mubr.bf16.mxu0 0
      %822 = vmatmul.mubr.bf16.gmra.mrb[0].mxu0 %v669
      %v823 = vpop.f32.mrb[0].mxu0
      %v824 = vadd.f32 0.0, %v823
      %v825 = vpop.f32.mrb[0].mxu0
      %v826 = vpop.f32.mrb[0].mxu0
      %v827 = vadd.f32 0.0, %v826
      %v828 = vpop.f32.mrb[0].mxu0
      %829 = vmatprep.mubr.bf16.mxu0 0
      %830 = vmatmul.mubr.bf16.gmra.mrb[0].mxu0 %v672
      %v831 = vpop.f32.mrb[0].mxu0
      %v832 = vadd.f32 0.0, %v831
      %v833 = vpop.f32.mrb[0].mxu0
      %v834 = vpop.f32.mrb[0].mxu0
      %v835 = vadd.f32 0.0, %v834
      %v836 = vpop.f32.mrb[0].mxu0
      %837 = vmatprep.mubr.bf16.mxu0 0
      %838 = vmatmul.mubr.bf16.gmra.mrb[0].mxu0 %v675
      %v839 = vpop.f32.mrb[0].mxu0
      %v840 = vadd.f32 0.0, %v839
      %v841 = vpop.f32.mrb[0].mxu0
      %v842 = vpop.f32.mrb[0].mxu0
      %v843 = vadd.f32 0.0, %v842
      %v844 = vpop.f32.mrb[0].mxu0
      %845 = vmatprep.mubr.bf16.mxu0 0
      %846 = vmatmul.mubr.bf16.gmra.mrb[0].mxu0 %v678
      %v847 = vpop.f32.mrb[0].mxu0
      %v848 = vadd.f32 0.0, %v847
      %v849 = vpop.f32.mrb[0].mxu0
      %v850 = vpop.f32.mrb[0].mxu0
      %v851 = vadd.f32 0.0, %v850
      %v852 = vpop.f32.mrb[0].mxu0
      %853 = vmatprep.mubr.bf16.mxu0 0
      %854 = vmatmul.mubr.bf16.gmra.mrb[0].mxu0 %v681
      %v855 = vpop.f32.mrb[0].mxu0
      %v856 = vadd.f32 0.0, %v855
      %v857 = vpop.f32.mrb[0].mxu0
      %v858 = vpop.f32.mrb[0].mxu0
      %v859 = vadd.f32 0.0, %v858
      %v860 = vpop.f32.mrb[0].mxu0
      %861 = vmatprep.mubr.bf16.mxu0 0
      %862 = vmatmul.mubr.bf16.gmra.mrb[0].mxu0 %v684
      %v863 = vpop.f32.mrb[0].mxu0
      %v864 = vadd.f32 0.0, %v863
      %v865 = vpop.f32.mrb[0].mxu0
      %v866 = vpop.f32.mrb[0].mxu0
      %v867 = vadd.f32 0.0, %v866
      %v868 = vpop.f32.mrb[0].mxu0
      %869 = vmatprep.mubr.bf16.mxu0 0
      %870 = vmatmul.mubr.bf16.gmra.mrb[0].mxu0 %v687
      %v871 = vpop.f32.mrb[0].mxu0
      %v872 = vadd.f32 0.0, %v871
      %v873 = vpop.f32.mrb[0].mxu0
      %v874 = vpop.f32.mrb[0].mxu0
      %v875 = vadd.f32 0.0, %v874
      %v876 = vpop.f32.mrb[0].mxu0
      %877 = vmatprep.mubr.bf16.mxu0 0
      %878 = vmatmul.mubr.bf16.gmra.mrb[0].mxu0 %v690
      %v879 = vpop.f32.mrb[0].mxu0
      %v880 = vadd.f32 0.0, %v879
      %v881 = vpop.f32.mrb[0].mxu0
      %v882 = vpop.f32.mrb[0].mxu0
      %v883 = vadd.f32 0.0, %v882
      %v884 = vpop.f32.mrb[0].mxu0
      %885 = vmatprep.mubr.bf16.mxu0 0
      %886 = vmatmul.mubr.bf16.gmra.mrb[0].mxu0 %v693
      %v887 = vpop.f32.mrb[0].mxu0
      %v888 = vadd.f32 0.0, %v887
      %v889 = vpop.f32.mrb[0].mxu0
      %v890 = vpop.f32.mrb[0].mxu0
      %v891 = vadd.f32 0.0, %v890
      %v892 = vpop.f32.mrb[0].mxu0
      %893 = vmatprep.mubr.bf16.mxu0 0
      %894 = vmatmul.mubr.bf16.gmra.mrb[0].mxu0 %v696
      %v895 = vpop.f32.mrb[0].mxu0
      %v896 = vadd.f32 0.0, %v895
      %v897 = vpop.f32.mrb[0].mxu0
      %v898 = vpop.f32.mrb[0].mxu0
      %v899 = vadd.f32 0.0, %v898
      %v900 = vpop.f32.mrb[0].mxu0
      %901 = vmatprep.mubr.bf16.mxu0 0
      %902 = vmatmul.mubr.bf16.gmra.mrb[0].mxu0 %v699
      %v903 = vpop.f32.mrb[0].mxu0
      %v904 = vadd.f32 0.0, %v903
      %v905 = vpop.f32.mrb[0].mxu0
      %v906 = vpop.f32.mrb[0].mxu0
      %v907 = vadd.f32 0.0, %v906
      %v908 = vpop.f32.mrb[0].mxu0
      %909 = vmatprep.mubr.bf16.mxu0 0
      %910 = vmatmul.mubr.bf16.gmra.mrb[0].mxu0 %v702
      %v911 = vpop.f32.mrb[0].mxu0
      %v912 = vadd.f32 0.0, %v911
      %v913 = vpop.f32.mrb[0].mxu0
      %v914 = vpop.f32.mrb[0].mxu0
      %v915 = vadd.f32 0.0, %v914
      %v916 = vpop.f32.mrb[0].mxu0
      %917 = vmatprep.mubr.bf16.mxu0 0
      %918 = vmatmul.mubr.bf16.gmra.mrb[0].mxu0 %v705
      %v919 = vpop.f32.mrb[0].mxu0
      %v920 = vadd.f32 0.0, %v919
      %v921 = vpop.f32.mrb[0].mxu0
      %v922 = vpop.f32.mrb[0].mxu0
      %v923 = vadd.f32 0.0, %v922
      %v924 = vpop.f32.mrb[0].mxu0
      %925 = vmatprep.mubr.bf16.mxu0 0
      %926 = vmatmul.mubr.bf16.gmra.mrb[0].mxu0 %v708
      %v927 = vpop.f32.mrb[0].mxu0
      %v928 = vadd.f32 0.0, %v927
      %v929 = vpop.f32.mrb[0].mxu0
      %v930 = vpop.f32.mrb[0].mxu0
      %v931 = vadd.f32 0.0, %v930
      %v932 = vpop.f32.mrb[0].mxu0
      %933 = vmatprep.mubr.bf16.mxu0 0
      %934 = vmatmul.mubr.bf16.gmra.mrb[0].mxu0 %v711
      %v935 = vpop.f32.mrb[0].mxu0
      %v936 = vadd.f32 0.0, %v935
      %v937 = vpop.f32.mrb[0].mxu0
      %v938 = vpop.f32.mrb[0].mxu0
      %v939 = vadd.f32 0.0, %v938
      %v940 = vpop.f32.mrb[0].mxu0
      %941 = vmatprep.mubr.bf16.mxu0 0
      %942 = vmatmul.mubr.bf16.gmra.mrb[0].mxu0 %v714
      %v943 = vpop.f32.mrb[0].mxu0
      %v944 = vadd.f32 0.0, %v943
      %v945 = vpop.f32.mrb[0].mxu0
      %v946 = vpop.f32.mrb[0].mxu0
      %v947 = vadd.f32 0.0, %v946
      %v948 = vpop.f32.mrb[0].mxu0
      %949 = vmatprep.mubr.bf16.mxu0 0
      %950 = vmatmul.mubr.bf16.gmra.mrb[0].mxu0 %v717
      %v951 = vpop.f32.mrb[0].mxu0
      %v952 = vadd.f32 0.0, %v951
      %v953 = vpop.f32.mrb[0].mxu0
      %v954 = vpop.f32.mrb[0].mxu0
      %v955 = vadd.f32 0.0, %v954
      %v956 = vpop.f32.mrb[0].mxu0
      %957 = vmatprep.mubr.bf16.mxu0 0
      %958 = vmatmul.mubr.bf16.gmra.mrb[0].mxu0 %v720
      %v959 = vpop.f32.mrb[0].mxu0
      %v960 = vadd.f32 0.0, %v959
      %v961 = vpop.f32.mrb[0].mxu0
      %v962 = vpop.f32.mrb[0].mxu0
      %v963 = vadd.f32 0.0, %v962
      %v964 = vpop.f32.mrb[0].mxu0
      %965 = vmatprep.mubr.bf16.mxu0 0
      %966 = vmatmul.mubr.bf16.gmra.mrb[0].mxu0 %v723
      %v967 = vpop.f32.mrb[0].mxu0
      %v968 = vadd.f32 0.0, %v967
      %v969 = vpop.f32.mrb[0].mxu0
      %v970 = vpop.f32.mrb[0].mxu0
      %v971 = vadd.f32 0.0, %v970
      %v972 = vpop.f32.mrb[0].mxu0
      %973 = vmatprep.mubr.bf16.mxu0 0
      %974 = vmatmul.mubr.bf16.gmra.mrb[0].mxu0 %v726
      %v975 = vpop.f32.mrb[0].mxu0
      %v976 = vadd.f32 0.0, %v975
      %v977 = vpop.f32.mrb[0].mxu0
      %v978 = vpop.f32.mrb[0].mxu0
      %v979 = vadd.f32 0.0, %v978
      %v980 = vpop.f32.mrb[0].mxu0
      %981 = vmatprep.mubr.bf16.mxu0 0
      %982 = vmatmul.mubr.bf16.gmra.mrb[0].mxu0 %v729
      %v983 = vpop.f32.mrb[0].mxu0
      %v984 = vadd.f32 0.0, %v983
      %v985 = vpop.f32.mrb[0].mxu0
      %v986 = vpop.f32.mrb[0].mxu0
      %v987 = vadd.f32 0.0, %v986
      %v988 = vpop.f32.mrb[0].mxu0
      %989 = vmatprep.mubr.bf16.mxu0 0
      %990 = vmatmul.mubr.bf16.gmra.mrb[0].mxu0 %v732
      %v991 = vpop.f32.mrb[0].mxu0
      %v992 = vadd.f32 0.0, %v991
      %v993 = vpop.f32.mrb[0].mxu0
      %v994 = vpop.f32.mrb[0].mxu0
      %v995 = vadd.f32 0.0, %v994
      %v996 = vpop.f32.mrb[0].mxu0
      %997 = vmatprep.mubr.bf16.mxu0 0
      %998 = vmatmul.mubr.bf16.gmra.mrb[0].mxu0 %v735
      %v999 = vpop.f32.mrb[0].mxu0
      %v1000 = vadd.f32 0.0, %v999
      %v1001 = vpop.f32.mrb[0].mxu0
      %v1002 = vpop.f32.mrb[0].mxu0
      %v1003 = vadd.f32 0.0, %v1002
      %v1004 = vpop.f32.mrb[0].mxu0
      %1005 = vmatprep.mubr.bf16.mxu0 0
      %1006 = vmatmul.mubr.bf16.gmra.mrb[0].mxu0 %v738
      %v1007 = vpop.f32.mrb[0].mxu0
      %v1008 = vadd.f32 0.0, %v1007
      %v1009 = vpop.f32.mrb[0].mxu0
      %v1010 = vpop.f32.mrb[0].mxu0
      %v1011 = vadd.f32 0.0, %v1010
      %v1012 = vpop.f32.mrb[0].mxu0
      %1013 = vmatprep.mubr.bf16.mxu0 0
      %1014 = vmatmul.mubr.bf16.gmra.mrb[0].mxu0 %v741
      %v1015 = vpop.f32.mrb[0].mxu0
      %v1016 = vadd.f32 0.0, %v1015
      %v1017 = vpop.f32.mrb[0].mxu0
      %v1018 = vpop.f32.mrb[0].mxu0
      %v1019 = vadd.f32 0.0, %v1018
      %v1020 = vpop.f32.mrb[0].mxu0
      %1021 = vmatprep.mubr.bf16.mxu0 0
      %1022 = vmatmul.mubr.bf16.gmra.mrb[0].mxu0 %v744
      %v1023 = vpop.f32.mrb[0].mxu0
      %v1024 = vadd.f32 0.0, %v1023
      %v1025 = vpop.f32.mrb[0].mxu0
      %v1026 = vpop.f32.mrb[0].mxu0
      %v1027 = vadd.f32 0.0, %v1026
      %v1028 = vpop.f32.mrb[0].mxu0
      %1029 = vmatprep.mubr.bf16.mxu0 0
      %1030 = vmatmul.mubr.bf16.gmra.mrb[0].mxu0 %v747
      %v1031 = vpop.f32.mrb[0].mxu0
      %v1032 = vadd.f32 0.0, %v1031
      %v1033 = vpop.f32.mrb[0].mxu0
      %v1034 = vpop.f32.mrb[0].mxu0
      %v1035 = vadd.f32 0.0, %v1034
      %v1036 = vpop.f32.mrb[0].mxu0
      %1037 = vdwg.mxu0
      %v1038 = vadd.f32 %v332, %v784
      %v1039 = vadd.f32 %v333, %v787
      %v1040 = vadd.f32 %v334, %v792
      %v1041 = vadd.f32 %v335, %v795
      %v1042 = vadd.f32 %v336, %v800
      %v1043 = vadd.f32 %v337, %v803
      %v1044 = vadd.f32 %v338, %v808
      %v1045 = vadd.f32 %v339, %v811
      %v1046 = vadd.f32 %v340, %v816
      %v1047 = vadd.f32 %v341, %v819
      %v1048 = vadd.f32 %v342, %v824
      %v1049 = vadd.f32 %v343, %v827
      %v1050 = vadd.f32 %v344, %v832
      %v1051 = vadd.f32 %v345, %v835
      %v1052 = vadd.f32 %v346, %v840
      %v1053 = vadd.f32 %v347, %v843
      %v1054 = vadd.f32 %v348, %v848
      %v1055 = vadd.f32 %v349, %v851
      %v1056 = vadd.f32 %v350, %v856
      %v1057 = vadd.f32 %v351, %v859
      %v1058 = vadd.f32 %v352, %v864
      %v1059 = vadd.f32 %v353, %v867
      %v1060 = vadd.f32 %v354, %v872
      %v1061 = vadd.f32 %v355, %v875
      %v1062 = vadd.f32 %v356, %v880
      %v1063 = vadd.f32 %v357, %v883
      %v1064 = vadd.f32 %v358, %v888
      %v1065 = vadd.f32 %v359, %v891
      %v1066 = vadd.f32 %v360, %v896
      %v1067 = vadd.f32 %v361, %v899
      %v1068 = vadd.f32 %v362, %v904
      %v1069 = vadd.f32 %v363, %v907
      %v1070 = vadd.f32 %v364, %v912
      %v1071 = vadd.f32 %v365, %v915
      %v1072 = vadd.f32 %v366, %v920
      %v1073 = vadd.f32 %v367, %v923
      %v1074 = vadd.f32 %v368, %v928
      %v1075 = vadd.f32 %v369, %v931
      %v1076 = vadd.f32 %v370, %v936
      %v1077 = vadd.f32 %v371, %v939
      %v1078 = vadd.f32 %v372, %v944
      %v1079 = vadd.f32 %v373, %v947
      %v1080 = vadd.f32 %v374, %v952
      %v1081 = vadd.f32 %v375, %v955
      %v1082 = vadd.f32 %v376, %v960
      %v1083 = vadd.f32 %v377, %v963
      %v1084 = vadd.f32 %v378, %v968
      %v1085 = vadd.f32 %v379, %v971
      %v1086 = vadd.f32 %v380, %v976
      %v1087 = vadd.f32 %v381, %v979
      %v1088 = vadd.f32 %v382, %v984
      %v1089 = vadd.f32 %v383, %v987
      %v1090 = vadd.f32 %v384, %v992
      %v1091 = vadd.f32 %v385, %v995
      %v1092 = vadd.f32 %v386, %v1000
      %v1093 = vadd.f32 %v387, %v1003
      %v1094 = vadd.f32 %v388, %v1008
      %v1095 = vadd.f32 %v389, %v1011
      %v1096 = vadd.f32 %v390, %v1016
      %v1097 = vadd.f32 %v391, %v1019
      %v1098 = vadd.f32 %v392, %v1024
      %v1099 = vadd.f32 %v393, %v1027
      %v1100 = vadd.f32 %v394, %v1032
      %v1101 = vadd.f32 %v395, %v1035
      %1102 = vst [vmem:[#allocation2] sm:$0xff] %v1038
      %1103 = vst [vmem:[#allocation2 + $0x8] sm:$0xff] %v1039
      %1104 = vst [vmem:[#allocation2 + $0x10] sm:$0xff] %v1040
      %1105 = vst [vmem:[#allocation2 + $0x18] sm:$0xff] %v1041
      %1106 = vst [vmem:[#allocation2 + $0x20] sm:$0xff] %v1042
      %1107 = vst [vmem:[#allocation2 + $0x28] sm:$0xff] %v1043
      %1108 = vst [vmem:[#allocation2 + $0x30] sm:$0xff] %v1044
      %1109 = vst [vmem:[#allocation2 + $0x38] sm:$0xff] %v1045
      %1110 = vst [vmem:[#allocation2 + $0x40] sm:$0xff] %v1046
      %1111 = vst [vmem:[#allocation2 + $0x48] sm:$0xff] %v1047
      %1112 = vst [vmem:[#allocation2 + $0x50] sm:$0xff] %v1048
      %1113 = vst [vmem:[#allocation2 + $0x58] sm:$0xff] %v1049
      %1114 = vst [vmem:[#allocation2 + $0x60] sm:$0xff] %v1050
      %1115 = vst [vmem:[#allocation2 + $0x68] sm:$0xff] %v1051
      %1116 = vst [vmem:[#allocation2 + $0x70] sm:$0xff] %v1052
      %1117 = vst [vmem:[#allocation2 + $0x78] sm:$0xff] %v1053
      %1118 = vst [vmem:[#allocation2 + $0x80] sm:$0xff] %v1054
      %1119 = vst [vmem:[#allocation2 + $0x88] sm:$0xff] %v1055
      %1120 = vst [vmem:[#allocation2 + $0x90] sm:$0xff] %v1056
      %1121 = vst [vmem:[#allocation2 + $0x98] sm:$0xff] %v1057
      %1122 = vst [vmem:[#allocation2 + $0xa0] sm:$0xff] %v1058
      %1123 = vst [vmem:[#allocation2 + $0xa8] sm:$0xff] %v1059
      %1124 = vst [vmem:[#allocation2 + $0xb0] sm:$0xff] %v1060
      %1125 = vst [vmem:[#allocation2 + $0xb8] sm:$0xff] %v1061
      %1126 = vst [vmem:[#allocation2 + $0xc0] sm:$0xff] %v1062
      %1127 = vst [vmem:[#allocation2 + $0xc8] sm:$0xff] %v1063
      %1128 = vst [vmem:[#allocation2 + $0xd0] sm:$0xff] %v1064
      %1129 = vst [vmem:[#allocation2 + $0xd8] sm:$0xff] %v1065
      %1130 = vst [vmem:[#allocation2 + $0xe0] sm:$0xff] %v1066
      %1131 = vst [vmem:[#allocation2 + $0xe8] sm:$0xff] %v1067
      %1132 = vst [vmem:[#allocation2 + $0xf0] sm:$0xff] %v1068
      %1133 = vst [vmem:[#allocation2 + $0xf8] sm:$0xff] %v1069
      %1134 = vst [vmem:[#allocation2 + $0x100] sm:$0xff] %v1070
      %1135 = vst [vmem:[#allocation2 + $0x108] sm:$0xff] %v1071
      %1136 = vst [vmem:[#allocation2 + $0x110] sm:$0xff] %v1072
      %1137 = vst [vmem:[#allocation2 + $0x118] sm:$0xff] %v1073
      %1138 = vst [vmem:[#allocation2 + $0x120] sm:$0xff] %v1074
      %1139 = vst [vmem:[#allocation2 + $0x128] sm:$0xff] %v1075
      %1140 = vst [vmem:[#allocation2 + $0x130] sm:$0xff] %v1076
      %1141 = vst [vmem:[#allocation2 + $0x138] sm:$0xff] %v1077
      %1142 = vst [vmem:[#allocation2 + $0x140] sm:$0xff] %v1078
      %1143 = vst [vmem:[#allocation2 + $0x148] sm:$0xff] %v1079
      %1144 = vst [vmem:[#allocation2 + $0x150] sm:$0xff] %v1080
      %1145 = vst [vmem:[#allocation2 + $0x158] sm:$0xff] %v1081
      %1146 = vst [vmem:[#allocation2 + $0x160] sm:$0xff] %v1082
      %1147 = vst [vmem:[#allocation2 + $0x168] sm:$0xff] %v1083
      %1148 = vst [vmem:[#allocation2 + $0x170] sm:$0xff] %v1084
      %1149 = vst [vmem:[#allocation2 + $0x178] sm:$0xff] %v1085
      %1150 = vst [vmem:[#allocation2 + $0x180] sm:$0xff] %v1086
      %1151 = vst [vmem:[#allocation2 + $0x188] sm:$0xff] %v1087
      %1152 = vst [vmem:[#allocation2 + $0x190] sm:$0xff] %v1088
      %1153 = vst [vmem:[#allocation2 + $0x198] sm:$0xff] %v1089
      %1154 = vst [vmem:[#allocation2 + $0x1a0] sm:$0xff] %v1090
      %1155 = vst [vmem:[#allocation2 + $0x1a8] sm:$0xff] %v1091
      %1156 = vst [vmem:[#allocation2 + $0x1b0] sm:$0xff] %v1092
      %1157 = vst [vmem:[#allocation2 + $0x1b8] sm:$0xff] %v1093
      %1158 = vst [vmem:[#allocation2 + $0x1c0] sm:$0xff] %v1094
      %1159 = vst [vmem:[#allocation2 + $0x1c8] sm:$0xff] %v1095
      %1160 = vst [vmem:[#allocation2 + $0x1d0] sm:$0xff] %v1096
      %1161 = vst [vmem:[#allocation2 + $0x1d8] sm:$0xff] %v1097
      %1162 = vst [vmem:[#allocation2 + $0x1e0] sm:$0xff] %v1098
      %1163 = vst [vmem:[#allocation2 + $0x1e8] sm:$0xff] %v1099
      %1164 = vst [vmem:[#allocation2 + $0x1f0] sm:$0xff] %v1100
      %1165 = vst [vmem:[#allocation2 + $0x1f8] sm:$0xff] %v1101
      // Predicated region
      $region33: #{generator_forward.8} parent=27 // pred_check
        %p1166 = pneg %p264
      $region34: #{generator_forward.8} parent=27 // pred_check_branch
        %1168 = sbr.rel (%p1166) target = $region36
      $region35: #{generator_forward.8} parent=27 // pred_region
        %v1169 = vld [vmem:[#allocation2] sm:$0xff]
        %v1170 = vld [vmem:[#allocation2 + $0x8] sm:$0xff]
        %v1171 = vld [vmem:[#allocation2 + $0x10] sm:$0xff]
        %v1172 = vld [vmem:[#allocation2 + $0x18] sm:$0xff]
        %v1173 = vld [vmem:[#allocation2 + $0x20] sm:$0xff]
        %v1174 = vld [vmem:[#allocation2 + $0x28] sm:$0xff]
        %v1175 = vld [vmem:[#allocation2 + $0x30] sm:$0xff]
        %v1176 = vld [vmem:[#allocation2 + $0x38] sm:$0xff]
        %v1177 = vld [vmem:[#allocation2 + $0x40] sm:$0xff]
        %v1178 = vld [vmem:[#allocation2 + $0x48] sm:$0xff]
        %v1179 = vld [vmem:[#allocation2 + $0x50] sm:$0xff]
        %v1180 = vld [vmem:[#allocation2 + $0x58] sm:$0xff]
        %v1181 = vld [vmem:[#allocation2 + $0x60] sm:$0xff]
        %v1182 = vld [vmem:[#allocation2 + $0x68] sm:$0xff]
        %v1183 = vld [vmem:[#allocation2 + $0x70] sm:$0xff]
        %v1184 = vld [vmem:[#allocation2 + $0x78] sm:$0xff]
        %v1185 = vld [vmem:[#allocation2 + $0x80] sm:$0xff]
        %v1186 = vld [vmem:[#allocation2 + $0x88] sm:$0xff]
        %v1187 = vld [vmem:[#allocation2 + $0x90] sm:$0xff]
        %v1188 = vld [vmem:[#allocation2 + $0x98] sm:$0xff]
        %v1189 = vld [vmem:[#allocation2 + $0xa0] sm:$0xff]
        %v1190 = vld [vmem:[#allocation2 + $0xa8] sm:$0xff]
        %v1191 = vld [vmem:[#allocation2 + $0xb0] sm:$0xff]
        %v1192 = vld [vmem:[#allocation2 + $0xb8] sm:$0xff]
        %v1193 = vld [vmem:[#allocation2 + $0xc0] sm:$0xff]
        %v1194 = vld [vmem:[#allocation2 + $0xc8] sm:$0xff]
        %v1195 = vld [vmem:[#allocation2 + $0xd0] sm:$0xff]
        %v1196 = vld [vmem:[#allocation2 + $0xd8] sm:$0xff]
        %v1197 = vld [vmem:[#allocation2 + $0xe0] sm:$0xff]
        %v1198 = vld [vmem:[#allocation2 + $0xe8] sm:$0xff]
        %v1199 = vld [vmem:[#allocation2 + $0xf0] sm:$0xff]
        %v1200 = vld [vmem:[#allocation2 + $0xf8] sm:$0xff]
        %v1201 = vld [vmem:[#allocation2 + $0x100] sm:$0xff]
        %v1202 = vld [vmem:[#allocation2 + $0x108] sm:$0xff]
        %v1203 = vld [vmem:[#allocation2 + $0x110] sm:$0xff]
        %v1204 = vld [vmem:[#allocation2 + $0x118] sm:$0xff]
        %v1205 = vld [vmem:[#allocation2 + $0x120] sm:$0xff]
        %v1206 = vld [vmem:[#allocation2 + $0x128] sm:$0xff]
        %v1207 = vld [vmem:[#allocation2 + $0x130] sm:$0xff]
        %v1208 = vld [vmem:[#allocation2 + $0x138] sm:$0xff]
        %v1209 = vld [vmem:[#allocation2 + $0x140] sm:$0xff]
        %v1210 = vld [vmem:[#allocation2 + $0x148] sm:$0xff]
        %v1211 = vld [vmem:[#allocation2 + $0x150] sm:$0xff]
        %v1212 = vld [vmem:[#allocation2 + $0x158] sm:$0xff]
        %v1213 = vld [vmem:[#allocation2 + $0x160] sm:$0xff]
        %v1214 = vld [vmem:[#allocation2 + $0x168] sm:$0xff]
        %v1215 = vld [vmem:[#allocation2 + $0x170] sm:$0xff]
        %v1216 = vld [vmem:[#allocation2 + $0x178] sm:$0xff]
        %v1217 = vld [vmem:[#allocation2 + $0x180] sm:$0xff]
        %v1218 = vld [vmem:[#allocation2 + $0x188] sm:$0xff]
        %v1219 = vld [vmem:[#allocation2 + $0x190] sm:$0xff]
        %v1220 = vld [vmem:[#allocation2 + $0x198] sm:$0xff]
        %v1221 = vld [vmem:[#allocation2 + $0x1a0] sm:$0xff]
        %v1222 = vld [vmem:[#allocation2 + $0x1a8] sm:$0xff]
        %v1223 = vld [vmem:[#allocation2 + $0x1b0] sm:$0xff]
        %v1224 = vld [vmem:[#allocation2 + $0x1b8] sm:$0xff]
        %v1225 = vld [vmem:[#allocation2 + $0x1c0] sm:$0xff]
        %v1226 = vld [vmem:[#allocation2 + $0x1c8] sm:$0xff]
        %v1227 = vld [vmem:[#allocation2 + $0x1d0] sm:$0xff]
        %v1228 = vld [vmem:[#allocation2 + $0x1d8] sm:$0xff]
        %v1229 = vld [vmem:[#allocation2 + $0x1e0] sm:$0xff]
        %v1230 = vld [vmem:[#allocation2 + $0x1e8] sm:$0xff]
        %v1231 = vld [vmem:[#allocation2 + $0x1f0] sm:$0xff]
        %v1232 = vld [vmem:[#allocation2 + $0x1f8] sm:$0xff]
        %v1233 = vmax.f32 %v1169, 0.0
        %v1234 = vmax.f32 %v1170, 0.0
        %v1235 = vmax.f32 %v1171, 0.0
        %v1236 = vmax.f32 %v1172, 0.0
        %v1237 = vmax.f32 %v1173, 0.0
        %v1238 = vmax.f32 %v1174, 0.0
        %v1239 = vmax.f32 %v1175, 0.0
        %v1240 = vmax.f32 %v1176, 0.0
        %v1241 = vmax.f32 %v1177, 0.0
        %v1242 = vmax.f32 %v1178, 0.0
        %v1243 = vmax.f32 %v1179, 0.0
        %v1244 = vmax.f32 %v1180, 0.0
        %v1245 = vmax.f32 %v1181, 0.0
        %v1246 = vmax.f32 %v1182, 0.0
        %v1247 = vmax.f32 %v1183, 0.0
        %v1248 = vmax.f32 %v1184, 0.0
        %v1249 = vmax.f32 %v1185, 0.0
        %v1250 = vmax.f32 %v1186, 0.0
        %v1251 = vmax.f32 %v1187, 0.0
        %v1252 = vmax.f32 %v1188, 0.0
        %v1253 = vmax.f32 %v1189, 0.0
        %v1254 = vmax.f32 %v1190, 0.0
        %v1255 = vmax.f32 %v1191, 0.0
        %v1256 = vmax.f32 %v1192, 0.0
        %v1257 = vmax.f32 %v1193, 0.0
        %v1258 = vmax.f32 %v1194, 0.0
        %v1259 = vmax.f32 %v1195, 0.0
        %v1260 = vmax.f32 %v1196, 0.0
        %v1261 = vmax.f32 %v1197, 0.0
        %v1262 = vmax.f32 %v1198, 0.0
        %v1263 = vmax.f32 %v1199, 0.0
        %v1264 = vmax.f32 %v1200, 0.0
        %v1265 = vmax.f32 %v1201, 0.0
        %v1266 = vmax.f32 %v1202, 0.0
        %v1267 = vmax.f32 %v1203, 0.0
        %v1268 = vmax.f32 %v1204, 0.0
        %v1269 = vmax.f32 %v1205, 0.0
        %v1270 = vmax.f32 %v1206, 0.0
        %v1271 = vmax.f32 %v1207, 0.0
        %v1272 = vmax.f32 %v1208, 0.0
        %v1273 = vmax.f32 %v1209, 0.0
        %v1274 = vmax.f32 %v1210, 0.0
        %v1275 = vmax.f32 %v1211, 0.0
        %v1276 = vmax.f32 %v1212, 0.0
        %v1277 = vmax.f32 %v1213, 0.0
        %v1278 = vmax.f32 %v1214, 0.0
        %v1279 = vmax.f32 %v1215, 0.0
        %v1280 = vmax.f32 %v1216, 0.0
        %v1281 = vmax.f32 %v1217, 0.0
        %v1282 = vmax.f32 %v1218, 0.0
        %v1283 = vmax.f32 %v1219, 0.0
        %v1284 = vmax.f32 %v1220, 0.0
        %v1285 = vmax.f32 %v1221, 0.0
        %v1286 = vmax.f32 %v1222, 0.0
        %v1287 = vmax.f32 %v1223, 0.0
        %v1288 = vmax.f32 %v1224, 0.0
        %v1289 = vmax.f32 %v1225, 0.0
        %v1290 = vmax.f32 %v1226, 0.0
        %v1291 = vmax.f32 %v1227, 0.0
        %v1292 = vmax.f32 %v1228, 0.0
        %v1293 = vmax.f32 %v1229, 0.0
        %v1294 = vmax.f32 %v1230, 0.0
        %v1295 = vmax.f32 %v1231, 0.0
        %v1296 = vmax.f32 %v1232, 0.0
        %v1297 = vpack.c.bf16 %v1234, %v1233
        %v1298 = vpack.c.bf16 %v1236, %v1235
        %v1299 = vpack.c.bf16 %v1238, %v1237
        %v1300 = vpack.c.bf16 %v1240, %v1239
        %v1301 = vpack.c.bf16 %v1242, %v1241
        %v1302 = vpack.c.bf16 %v1244, %v1243
        %v1303 = vpack.c.bf16 %v1246, %v1245
        %v1304 = vpack.c.bf16 %v1248, %v1247
        %v1305 = vpack.c.bf16 %v1250, %v1249
        %v1306 = vpack.c.bf16 %v1252, %v1251
        %v1307 = vpack.c.bf16 %v1254, %v1253
        %v1308 = vpack.c.bf16 %v1256, %v1255
        %v1309 = vpack.c.bf16 %v1258, %v1257
        %v1310 = vpack.c.bf16 %v1260, %v1259
        %v1311 = vpack.c.bf16 %v1262, %v1261
        %v1312 = vpack.c.bf16 %v1264, %v1263
        %v1313 = vpack.c.bf16 %v1266, %v1265
        %v1314 = vpack.c.bf16 %v1268, %v1267
        %v1315 = vpack.c.bf16 %v1270, %v1269
        %v1316 = vpack.c.bf16 %v1272, %v1271
        %v1317 = vpack.c.bf16 %v1274, %v1273
        %v1318 = vpack.c.bf16 %v1276, %v1275
        %v1319 = vpack.c.bf16 %v1278, %v1277
        %v1320 = vpack.c.bf16 %v1280, %v1279
        %v1321 = vpack.c.bf16 %v1282, %v1281
        %v1322 = vpack.c.bf16 %v1284, %v1283
        %v1323 = vpack.c.bf16 %v1286, %v1285
        %v1324 = vpack.c.bf16 %v1288, %v1287
        %v1325 = vpack.c.bf16 %v1290, %v1289
        %v1326 = vpack.c.bf16 %v1292, %v1291
        %v1327 = vpack.c.bf16 %v1294, %v1293
        %v1328 = vpack.c.bf16 %v1296, %v1295
        %v1361 = vunpack.c.l.b16 %v1297
        %v1362 = vunpack.c.h.b16 %v1297
        %v1363 = vunpack.c.l.b16 %v1298
        %v1364 = vunpack.c.h.b16 %v1298
        %v1365 = vunpack.c.l.b16 %v1299
        %v1366 = vunpack.c.h.b16 %v1299
        %v1367 = vunpack.c.l.b16 %v1300
        %v1368 = vunpack.c.h.b16 %v1300
        %v1369 = vunpack.c.l.b16 %v1301
        %v1370 = vunpack.c.h.b16 %v1301
        %v1371 = vunpack.c.l.b16 %v1302
        %v1372 = vunpack.c.h.b16 %v1302
        %v1373 = vunpack.c.l.b16 %v1303
        %v1374 = vunpack.c.h.b16 %v1303
        %v1375 = vunpack.c.l.b16 %v1304
        %v1376 = vunpack.c.h.b16 %v1304
        %v1377 = vunpack.c.l.b16 %v1305
        %v1378 = vunpack.c.h.b16 %v1305
        %v1379 = vunpack.c.l.b16 %v1306
        %v1380 = vunpack.c.h.b16 %v1306
        %v1381 = vunpack.c.l.b16 %v1307
        %v1382 = vunpack.c.h.b16 %v1307
        %v1383 = vunpack.c.l.b16 %v1308
        %v1384 = vunpack.c.h.b16 %v1308
        %v1385 = vunpack.c.l.b16 %v1309
        %v1386 = vunpack.c.h.b16 %v1309
        %v1387 = vunpack.c.l.b16 %v1310
        %v1388 = vunpack.c.h.b16 %v1310
        %v1389 = vunpack.c.l.b16 %v1311
        %v1390 = vunpack.c.h.b16 %v1311
        %v1391 = vunpack.c.l.b16 %v1312
        %v1392 = vunpack.c.h.b16 %v1312
        %v1393 = vunpack.c.l.b16 %v1313
        %v1394 = vunpack.c.h.b16 %v1313
        %v1395 = vunpack.c.l.b16 %v1314
        %v1396 = vunpack.c.h.b16 %v1314
        %v1397 = vunpack.c.l.b16 %v1315
        %v1398 = vunpack.c.h.b16 %v1315
        %v1399 = vunpack.c.l.b16 %v1316
        %v1400 = vunpack.c.h.b16 %v1316
        %v1401 = vunpack.c.l.b16 %v1317
        %v1402 = vunpack.c.h.b16 %v1317
        %v1403 = vunpack.c.l.b16 %v1318
        %v1404 = vunpack.c.h.b16 %v1318
        %v1405 = vunpack.c.l.b16 %v1319
        %v1406 = vunpack.c.h.b16 %v1319
        %v1407 = vunpack.c.l.b16 %v1320
        %v1408 = vunpack.c.h.b16 %v1320
        %v1409 = vunpack.c.l.b16 %v1321
        %v1410 = vunpack.c.h.b16 %v1321
        %v1411 = vunpack.c.l.b16 %v1322
        %v1412 = vunpack.c.h.b16 %v1322
        %v1413 = vunpack.c.l.b16 %v1323
        %v1414 = vunpack.c.h.b16 %v1323
        %v1415 = vunpack.c.l.b16 %v1324
        %v1416 = vunpack.c.h.b16 %v1324
        %v1417 = vunpack.c.l.b16 %v1325
        %v1418 = vunpack.c.h.b16 %v1325
        %v1419 = vunpack.c.l.b16 %v1326
        %v1420 = vunpack.c.h.b16 %v1326
        %v1421 = vunpack.c.l.b16 %v1327
        %v1422 = vunpack.c.h.b16 %v1327
        %v1423 = vunpack.c.l.b16 %v1328
        %v1424 = vunpack.c.h.b16 %v1328
        %v1425 = vpack.c.b16 %v1361, %v1361
        %v1426 = vpack.c.b16 %v1362, %v1362
        %v1427 = vpack.c.b16 %v1363, %v1363
        %v1428 = vpack.c.b16 %v1364, %v1364
        %v1429 = vpack.c.b16 %v1365, %v1365
        %v1430 = vpack.c.b16 %v1366, %v1366
        %v1431 = vpack.c.b16 %v1367, %v1367
        %v1432 = vpack.c.b16 %v1368, %v1368
        %v1433 = vpack.c.b16 %v1369, %v1369
        %v1434 = vpack.c.b16 %v1370, %v1370
        %v1435 = vpack.c.b16 %v1371, %v1371
        %v1436 = vpack.c.b16 %v1372, %v1372
        %v1437 = vpack.c.b16 %v1373, %v1373
        %v1438 = vpack.c.b16 %v1374, %v1374
        %v1439 = vpack.c.b16 %v1375, %v1375
        %v1440 = vpack.c.b16 %v1376, %v1376
        %v1441 = vpack.c.b16 %v1377, %v1377
        %v1442 = vpack.c.b16 %v1378, %v1378
        %v1443 = vpack.c.b16 %v1379, %v1379
        %v1444 = vpack.c.b16 %v1380, %v1380
        %v1445 = vpack.c.b16 %v1381, %v1381
        %v1446 = vpack.c.b16 %v1382, %v1382
        %v1447 = vpack.c.b16 %v1383, %v1383
        %v1448 = vpack.c.b16 %v1384, %v1384
        %v1449 = vpack.c.b16 %v1385, %v1385
        %v1450 = vpack.c.b16 %v1386, %v1386
        %v1451 = vpack.c.b16 %v1387, %v1387
        %v1452 = vpack.c.b16 %v1388, %v1388
        %v1453 = vpack.c.b16 %v1389, %v1389
        %v1454 = vpack.c.b16 %v1390, %v1390
        %v1455 = vpack.c.b16 %v1391, %v1391
        %v1456 = vpack.c.b16 %v1392, %v1392
        %v1457 = vpack.c.b16 %v1393, %v1393
        %v1458 = vpack.c.b16 %v1394, %v1394
        %v1459 = vpack.c.b16 %v1395, %v1395
        %v1460 = vpack.c.b16 %v1396, %v1396
        %v1461 = vpack.c.b16 %v1397, %v1397
        %v1462 = vpack.c.b16 %v1398, %v1398
        %v1463 = vpack.c.b16 %v1399, %v1399
        %v1464 = vpack.c.b16 %v1400, %v1400
        %v1465 = vpack.c.b16 %v1401, %v1401
        %v1466 = vpack.c.b16 %v1402, %v1402
        %v1467 = vpack.c.b16 %v1403, %v1403
        %v1468 = vpack.c.b16 %v1404, %v1404
        %v1469 = vpack.c.b16 %v1405, %v1405
        %v1470 = vpack.c.b16 %v1406, %v1406
        %v1471 = vpack.c.b16 %v1407, %v1407
        %v1472 = vpack.c.b16 %v1408, %v1408
        %v1473 = vpack.c.b16 %v1409, %v1409
        %v1474 = vpack.c.b16 %v1410, %v1410
        %v1475 = vpack.c.b16 %v1411, %v1411
        %v1476 = vpack.c.b16 %v1412, %v1412
        %v1477 = vpack.c.b16 %v1413, %v1413
        %v1478 = vpack.c.b16 %v1414, %v1414
        %v1479 = vpack.c.b16 %v1415, %v1415
        %v1480 = vpack.c.b16 %v1416, %v1416
        %v1481 = vpack.c.b16 %v1417, %v1417
        %v1482 = vpack.c.b16 %v1418, %v1418
        %v1483 = vpack.c.b16 %v1419, %v1419
        %v1484 = vpack.c.b16 %v1420, %v1420
        %v1485 = vpack.c.b16 %v1421, %v1421
        %v1486 = vpack.c.b16 %v1422, %v1422
        %v1487 = vpack.c.b16 %v1423, %v1423
        %v1488 = vpack.c.b16 %v1424, %v1424
        %1553 = vst [vmem:[%s261] sm:$0xf] %v1425
        %1554 = vst [vmem:[%s261 + $0x4] sm:$0xf] %v1426
        %1555 = vst [vmem:[%s261 + $0x8] sm:$0xf] %v1427
        %1556 = vst [vmem:[%s261 + $0xc] sm:$0xf] %v1428
        %1557 = vst [vmem:[%s261 + $0x10] sm:$0xf] %v1429
        %1558 = vst [vmem:[%s261 + $0x14] sm:$0xf] %v1430
        %1559 = vst [vmem:[%s261 + $0x18] sm:$0xf] %v1431
        %1560 = vst [vmem:[%s261 + $0x1c] sm:$0xf] %v1432
        %1561 = vst [vmem:[%s261 + $0x20] sm:$0xf] %v1433
        %1562 = vst [vmem:[%s261 + $0x24] sm:$0xf] %v1434
        %1563 = vst [vmem:[%s261 + $0x28] sm:$0xf] %v1435
        %1564 = vst [vmem:[%s261 + $0x2c] sm:$0xf] %v1436
        %1565 = vst [vmem:[%s261 + $0x30] sm:$0xf] %v1437
        %1566 = vst [vmem:[%s261 + $0x34] sm:$0xf] %v1438
        %1567 = vst [vmem:[%s261 + $0x38] sm:$0xf] %v1439
        %1568 = vst [vmem:[%s261 + $0x3c] sm:$0xf] %v1440
        %1569 = vst [vmem:[%s261 + $0x40] sm:$0xf] %v1441
        %1570 = vst [vmem:[%s261 + $0x44] sm:$0xf] %v1442
        %1571 = vst [vmem:[%s261 + $0x48] sm:$0xf] %v1443
        %1572 = vst [vmem:[%s261 + $0x4c] sm:$0xf] %v1444
        %1573 = vst [vmem:[%s261 + $0x50] sm:$0xf] %v1445
        %1574 = vst [vmem:[%s261 + $0x54] sm:$0xf] %v1446
        %1575 = vst [vmem:[%s261 + $0x58] sm:$0xf] %v1447
        %1576 = vst [vmem:[%s261 + $0x5c] sm:$0xf] %v1448
        %1577 = vst [vmem:[%s261 + $0x60] sm:$0xf] %v1449
        %1578 = vst [vmem:[%s261 + $0x64] sm:$0xf] %v1450
        %1579 = vst [vmem:[%s261 + $0x68] sm:$0xf] %v1451
        %1580 = vst [vmem:[%s261 + $0x6c] sm:$0xf] %v1452
        %1581 = vst [vmem:[%s261 + $0x70] sm:$0xf] %v1453
        %1582 = vst [vmem:[%s261 + $0x74] sm:$0xf] %v1454
        %1583 = vst [vmem:[%s261 + $0x78] sm:$0xf] %v1455
        %1584 = vst [vmem:[%s261 + $0x7c] sm:$0xf] %v1456
        %1585 = vst [vmem:[%s261 + $0x80] sm:$0xf] %v1457
        %1586 = vst [vmem:[%s261 + $0x84] sm:$0xf] %v1458
        %1587 = vst [vmem:[%s261 + $0x88] sm:$0xf] %v1459
        %1588 = vst [vmem:[%s261 + $0x8c] sm:$0xf] %v1460
        %1589 = vst [vmem:[%s261 + $0x90] sm:$0xf] %v1461
        %1590 = vst [vmem:[%s261 + $0x94] sm:$0xf] %v1462
        %1591 = vst [vmem:[%s261 + $0x98] sm:$0xf] %v1463
        %1592 = vst [vmem:[%s261 + $0x9c] sm:$0xf] %v1464
        %1593 = vst [vmem:[%s261 + $0xa0] sm:$0xf] %v1465
        %1594 = vst [vmem:[%s261 + $0xa4] sm:$0xf] %v1466
        %1595 = vst [vmem:[%s261 + $0xa8] sm:$0xf] %v1467
        %1596 = vst [vmem:[%s261 + $0xac] sm:$0xf] %v1468
        %1597 = vst [vmem:[%s261 + $0xb0] sm:$0xf] %v1469
        %1598 = vst [vmem:[%s261 + $0xb4] sm:$0xf] %v1470
        %1599 = vst [vmem:[%s261 + $0xb8] sm:$0xf] %v1471
        %1600 = vst [vmem:[%s261 + $0xbc] sm:$0xf] %v1472
        %1601 = vst [vmem:[%s261 + $0xc0] sm:$0xf] %v1473
        %1602 = vst [vmem:[%s261 + $0xc4] sm:$0xf] %v1474
        %1603 = vst [vmem:[%s261 + $0xc8] sm:$0xf] %v1475
        %1604 = vst [vmem:[%s261 + $0xcc] sm:$0xf] %v1476
        %1605 = vst [vmem:[%s261 + $0xd0] sm:$0xf] %v1477
        %1606 = vst [vmem:[%s261 + $0xd4] sm:$0xf] %v1478
        %1607 = vst [vmem:[%s261 + $0xd8] sm:$0xf] %v1479
        %1608 = vst [vmem:[%s261 + $0xdc] sm:$0xf] %v1480
        %1609 = vst [vmem:[%s261 + $0xe0] sm:$0xf] %v1481
        %1610 = vst [vmem:[%s261 + $0xe4] sm:$0xf] %v1482
        %1611 = vst [vmem:[%s261 + $0xe8] sm:$0xf] %v1483
        %1612 = vst [vmem:[%s261 + $0xec] sm:$0xf] %v1484
        %1613 = vst [vmem:[%s261 + $0xf0] sm:$0xf] %v1485
        %1614 = vst [vmem:[%s261 + $0xf4] sm:$0xf] %v1486
        %1615 = vst [vmem:[%s261 + $0xf8] sm:$0xf] %v1487
        %1616 = vst [vmem:[%s261 + $0xfc] sm:$0xf] %v1488
      $region36: #{generator_forward.8} parent=27 // pred_fallthru
        _
      %s1617 = smul.u32 64, %s20
      %p1618 = scmp.lt.s32.totalorder %s19, 3
      %s1619 = scalar_select %p1618, %s19, 3
      %p1620 = scmp.lt.s32.totalorder %s1617, 63
      %s1621 = scalar_select %p1620, %s1617, 63
      %p1622 = scmp.lt.s32.totalorder %s21, 0
      %s1623 = scalar_select %p1622, %s21, 0
      %s1624 = sadd.s32 %s1623, %s1621
      %s1625 = smul.addr %s1619, 64
      %s1626 = sadd.s32 %s1624, %s1625
      %s1627 = smul.addr %s1626, 4
      %s1628 = scalar_lea.vmem %s2, %s1627
      // Predicated region
      $region37: #{generator_forward.8} parent=27 // pred_check
        %p1629 = pneg %p121
      $region38: #{generator_forward.8} parent=27 // pred_check_branch
        %1631 = sbr.rel (%p1629) target = $region40
      $region39: #{generator_forward.8} parent=27 // pred_region
        %s1632 = smul.u32 64, %s20
      $region40: #{generator_forward.8} parent=27 // pred_fallthru
        _
    $region28: #{generator_forward.8} parent=5 // pred_fallthru
      _
    %p1633 = scmp.le.s32.totalorder 2, %s8
    // Predicated region
    $region41: #{generator_forward.8} parent=5 // pred_check
      %p1634 = pneg %p1633
    $region42: #{generator_forward.8} parent=5 // pred_check_branch
      %1636 = sbr.rel (%p1634) target = $region44
    $region43: #{generator_forward.8} parent=5 // pred_region
      %s1637 = ssub.s32 %s8, 2
      // Predicated region
      $region45: #{generator_forward.8} parent=43 // pred_check
        %p1638 = pneg %p127
      $region46: #{generator_forward.8} parent=43 // pred_check_branch
        %1640 = sbr.rel (%p1638) target = $region48
      $region47: #{generator_forward.8} parent=43 // pred_region
        %s1641 = smul.u32 64, %s24
        %p1642 = scmp.lt.s32.totalorder %s23, 3
        %s1643 = scalar_select %p1642, %s23, 3
        %p1644 = scmp.lt.s32.totalorder %s1641, 63
        %s1645 = scalar_select %p1644, %s1641, 63
        %p1646 = scmp.lt.s32.totalorder %s25, 0
        %s1647 = scalar_select %p1646, %s25, 0
        %s1648 = sadd.s32 %s1647, %s1645
        %s1649 = smul.addr %s1643, 64
        %s1650 = sadd.s32 %s1648, %s1649
        %s1651 = smul.addr %s1650, 4
        %s1652 = scalar_lea.vmem %s2, %s1651
      $region48: #{generator_forward.8} parent=43 // pred_fallthru
        _
    $region44: #{generator_forward.8} parent=5 // pred_fallthru
      _
  $region6: #{generator_forward.8} parent=0 // loop_footer
    %s12 = sadd.s32 1, %s8
  $region7: #{generator_forward.8} parent=0 // loop_footer_branch
    %7 = sbr.rel target = $region3
  $region8: #{generator_forward.8} parent=0 // loop_exit
    _

// kernel: generator_forward.9
$region0: #{generator_forward.9}
  #allocation0 [shape = 'u32[]', space=smem, size = 0x4, offset = 0x4, fixed_abs, tag = 'smem constant byte address 0x4 - core index']
  #allocation1 [shape = 'u32[144,128]{1,0:T(1,128)}', space=vmem, size = 0x12000, scoped, tag = 'internal scratch']
  #allocation2 [shape = 'f32[512,128]{1,0:T(8,128)}', space=vmem, size = 0x40000, scoped, tag = 'scratch operand']
  %s0 = inlined_call_operand.vmem [shape: bf16[4,2048,32], index: 0, kind: input, shape index: {}]
  %s1 = inlined_call_operand.vmem [shape: bf16[4,32,128], index: 1, kind: input, shape index: {}]
  %s2 = inlined_call_operand.vmem [shape: f32[1,128], index: 2, kind: input, shape index: {}]
  %s3 = inlined_call_operand.vmem [shape: f32[4,2048,128], index: 3, kind: output, shape index: {}]
  %s4 = sld [smem:[#allocation0]]
  $region53: #{generator_forward.9} parent=0
    _
  %s6 = ssub.s32 1, %s4
  %s7 = scalar_select 0, %s6, %s4
  loop: start=0, step=1, limit=18
  $region2: #{generator_forward.9} parent=0 // loop_pre_header
    _
  $region3: #{generator_forward.9} parent=0 // loop_header
    %s9 = sphi 0, %s13
    %p10 = scmp.ge.s32.totalorder %s9, 18
    %s16 = sphi 0, %s42
    %s17 = sphi 0, %s38
    %s18 = sphi 0, %s34
    %s19 = sphi 0, %s30
    %s20 = sphi 0, %s16
    %s21 = sphi 0, %s17
    %s22 = sphi 0, %s18
    %s23 = sphi 0, %s19
    %s24 = sphi 0, %s20
    %s25 = sphi 0, %s21
    %s26 = sphi 0, %s22
    %s27 = sphi 0, %s23
    %s49 = sphi 0, %s51
    %s52 = sphi 0, %s49
    %s53 = sphi 0, %s52
    %s69 = sphi 0, %s53
    %s79 = sphi 0, %s81
    %s82 = sphi 0, %s79
    %s83 = sphi 0, %s82
    %s99 = sphi 0, %s83
    %s105 = sphi 0, %s107
    %s108 = sphi 0, %s105
    %s109 = sphi 0, %s108
    %s125 = sphi 0, %s109
    %s135 = sphi 0, %s137
    %s138 = sphi 0, %s135
    %s139 = sphi 0, %s138
    %s155 = sphi 0, %s139
  $region4: #{generator_forward.9} parent=0 // loop_header_branch
    %12 = sbr.rel (%p10) target = $region8
  $region5: #{generator_forward.9} parent=0 // loop_body
    %s14 = ssub.s32 %s9, 1
    %s15 = ssub.s32 %s9, 2
    %s28 = sadd.s32 1, %s19
    %p29 = scmp.ge.s32.totalorder %s28, 1
    %s30 = scalar_select %p29, 0, %s28
    %s31 = sadd.s32 1, %s18
    %s32 = scalar_select %p29, %s31, %s18
    %p33 = scmp.ge.s32.totalorder %s32, 1
    %s34 = scalar_select %p33, 0, %s32
    %s35 = sadd.s32 1, %s17
    %s36 = scalar_select %p33, %s35, %s17
    %p37 = scmp.ge.s32.totalorder %s36, 4
    %s38 = scalar_select %p37, 0, %s36
    %s39 = sadd.s32 1, %s16
    %s40 = scalar_select %p37, %s39, %s16
    %p41 = scmp.ge.s32.totalorder %s40, 4
    %s42 = scalar_select %p41, 0, %s40
    %s43 = ssub.s32 %s16, %s42
    %s44 = ssub.s32 %s17, %s38
    %s45 = sor.u32 %s43, %s44
    %s46 = ssub.s32 %s19, %s30
    %s47 = sor.u32 %s45, %s46
    %p48 = scmp.eq.s32.totalorder %s47, 0
    %s50 = sadd.s32 %s49, 1
    %s51 = scalar_select %p48, %s49, %s50
    %p54 = pneg %p48
    %p55 = scmp.eq.s32.totalorder %s9, 15
    %p56 = por %p54, %p55
    %p57 = scmp.ne.s32.totalorder %s49, %s52
    %p58 = scmp.eq.s32.totalorder %s9, 0
    %p59 = por %p57, %p58
    %p60 = scmp.ne.s32.totalorder %s49, %s52
    %p61 = scmp.eq.s32.totalorder %s14, 15
    %p62 = por %p60, %p61
    %p63 = scmp.ne.s32.totalorder %s52, %s53
    %p64 = scmp.eq.s32.totalorder %s14, 0
    %p65 = por %p63, %p64
    %p66 = scmp.ne.s32.totalorder %s52, %s53
    %p67 = scmp.eq.s32.totalorder %s15, 15
    %p68 = por %p66, %p67
    %p70 = scmp.ne.s32.totalorder %s53, %s69
    %p71 = scmp.eq.s32.totalorder %s15, 0
    %p72 = por %p70, %p71
    %s73 = ssub.s32 %s16, %s42
    %s74 = ssub.s32 %s19, %s30
    %s75 = sor.u32 %s73, %s74
    %s76 = ssub.s32 %s18, %s34
    %s77 = sor.u32 %s75, %s76
    %p78 = scmp.eq.s32.totalorder %s77, 0
    %s80 = sadd.s32 %s79, 1
    %s81 = scalar_select %p78, %s79, %s80
    %p84 = pneg %p78
    %p85 = scmp.eq.s32.totalorder %s9, 15
    %p86 = por %p84, %p85
    %p87 = scmp.ne.s32.totalorder %s79, %s82
    %p88 = scmp.eq.s32.totalorder %s9, 0
    %p89 = por %p87, %p88
    %p90 = scmp.ne.s32.totalorder %s79, %s82
    %p91 = scmp.eq.s32.totalorder %s14, 15
    %p92 = por %p90, %p91
    %p93 = scmp.ne.s32.totalorder %s82, %s83
    %p94 = scmp.eq.s32.totalorder %s14, 0
    %p95 = por %p93, %p94
    %p96 = scmp.ne.s32.totalorder %s82, %s83
    %p97 = scmp.eq.s32.totalorder %s15, 15
    %p98 = por %p96, %p97
    %p100 = scmp.ne.s32.totalorder %s83, %s99
    %p101 = scmp.eq.s32.totalorder %s15, 0
    %p102 = por %p100, %p101
    %s103 = ssub.s32 %s18, %s34
    %p104 = scmp.eq.s32.totalorder %s103, 0
    %s106 = sadd.s32 %s105, 1
    %s107 = scalar_select %p104, %s105, %s106
    %p110 = pneg %p104
    %p111 = scmp.eq.s32.totalorder %s9, 15
    %p112 = por %p110, %p111
    %p113 = scmp.ne.s32.totalorder %s105, %s108
    %p114 = scmp.eq.s32.totalorder %s9, 0
    %p115 = por %p113, %p114
    %p116 = scmp.ne.s32.totalorder %s105, %s108
    %p117 = scmp.eq.s32.totalorder %s14, 15
    %p118 = por %p116, %p117
    %p119 = scmp.ne.s32.totalorder %s108, %s109
    %p120 = scmp.eq.s32.totalorder %s14, 0
    %p121 = por %p119, %p120
    %p122 = scmp.ne.s32.totalorder %s108, %s109
    %p123 = scmp.eq.s32.totalorder %s15, 15
    %p124 = por %p122, %p123
    %p126 = scmp.ne.s32.totalorder %s109, %s125
    %p127 = scmp.eq.s32.totalorder %s15, 0
    %p128 = por %p126, %p127
    %s129 = ssub.s32 %s16, %s42
    %s130 = ssub.s32 %s17, %s38
    %s131 = sor.u32 %s129, %s130
    %s132 = ssub.s32 %s18, %s34
    %s133 = sor.u32 %s131, %s132
    %p134 = scmp.eq.s32.totalorder %s133, 0
    %s136 = sadd.s32 %s135, 1
    %s137 = scalar_select %p134, %s135, %s136
    %p140 = pneg %p134
    %p141 = scmp.eq.s32.totalorder %s9, 15
    %p142 = por %p140, %p141
    %p143 = scmp.ne.s32.totalorder %s135, %s138
    %p144 = scmp.eq.s32.totalorder %s9, 0
    %p145 = por %p143, %p144
    %p146 = scmp.ne.s32.totalorder %s135, %s138
    %p147 = scmp.eq.s32.totalorder %s14, 15
    %p148 = por %p146, %p147
    %p149 = scmp.ne.s32.totalorder %s138, %s139
    %p150 = scmp.eq.s32.totalorder %s14, 0
    %p151 = por %p149, %p150
    %p152 = scmp.ne.s32.totalorder %s138, %s139
    %p153 = scmp.eq.s32.totalorder %s15, 15
    %p154 = por %p152, %p153
    %p156 = scmp.ne.s32.totalorder %s139, %s155
    %p157 = scmp.eq.s32.totalorder %s15, 0
    %p158 = por %p156, %p157
    %p159 = scmp.le.s32.totalorder 1, %s9
    %p160 = scmp.lt.s32.totalorder %s9, 17
    %p161 = pnand %p159, %p160
    %p162 = pneg %p161
    // Predicated region
    $region9: #{generator_forward.9} parent=5 // pred_check
      _
    $region10: #{generator_forward.9} parent=5 // pred_check_branch
      %164 = sbr.rel (%p161) target = $region12
    $region11: #{generator_forward.9} parent=5 // pred_region
      %s165 = ssub.s32 %s9, 1
      // Predicated region
      $region13: #{generator_forward.9} parent=11 // pred_check
        %p166 = pneg %p121
      $region14: #{generator_forward.9} parent=11 // pred_check_branch
        %168 = sbr.rel (%p166) target = $region16
      $region15: #{generator_forward.9} parent=11 // pred_region
        %p169 = scmp.lt.s32.totalorder %s22, 0
        %s170 = scalar_select %p169, %s22, 0
        %s171 = scalar_lea.vmem %s2, %s170
      $region16: #{generator_forward.9} parent=11 // pred_fallthru
        _
    $region12: #{generator_forward.9} parent=5 // pred_fallthru
      _
    %p172 = scmp.lt.s32.totalorder %s9, 16
    // Predicated region
    $region17: #{generator_forward.9} parent=5 // pred_check
      %p173 = pneg %p172
    $region18: #{generator_forward.9} parent=5 // pred_check_branch
      %175 = sbr.rel (%p173) target = $region20
    $region19: #{generator_forward.9} parent=5 // pred_region
      // Predicated region
      $region21: #{generator_forward.9} parent=19 // pred_check
        %p176 = pneg %p59
      $region22: #{generator_forward.9} parent=19 // pred_check_branch
        %178 = sbr.rel (%p176) target = $region24
      $region23: #{generator_forward.9} parent=19 // pred_region
        %s179 = smul.u32 64, %s17
        %p180 = scmp.lt.s32.totalorder %s16, 3
        %s181 = scalar_select %p180, %s16, 3
        %p182 = scmp.lt.s32.totalorder %s179, 255
        %s183 = scalar_select %p182, %s179, 255
        %p184 = scmp.lt.s32.totalorder %s19, 0
        %s185 = scalar_select %p184, %s19, 0
        %s186 = sadd.s32 %s185, %s183
        %s187 = smul.addr %s181, 256
        %s188 = sadd.s32 %s186, %s187
        %s189 = smul.addr %s188, 4
        %s190 = scalar_lea.vmem %s0, %s189
        %s191 = smul.u32 64, %s17
      $region24: #{generator_forward.9} parent=19 // pred_fallthru
        _
      // Predicated region
      $region25: #{generator_forward.9} parent=19 // pred_check
        %p192 = pneg %p89
      $region26: #{generator_forward.9} parent=19 // pred_check_branch
        %194 = sbr.rel (%p192) target = $region28
      $region27: #{generator_forward.9} parent=19 // pred_region
        %s195 = smul.u32 4, %s19
        %p196 = scmp.lt.s32.totalorder %s16, 3
        %s197 = scalar_select %p196, %s16, 3
        %p198 = scmp.lt.s32.totalorder %s195, 3
        %s199 = scalar_select %p198, %s195, 3
        %p200 = scmp.lt.s32.totalorder %s18, 0
        %s201 = scalar_select %p200, %s18, 0
        %s202 = sadd.s32 %s201, %s199
        %s203 = smul.addr %s197, 4
        %s204 = sadd.s32 %s202, %s203
        %s205 = smul.addr %s204, 4
        %s206 = scalar_lea.vmem %s1, %s205
        %s207 = smul.u32 4, %s19
      $region28: #{generator_forward.9} parent=19 // pred_fallthru
        _
    $region20: #{generator_forward.9} parent=5 // pred_fallthru
      _
    %p208 = scmp.le.s32.totalorder 1, %s9
    %p209 = scmp.lt.s32.totalorder %s9, 17
    %p210 = pnand %p208, %p209
    %p211 = pneg %p210
    // Predicated region
    $region29: #{generator_forward.9} parent=5 // pred_check
      _
    $region30: #{generator_forward.9} parent=5 // pred_check_branch
      %213 = sbr.rel (%p210) target = $region32
    $region31: #{generator_forward.9} parent=5 // pred_region
      %s214 = ssub.s32 %s9, 1
      %s215 = smul.u32 64, %s21
      %p216 = scmp.lt.s32.totalorder %s20, 3
      %s217 = scalar_select %p216, %s20, 3
      %p218 = scmp.lt.s32.totalorder %s215, 255
      %s219 = scalar_select %p218, %s215, 255
      %p220 = scmp.lt.s32.totalorder %s23, 0
      %s221 = scalar_select %p220, %s23, 0
      %s222 = sadd.s32 %s221, %s219
      %s223 = smul.addr %s217, 256
      %s224 = sadd.s32 %s222, %s223
      %s225 = smul.addr %s224, 4
      %s226 = scalar_lea.vmem %s0, %s225
      %p227 = pneg %p65
      %p228 = pneg %p62
      %s229 = smul.u32 4, %s23
      %p230 = scmp.lt.s32.totalorder %s20, 3
      %s231 = scalar_select %p230, %s20, 3
      %p232 = scmp.lt.s32.totalorder %s229, 3
      %s233 = scalar_select %p232, %s229, 3
      %p234 = scmp.lt.s32.totalorder %s22, 0
      %s235 = scalar_select %p234, %s22, 0
      %s236 = sadd.s32 %s235, %s233
      %s237 = smul.addr %s231, 4
      %s238 = sadd.s32 %s236, %s237
      %s239 = smul.addr %s238, 4
      %s240 = scalar_lea.vmem %s1, %s239
      %p241 = pneg %p95
      %p242 = pneg %p92
      %p243 = scmp.lt.s32.totalorder %s22, 0
      %s244 = scalar_select %p243, %s22, 0
      %s245 = scalar_lea.vmem %s2, %s244
      %p246 = pneg %p121
      %p247 = pneg %p118
      %p248 = pneg %p151
      %p249 = pneg %p148
      %s250 = smul.u32 64, %s21
      %p251 = scmp.lt.s32.totalorder %s20, 3
      %s252 = scalar_select %p251, %s20, 3
      %p253 = scmp.lt.s32.totalorder %s250, 255
      %s254 = scalar_select %p253, %s250, 255
      %p255 = scmp.lt.s32.totalorder %s22, 0
      %s256 = scalar_select %p255, %s22, 0
      %s257 = sadd.s32 %s256, %s254
      %s258 = smul.addr %s252, 256
      %s259 = sadd.s32 %s257, %s258
      %s260 = smul.addr %s259, 8
      %s261 = scalar_lea.vmem %s3, %s260
      %s262 = smul.u32 64, %s21
      %p263 = scmp.lt.s32.totalorder %s20, 3
      %s264 = scalar_select %p263, %s20, 3
      %p265 = scmp.lt.s32.totalorder %s262, 255
      %s266 = scalar_select %p265, %s262, 255
      %p267 = scmp.lt.s32.totalorder %s23, 0
      %s268 = scalar_select %p267, %s23, 0
      %s269 = sadd.s32 %s268, %s266
      %s270 = smul.addr %s264, 256
      %s271 = sadd.s32 %s269, %s270
      %s272 = smul.addr %s271, 4
      %s273 = scalar_lea.vmem %s0, %s272
      %s274 = smul.u32 64, %s21
      %s275 = smul.u32 4, %s23
      %p276 = scmp.lt.s32.totalorder %s20, 3
      %s277 = scalar_select %p276, %s20, 3
      %p278 = scmp.lt.s32.totalorder %s275, 3
      %s279 = scalar_select %p278, %s275, 3
      %p280 = scmp.lt.s32.totalorder %s22, 0
      %s281 = scalar_select %p280, %s22, 0
      %s282 = sadd.s32 %s281, %s279
      %s283 = smul.addr %s277, 4
      %s284 = sadd.s32 %s282, %s283
      %s285 = smul.addr %s284, 4
      %s286 = scalar_lea.vmem %s1, %s285
      %s287 = smul.u32 4, %s23
      %p288 = scmp.lt.s32.totalorder %s22, 0
      %s289 = scalar_select %p288, %s22, 0
      %s290 = scalar_lea.vmem %s2, %s289
      %s291 = smul.u32 64, %s21
      %p292 = scmp.lt.s32.totalorder %s20, 3
      %s293 = scalar_select %p292, %s20, 3
      %p294 = scmp.lt.s32.totalorder %s291, 255
      %s295 = scalar_select %p294, %s291, 255
      %p296 = scmp.lt.s32.totalorder %s22, 0
      %s297 = scalar_select %p296, %s22, 0
      %s298 = sadd.s32 %s297, %s295
      %s299 = smul.addr %s293, 256
      %s300 = sadd.s32 %s298, %s299
      %s301 = smul.addr %s300, 8
      %s302 = scalar_lea.vmem %s3, %s301
      %s303 = smul.u32 64, %s21
      %p305 = scmp.eq.s32.totalorder %s23, 0
      // Predicated region
      $region33: #{generator_forward.9} parent=31 // pred_check
        %p306 = pneg %p305
      $region34: #{generator_forward.9} parent=31 // pred_check_branch
        %308 = sbr.rel (%p306) target = $region36
      $region35: #{generator_forward.9} parent=31 // pred_region
        %309 = vst [vmem:[#allocation2] sm:$0xff] 0.0
        %310 = vst [vmem:[#allocation2 + $0x8] sm:$0xff] 0.0
        %311 = vst [vmem:[#allocation2 + $0x10] sm:$0xff] 0.0
        %312 = vst [vmem:[#allocation2 + $0x18] sm:$0xff] 0.0
        %313 = vst [vmem:[#allocation2 + $0x20] sm:$0xff] 0.0
        %314 = vst [vmem:[#allocation2 + $0x28] sm:$0xff] 0.0
        %315 = vst [vmem:[#allocation2 + $0x30] sm:$0xff] 0.0
        %316 = vst [vmem:[#allocation2 + $0x38] sm:$0xff] 0.0
        %317 = vst [vmem:[#allocation2 + $0x40] sm:$0xff] 0.0
        %318 = vst [vmem:[#allocation2 + $0x48] sm:$0xff] 0.0
        %319 = vst [vmem:[#allocation2 + $0x50] sm:$0xff] 0.0
        %320 = vst [vmem:[#allocation2 + $0x58] sm:$0xff] 0.0
        %321 = vst [vmem:[#allocation2 + $0x60] sm:$0xff] 0.0
        %322 = vst [vmem:[#allocation2 + $0x68] sm:$0xff] 0.0
        %323 = vst [vmem:[#allocation2 + $0x70] sm:$0xff] 0.0
        %324 = vst [vmem:[#allocation2 + $0x78] sm:$0xff] 0.0
        %325 = vst [vmem:[#allocation2 + $0x80] sm:$0xff] 0.0
        %326 = vst [vmem:[#allocation2 + $0x88] sm:$0xff] 0.0
        %327 = vst [vmem:[#allocation2 + $0x90] sm:$0xff] 0.0
        %328 = vst [vmem:[#allocation2 + $0x98] sm:$0xff] 0.0
        %329 = vst [vmem:[#allocation2 + $0xa0] sm:$0xff] 0.0
        %330 = vst [vmem:[#allocation2 + $0xa8] sm:$0xff] 0.0
        %331 = vst [vmem:[#allocation2 + $0xb0] sm:$0xff] 0.0
        %332 = vst [vmem:[#allocation2 + $0xb8] sm:$0xff] 0.0
        %333 = vst [vmem:[#allocation2 + $0xc0] sm:$0xff] 0.0
        %334 = vst [vmem:[#allocation2 + $0xc8] sm:$0xff] 0.0
        %335 = vst [vmem:[#allocation2 + $0xd0] sm:$0xff] 0.0
        %336 = vst [vmem:[#allocation2 + $0xd8] sm:$0xff] 0.0
        %337 = vst [vmem:[#allocation2 + $0xe0] sm:$0xff] 0.0
        %338 = vst [vmem:[#allocation2 + $0xe8] sm:$0xff] 0.0
        %339 = vst [vmem:[#allocation2 + $0xf0] sm:$0xff] 0.0
        %340 = vst [vmem:[#allocation2 + $0xf8] sm:$0xff] 0.0
        %341 = vst [vmem:[#allocation2 + $0x100] sm:$0xff] 0.0
        %342 = vst [vmem:[#allocation2 + $0x108] sm:$0xff] 0.0
        %343 = vst [vmem:[#allocation2 + $0x110] sm:$0xff] 0.0
        %344 = vst [vmem:[#allocation2 + $0x118] sm:$0xff] 0.0
        %345 = vst [vmem:[#allocation2 + $0x120] sm:$0xff] 0.0
        %346 = vst [vmem:[#allocation2 + $0x128] sm:$0xff] 0.0
        %347 = vst [vmem:[#allocation2 + $0x130] sm:$0xff] 0.0
        %348 = vst [vmem:[#allocation2 + $0x138] sm:$0xff] 0.0
        %349 = vst [vmem:[#allocation2 + $0x140] sm:$0xff] 0.0
        %350 = vst [vmem:[#allocation2 + $0x148] sm:$0xff] 0.0
        %351 = vst [vmem:[#allocation2 + $0x150] sm:$0xff] 0.0
        %352 = vst [vmem:[#allocation2 + $0x158] sm:$0xff] 0.0
        %353 = vst [vmem:[#allocation2 + $0x160] sm:$0xff] 0.0
        %354 = vst [vmem:[#allocation2 + $0x168] sm:$0xff] 0.0
        %355 = vst [vmem:[#allocation2 + $0x170] sm:$0xff] 0.0
        %356 = vst [vmem:[#allocation2 + $0x178] sm:$0xff] 0.0
        %357 = vst [vmem:[#allocation2 + $0x180] sm:$0xff] 0.0
        %358 = vst [vmem:[#allocation2 + $0x188] sm:$0xff] 0.0
        %359 = vst [vmem:[#allocation2 + $0x190] sm:$0xff] 0.0
        %360 = vst [vmem:[#allocation2 + $0x198] sm:$0xff] 0.0
        %361 = vst [vmem:[#allocation2 + $0x1a0] sm:$0xff] 0.0
        %362 = vst [vmem:[#allocation2 + $0x1a8] sm:$0xff] 0.0
        %363 = vst [vmem:[#allocation2 + $0x1b0] sm:$0xff] 0.0
        %364 = vst [vmem:[#allocation2 + $0x1b8] sm:$0xff] 0.0
        %365 = vst [vmem:[#allocation2 + $0x1c0] sm:$0xff] 0.0
        %366 = vst [vmem:[#allocation2 + $0x1c8] sm:$0xff] 0.0
        %367 = vst [vmem:[#allocation2 + $0x1d0] sm:$0xff] 0.0
        %368 = vst [vmem:[#allocation2 + $0x1d8] sm:$0xff] 0.0
        %369 = vst [vmem:[#allocation2 + $0x1e0] sm:$0xff] 0.0
        %370 = vst [vmem:[#allocation2 + $0x1e8] sm:$0xff] 0.0
        %371 = vst [vmem:[#allocation2 + $0x1f0] sm:$0xff] 0.0
        %372 = vst [vmem:[#allocation2 + $0x1f8] sm:$0xff] 0.0
      $region36: #{generator_forward.9} parent=31 // pred_fallthru
        _
      %v373 = vld [vmem:[#allocation2] sm:$0xff]
      %v374 = vld [vmem:[#allocation2 + $0x8] sm:$0xff]
      %v375 = vld [vmem:[#allocation2 + $0x10] sm:$0xff]
      %v376 = vld [vmem:[#allocation2 + $0x18] sm:$0xff]
      %v377 = vld [vmem:[#allocation2 + $0x20] sm:$0xff]
      %v378 = vld [vmem:[#allocation2 + $0x28] sm:$0xff]
      %v379 = vld [vmem:[#allocation2 + $0x30] sm:$0xff]
      %v380 = vld [vmem:[#allocation2 + $0x38] sm:$0xff]
      %v381 = vld [vmem:[#allocation2 + $0x40] sm:$0xff]
      %v382 = vld [vmem:[#allocation2 + $0x48] sm:$0xff]
      %v383 = vld [vmem:[#allocation2 + $0x50] sm:$0xff]
      %v384 = vld [vmem:[#allocation2 + $0x58] sm:$0xff]
      %v385 = vld [vmem:[#allocation2 + $0x60] sm:$0xff]
      %v386 = vld [vmem:[#allocation2 + $0x68] sm:$0xff]
      %v387 = vld [vmem:[#allocation2 + $0x70] sm:$0xff]
      %v388 = vld [vmem:[#allocation2 + $0x78] sm:$0xff]
      %v389 = vld [vmem:[#allocation2 + $0x80] sm:$0xff]
      %v390 = vld [vmem:[#allocation2 + $0x88] sm:$0xff]
      %v391 = vld [vmem:[#allocation2 + $0x90] sm:$0xff]
      %v392 = vld [vmem:[#allocation2 + $0x98] sm:$0xff]
      %v393 = vld [vmem:[#allocation2 + $0xa0] sm:$0xff]
      %v394 = vld [vmem:[#allocation2 + $0xa8] sm:$0xff]
      %v395 = vld [vmem:[#allocation2 + $0xb0] sm:$0xff]
      %v396 = vld [vmem:[#allocation2 + $0xb8] sm:$0xff]
      %v397 = vld [vmem:[#allocation2 + $0xc0] sm:$0xff]
      %v398 = vld [vmem:[#allocation2 + $0xc8] sm:$0xff]
      %v399 = vld [vmem:[#allocation2 + $0xd0] sm:$0xff]
      %v400 = vld [vmem:[#allocation2 + $0xd8] sm:$0xff]
      %v401 = vld [vmem:[#allocation2 + $0xe0] sm:$0xff]
      %v402 = vld [vmem:[#allocation2 + $0xe8] sm:$0xff]
      %v403 = vld [vmem:[#allocation2 + $0xf0] sm:$0xff]
      %v404 = vld [vmem:[#allocation2 + $0xf8] sm:$0xff]
      %v405 = vld [vmem:[#allocation2 + $0x100] sm:$0xff]
      %v406 = vld [vmem:[#allocation2 + $0x108] sm:$0xff]
      %v407 = vld [vmem:[#allocation2 + $0x110] sm:$0xff]
      %v408 = vld [vmem:[#allocation2 + $0x118] sm:$0xff]
      %v409 = vld [vmem:[#allocation2 + $0x120] sm:$0xff]
      %v410 = vld [vmem:[#allocation2 + $0x128] sm:$0xff]
      %v411 = vld [vmem:[#allocation2 + $0x130] sm:$0xff]
      %v412 = vld [vmem:[#allocation2 + $0x138] sm:$0xff]
      %v413 = vld [vmem:[#allocation2 + $0x140] sm:$0xff]
      %v414 = vld [vmem:[#allocation2 + $0x148] sm:$0xff]
      %v415 = vld [vmem:[#allocation2 + $0x150] sm:$0xff]
      %v416 = vld [vmem:[#allocation2 + $0x158] sm:$0xff]
      %v417 = vld [vmem:[#allocation2 + $0x160] sm:$0xff]
      %v418 = vld [vmem:[#allocation2 + $0x168] sm:$0xff]
      %v419 = vld [vmem:[#allocation2 + $0x170] sm:$0xff]
      %v420 = vld [vmem:[#allocation2 + $0x178] sm:$0xff]
      %v421 = vld [vmem:[#allocation2 + $0x180] sm:$0xff]
      %v422 = vld [vmem:[#allocation2 + $0x188] sm:$0xff]
      %v423 = vld [vmem:[#allocation2 + $0x190] sm:$0xff]
      %v424 = vld [vmem:[#allocation2 + $0x198] sm:$0xff]
      %v425 = vld [vmem:[#allocation2 + $0x1a0] sm:$0xff]
      %v426 = vld [vmem:[#allocation2 + $0x1a8] sm:$0xff]
      %v427 = vld [vmem:[#allocation2 + $0x1b0] sm:$0xff]
      %v428 = vld [vmem:[#allocation2 + $0x1b8] sm:$0xff]
      %v429 = vld [vmem:[#allocation2 + $0x1c0] sm:$0xff]
      %v430 = vld [vmem:[#allocation2 + $0x1c8] sm:$0xff]
      %v431 = vld [vmem:[#allocation2 + $0x1d0] sm:$0xff]
      %v432 = vld [vmem:[#allocation2 + $0x1d8] sm:$0xff]
      %v433 = vld [vmem:[#allocation2 + $0x1e0] sm:$0xff]
      %v434 = vld [vmem:[#allocation2 + $0x1e8] sm:$0xff]
      %v435 = vld [vmem:[#allocation2 + $0x1f0] sm:$0xff]
      %v436 = vld [vmem:[#allocation2 + $0x1f8] sm:$0xff]
      %v437 = vld [vmem:[%s273] sm:$0xf]
      %v438 = vld [vmem:[%s273 + $0x4] sm:$0xf]
      %v439 = vld [vmem:[%s273 + $0x8] sm:$0xf]
      %v440 = vld [vmem:[%s273 + $0xc] sm:$0xf]
      %v441 = vld [vmem:[%s273 + $0x10] sm:$0xf]
      %v442 = vld [vmem:[%s273 + $0x14] sm:$0xf]
      %v443 = vld [vmem:[%s273 + $0x18] sm:$0xf]
      %v444 = vld [vmem:[%s273 + $0x1c] sm:$0xf]
      %v445 = vld [vmem:[%s273 + $0x20] sm:$0xf]
      %v446 = vld [vmem:[%s273 + $0x24] sm:$0xf]
      %v447 = vld [vmem:[%s273 + $0x28] sm:$0xf]
      %v448 = vld [vmem:[%s273 + $0x2c] sm:$0xf]
      %v449 = vld [vmem:[%s273 + $0x30] sm:$0xf]
      %v450 = vld [vmem:[%s273 + $0x34] sm:$0xf]
      %v451 = vld [vmem:[%s273 + $0x38] sm:$0xf]
      %v452 = vld [vmem:[%s273 + $0x3c] sm:$0xf]
      %v453 = vld [vmem:[%s273 + $0x40] sm:$0xf]
      %v454 = vld [vmem:[%s273 + $0x44] sm:$0xf]
      %v455 = vld [vmem:[%s273 + $0x48] sm:$0xf]
      %v456 = vld [vmem:[%s273 + $0x4c] sm:$0xf]
      %v457 = vld [vmem:[%s273 + $0x50] sm:$0xf]
      %v458 = vld [vmem:[%s273 + $0x54] sm:$0xf]
      %v459 = vld [vmem:[%s273 + $0x58] sm:$0xf]
      %v460 = vld [vmem:[%s273 + $0x5c] sm:$0xf]
      %v461 = vld [vmem:[%s273 + $0x60] sm:$0xf]
      %v462 = vld [vmem:[%s273 + $0x64] sm:$0xf]
      %v463 = vld [vmem:[%s273 + $0x68] sm:$0xf]
      %v464 = vld [vmem:[%s273 + $0x6c] sm:$0xf]
      %v465 = vld [vmem:[%s273 + $0x70] sm:$0xf]
      %v466 = vld [vmem:[%s273 + $0x74] sm:$0xf]
      %v467 = vld [vmem:[%s273 + $0x78] sm:$0xf]
      %v468 = vld [vmem:[%s273 + $0x7c] sm:$0xf]
      %v469 = vld [vmem:[%s273 + $0x80] sm:$0xf]
      %v470 = vld [vmem:[%s273 + $0x84] sm:$0xf]
      %v471 = vld [vmem:[%s273 + $0x88] sm:$0xf]
      %v472 = vld [vmem:[%s273 + $0x8c] sm:$0xf]
      %v473 = vld [vmem:[%s273 + $0x90] sm:$0xf]
      %v474 = vld [vmem:[%s273 + $0x94] sm:$0xf]
      %v475 = vld [vmem:[%s273 + $0x98] sm:$0xf]
      %v476 = vld [vmem:[%s273 + $0x9c] sm:$0xf]
      %v477 = vld [vmem:[%s273 + $0xa0] sm:$0xf]
      %v478 = vld [vmem:[%s273 + $0xa4] sm:$0xf]
      %v479 = vld [vmem:[%s273 + $0xa8] sm:$0xf]
      %v480 = vld [vmem:[%s273 + $0xac] sm:$0xf]
      %v481 = vld [vmem:[%s273 + $0xb0] sm:$0xf]
      %v482 = vld [vmem:[%s273 + $0xb4] sm:$0xf]
      %v483 = vld [vmem:[%s273 + $0xb8] sm:$0xf]
      %v484 = vld [vmem:[%s273 + $0xbc] sm:$0xf]
      %v485 = vld [vmem:[%s273 + $0xc0] sm:$0xf]
      %v486 = vld [vmem:[%s273 + $0xc4] sm:$0xf]
      %v487 = vld [vmem:[%s273 + $0xc8] sm:$0xf]
      %v488 = vld [vmem:[%s273 + $0xcc] sm:$0xf]
      %v489 = vld [vmem:[%s273 + $0xd0] sm:$0xf]
      %v490 = vld [vmem:[%s273 + $0xd4] sm:$0xf]
      %v491 = vld [vmem:[%s273 + $0xd8] sm:$0xf]
      %v492 = vld [vmem:[%s273 + $0xdc] sm:$0xf]
      %v493 = vld [vmem:[%s273 + $0xe0] sm:$0xf]
      %v494 = vld [vmem:[%s273 + $0xe4] sm:$0xf]
      %v495 = vld [vmem:[%s273 + $0xe8] sm:$0xf]
      %v496 = vld [vmem:[%s273 + $0xec] sm:$0xf]
      %v497 = vld [vmem:[%s273 + $0xf0] sm:$0xf]
      %v498 = vld [vmem:[%s273 + $0xf4] sm:$0xf]
      %v499 = vld [vmem:[%s273 + $0xf8] sm:$0xf]
      %v500 = vld [vmem:[%s273 + $0xfc] sm:$0xf]
      %v501 = vld [vmem:[%s286] sm:$0xf]
      %v502 = vld [vmem:[%s286 + $0x4] sm:$0xf]
      %v503 = vld [vmem:[%s286 + $0x8] sm:$0xf]
      %v504 = vld [vmem:[%s286 + $0xc] sm:$0xf]
      %v569 = vunpack.c.l.b16 %v437
      %v570 = vunpack.c.l.b16 %v438
      %v571 = vunpack.c.l.b16 %v439
      %v572 = vunpack.c.l.b16 %v440
      %v573 = vunpack.c.l.b16 %v441
      %v574 = vunpack.c.l.b16 %v442
      %v575 = vunpack.c.l.b16 %v443
      %v576 = vunpack.c.l.b16 %v444
      %v577 = vunpack.c.l.b16 %v445
      %v578 = vunpack.c.l.b16 %v446
      %v579 = vunpack.c.l.b16 %v447
      %v580 = vunpack.c.l.b16 %v448
      %v581 = vunpack.c.l.b16 %v449
      %v582 = vunpack.c.l.b16 %v450
      %v583 = vunpack.c.l.b16 %v451
      %v584 = vunpack.c.l.b16 %v452
      %v585 = vunpack.c.l.b16 %v453
      %v586 = vunpack.c.l.b16 %v454
      %v587 = vunpack.c.l.b16 %v455
      %v588 = vunpack.c.l.b16 %v456
      %v589 = vunpack.c.l.b16 %v457
      %v590 = vunpack.c.l.b16 %v458
      %v591 = vunpack.c.l.b16 %v459
      %v592 = vunpack.c.l.b16 %v460
      %v593 = vunpack.c.l.b16 %v461
      %v594 = vunpack.c.l.b16 %v462
      %v595 = vunpack.c.l.b16 %v463
      %v596 = vunpack.c.l.b16 %v464
      %v597 = vunpack.c.l.b16 %v465
      %v598 = vunpack.c.l.b16 %v466
      %v599 = vunpack.c.l.b16 %v467
      %v600 = vunpack.c.l.b16 %v468
      %v601 = vunpack.c.l.b16 %v469
      %v602 = vunpack.c.l.b16 %v470
      %v603 = vunpack.c.l.b16 %v471
      %v604 = vunpack.c.l.b16 %v472
      %v605 = vunpack.c.l.b16 %v473
      %v606 = vunpack.c.l.b16 %v474
      %v607 = vunpack.c.l.b16 %v475
      %v608 = vunpack.c.l.b16 %v476
      %v609 = vunpack.c.l.b16 %v477
      %v610 = vunpack.c.l.b16 %v478
      %v611 = vunpack.c.l.b16 %v479
      %v612 = vunpack.c.l.b16 %v480
      %v613 = vunpack.c.l.b16 %v481
      %v614 = vunpack.c.l.b16 %v482
      %v615 = vunpack.c.l.b16 %v483
      %v616 = vunpack.c.l.b16 %v484
      %v617 = vunpack.c.l.b16 %v485
      %v618 = vunpack.c.l.b16 %v486
      %v619 = vunpack.c.l.b16 %v487
      %v620 = vunpack.c.l.b16 %v488
      %v621 = vunpack.c.l.b16 %v489
      %v622 = vunpack.c.l.b16 %v490
      %v623 = vunpack.c.l.b16 %v491
      %v624 = vunpack.c.l.b16 %v492
      %v625 = vunpack.c.l.b16 %v493
      %v626 = vunpack.c.l.b16 %v494
      %v627 = vunpack.c.l.b16 %v495
      %v628 = vunpack.c.l.b16 %v496
      %v629 = vunpack.c.l.b16 %v497
      %v630 = vunpack.c.l.b16 %v498
      %v631 = vunpack.c.l.b16 %v499
      %v632 = vunpack.c.l.b16 %v500
      %v633 = vpack.c.b16 %v570, %v569
      %v634 = vpack.c.b16 %v572, %v571
      %v635 = vpack.c.b16 %v574, %v573
      %v636 = vpack.c.b16 %v576, %v575
      %v637 = vpack.c.b16 %v578, %v577
      %v638 = vpack.c.b16 %v580, %v579
      %v639 = vpack.c.b16 %v582, %v581
      %v640 = vpack.c.b16 %v584, %v583
      %v641 = vpack.c.b16 %v586, %v585
      %v642 = vpack.c.b16 %v588, %v587
      %v643 = vpack.c.b16 %v590, %v589
      %v644 = vpack.c.b16 %v592, %v591
      %v645 = vpack.c.b16 %v594, %v593
      %v646 = vpack.c.b16 %v596, %v595
      %v647 = vpack.c.b16 %v598, %v597
      %v648 = vpack.c.b16 %v600, %v599
      %v649 = vpack.c.b16 %v602, %v601
      %v650 = vpack.c.b16 %v604, %v603
      %v651 = vpack.c.b16 %v606, %v605
      %v652 = vpack.c.b16 %v608, %v607
      %v653 = vpack.c.b16 %v610, %v609
      %v654 = vpack.c.b16 %v612, %v611
      %v655 = vpack.c.b16 %v614, %v613
      %v656 = vpack.c.b16 %v616, %v615
      %v657 = vpack.c.b16 %v618, %v617
      %v658 = vpack.c.b16 %v620, %v619
      %v659 = vpack.c.b16 %v622, %v621
      %v660 = vpack.c.b16 %v624, %v623
      %v661 = vpack.c.b16 %v626, %v625
      %v662 = vpack.c.b16 %v628, %v627
      %v663 = vpack.c.b16 %v630, %v629
      %v664 = vpack.c.b16 %v632, %v631
      %v669 = vunpack.c.l.b16 %v501
      %v670 = vunpack.c.l.b16 %v502
      %v671 = vunpack.c.l.b16 %v503
      %v672 = vunpack.c.l.b16 %v504
      %v673 = vpack.c.b16 %v670, %v669
      %v674 = vpack.c.b16 %v672, %v671
      %vm677 = vcmask 261120
      %v679 = vsel %vm677, %v633, 0
      %v682 = vsel %vm677, %v634, 0
      %v685 = vsel %vm677, %v635, 0
      %v688 = vsel %vm677, %v636, 0
      %v691 = vsel %vm677, %v637, 0
      %v694 = vsel %vm677, %v638, 0
      %v697 = vsel %vm677, %v639, 0
      %v700 = vsel %vm677, %v640, 0
      %v703 = vsel %vm677, %v641, 0
      %v706 = vsel %vm677, %v642, 0
      %v709 = vsel %vm677, %v643, 0
      %v712 = vsel %vm677, %v644, 0
      %v715 = vsel %vm677, %v645, 0
      %v718 = vsel %vm677, %v646, 0
      %v721 = vsel %vm677, %v647, 0
      %v724 = vsel %vm677, %v648, 0
      %v727 = vsel %vm677, %v649, 0
      %v730 = vsel %vm677, %v650, 0
      %v733 = vsel %vm677, %v651, 0
      %v736 = vsel %vm677, %v652, 0
      %v739 = vsel %vm677, %v653, 0
      %v742 = vsel %vm677, %v654, 0
      %v745 = vsel %vm677, %v655, 0
      %v748 = vsel %vm677, %v656, 0
      %v751 = vsel %vm677, %v657, 0
      %v754 = vsel %vm677, %v658, 0
      %v757 = vsel %vm677, %v659, 0
      %v760 = vsel %vm677, %v660, 0
      %v763 = vsel %vm677, %v661, 0
      %v766 = vsel %vm677, %v662, 0
      %v769 = vsel %vm677, %v663, 0
      %v772 = vsel %vm677, %v664, 0
      %774 = vmatprep.subr.bf16.mxu0 0
      %775 = vmatpush1.bf16.msra.mxu0 %v673
      %776 = vmatprep.subr.bf16.mxu0 0
      %777 = vmatpush1.bf16.msra.mxu0 %v674
      %778 = vmatprep.subr.bf16.mxu0 0
      %779 = vmatpush1.bf16.msra.mxu0 0
      %780 = vmatprep.subr.bf16.mxu0 0
      %781 = vmatpush1.bf16.msra.mxu0 0
      %782 = vmatprep.subr.bf16.mxu0 0
      %783 = vmatpush1.bf16.msra.mxu0 0
      %784 = vmatprep.subr.bf16.mxu0 0
      %785 = vmatpush1.bf16.msra.mxu0 0
      %786 = vmatprep.subr.bf16.mxu0 0
      %787 = vmatpush1.bf16.msra.mxu0 0
      %788 = vmatprep.subr.bf16.mxu0 0
      %789 = vmatpush1.bf16.msra.mxu0 0
      %790 = vmatprep.subr.bf16.mxu0 0
      %791 = vmatpush1.bf16.msra.mxu0 0
      %792 = vmatprep.subr.bf16.mxu0 0
      %793 = vmatpush1.bf16.msra.mxu0 0
      %794 = vmatprep.subr.bf16.mxu0 0
      %795 = vmatpush1.bf16.msra.mxu0 0
      %796 = vmatprep.subr.bf16.mxu0 0
      %797 = vmatpush1.bf16.msra.mxu0 0
      %798 = vmatprep.subr.bf16.mxu0 0
      %799 = vmatpush1.bf16.msra.mxu0 0
      %800 = vmatprep.subr.bf16.mxu0 0
      %801 = vmatpush1.bf16.msra.mxu0 0
      %802 = vmatprep.subr.bf16.mxu0 0
      %803 = vmatpush1.bf16.msra.mxu0 0
      %804 = vmatprep.subr.bf16.mxu0 0
      %805 = vmatpush1.bf16.msra.mxu0 0
      %806 = vmatprep.mubr.bf16.mxu0 0
      %807 = vmatmul.mubr.bf16.gmra.mrb[0].mxu0 %v679
      %v808 = vpop.f32.mrb[0].mxu0
      %v809 = vadd.f32 0.0, %v808
      %v810 = vpop.f32.mrb[0].mxu0
      %v811 = vpop.f32.mrb[0].mxu0
      %v812 = vadd.f32 0.0, %v811
      %v813 = vpop.f32.mrb[0].mxu0
      %814 = vmatprep.mubr.bf16.mxu0 0
      %815 = vmatmul.mubr.bf16.gmra.mrb[0].mxu0 %v682
      %v816 = vpop.f32.mrb[0].mxu0
      %v817 = vadd.f32 0.0, %v816
      %v818 = vpop.f32.mrb[0].mxu0
      %v819 = vpop.f32.mrb[0].mxu0
      %v820 = vadd.f32 0.0, %v819
      %v821 = vpop.f32.mrb[0].mxu0
      %822 = vmatprep.mubr.bf16.mxu0 0
      %823 = vmatmul.mubr.bf16.gmra.mrb[0].mxu0 %v685
      %v824 = vpop.f32.mrb[0].mxu0
      %v825 = vadd.f32 0.0, %v824
      %v826 = vpop.f32.mrb[0].mxu0
      %v827 = vpop.f32.mrb[0].mxu0
      %v828 = vadd.f32 0.0, %v827
      %v829 = vpop.f32.mrb[0].mxu0
      %830 = vmatprep.mubr.bf16.mxu0 0
      %831 = vmatmul.mubr.bf16.gmra.mrb[0].mxu0 %v688
      %v832 = vpop.f32.mrb[0].mxu0
      %v833 = vadd.f32 0.0, %v832
      %v834 = vpop.f32.mrb[0].mxu0
      %v835 = vpop.f32.mrb[0].mxu0
      %v836 = vadd.f32 0.0, %v835
      %v837 = vpop.f32.mrb[0].mxu0
      %838 = vmatprep.mubr.bf16.mxu0 0
      %839 = vmatmul.mubr.bf16.gmra.mrb[0].mxu0 %v691
      %v840 = vpop.f32.mrb[0].mxu0
      %v841 = vadd.f32 0.0, %v840
      %v842 = vpop.f32.mrb[0].mxu0
      %v843 = vpop.f32.mrb[0].mxu0
      %v844 = vadd.f32 0.0, %v843
      %v845 = vpop.f32.mrb[0].mxu0
      %846 = vmatprep.mubr.bf16.mxu0 0
      %847 = vmatmul.mubr.bf16.gmra.mrb[0].mxu0 %v694
      %v848 = vpop.f32.mrb[0].mxu0
      %v849 = vadd.f32 0.0, %v848
      %v850 = vpop.f32.mrb[0].mxu0
      %v851 = vpop.f32.mrb[0].mxu0
      %v852 = vadd.f32 0.0, %v851
      %v853 = vpop.f32.mrb[0].mxu0
      %854 = vmatprep.mubr.bf16.mxu0 0
      %855 = vmatmul.mubr.bf16.gmra.mrb[0].mxu0 %v697
      %v856 = vpop.f32.mrb[0].mxu0
      %v857 = vadd.f32 0.0, %v856
      %v858 = vpop.f32.mrb[0].mxu0
      %v859 = vpop.f32.mrb[0].mxu0
      %v860 = vadd.f32 0.0, %v859
      %v861 = vpop.f32.mrb[0].mxu0
      %862 = vmatprep.mubr.bf16.mxu0 0
      %863 = vmatmul.mubr.bf16.gmra.mrb[0].mxu0 %v700
      %v864 = vpop.f32.mrb[0].mxu0
      %v865 = vadd.f32 0.0, %v864
      %v866 = vpop.f32.mrb[0].mxu0
      %v867 = vpop.f32.mrb[0].mxu0
      %v868 = vadd.f32 0.0, %v867
      %v869 = vpop.f32.mrb[0].mxu0
      %870 = vmatprep.mubr.bf16.mxu0 0
      %871 = vmatmul.mubr.bf16.gmra.mrb[0].mxu0 %v703
      %v872 = vpop.f32.mrb[0].mxu0
      %v873 = vadd.f32 0.0, %v872
      %v874 = vpop.f32.mrb[0].mxu0
      %v875 = vpop.f32.mrb[0].mxu0
      %v876 = vadd.f32 0.0, %v875
      %v877 = vpop.f32.mrb[0].mxu0
      %878 = vmatprep.mubr.bf16.mxu0 0
      %879 = vmatmul.mubr.bf16.gmra.mrb[0].mxu0 %v706
      %v880 = vpop.f32.mrb[0].mxu0
      %v881 = vadd.f32 0.0, %v880
      %v882 = vpop.f32.mrb[0].mxu0
      %v883 = vpop.f32.mrb[0].mxu0
      %v884 = vadd.f32 0.0, %v883
      %v885 = vpop.f32.mrb[0].mxu0
      %886 = vmatprep.mubr.bf16.mxu0 0
      %887 = vmatmul.mubr.bf16.gmra.mrb[0].mxu0 %v709
      %v888 = vpop.f32.mrb[0].mxu0
      %v889 = vadd.f32 0.0, %v888
      %v890 = vpop.f32.mrb[0].mxu0
      %v891 = vpop.f32.mrb[0].mxu0
      %v892 = vadd.f32 0.0, %v891
      %v893 = vpop.f32.mrb[0].mxu0
      %894 = vmatprep.mubr.bf16.mxu0 0
      %895 = vmatmul.mubr.bf16.gmra.mrb[0].mxu0 %v712
      %v896 = vpop.f32.mrb[0].mxu0
      %v897 = vadd.f32 0.0, %v896
      %v898 = vpop.f32.mrb[0].mxu0
      %v899 = vpop.f32.mrb[0].mxu0
      %v900 = vadd.f32 0.0, %v899
      %v901 = vpop.f32.mrb[0].mxu0
      %902 = vmatprep.mubr.bf16.mxu0 0
      %903 = vmatmul.mubr.bf16.gmra.mrb[0].mxu0 %v715
      %v904 = vpop.f32.mrb[0].mxu0
      %v905 = vadd.f32 0.0, %v904
      %v906 = vpop.f32.mrb[0].mxu0
      %v907 = vpop.f32.mrb[0].mxu0
      %v908 = vadd.f32 0.0, %v907
      %v909 = vpop.f32.mrb[0].mxu0
      %910 = vmatprep.mubr.bf16.mxu0 0
      %911 = vmatmul.mubr.bf16.gmra.mrb[0].mxu0 %v718
      %v912 = vpop.f32.mrb[0].mxu0
      %v913 = vadd.f32 0.0, %v912
      %v914 = vpop.f32.mrb[0].mxu0
      %v915 = vpop.f32.mrb[0].mxu0
      %v916 = vadd.f32 0.0, %v915
      %v917 = vpop.f32.mrb[0].mxu0
      %918 = vmatprep.mubr.bf16.mxu0 0
      %919 = vmatmul.mubr.bf16.gmra.mrb[0].mxu0 %v721
      %v920 = vpop.f32.mrb[0].mxu0
      %v921 = vadd.f32 0.0, %v920
      %v922 = vpop.f32.mrb[0].mxu0
      %v923 = vpop.f32.mrb[0].mxu0
      %v924 = vadd.f32 0.0, %v923
      %v925 = vpop.f32.mrb[0].mxu0
      %926 = vmatprep.mubr.bf16.mxu0 0
      %927 = vmatmul.mubr.bf16.gmra.mrb[0].mxu0 %v724
      %v928 = vpop.f32.mrb[0].mxu0
      %v929 = vadd.f32 0.0, %v928
      %v930 = vpop.f32.mrb[0].mxu0
      %v931 = vpop.f32.mrb[0].mxu0
      %v932 = vadd.f32 0.0, %v931
      %v933 = vpop.f32.mrb[0].mxu0
      %934 = vmatprep.mubr.bf16.mxu0 0
      %935 = vmatmul.mubr.bf16.gmra.mrb[0].mxu0 %v727
      %v936 = vpop.f32.mrb[0].mxu0
      %v937 = vadd.f32 0.0, %v936
      %v938 = vpop.f32.mrb[0].mxu0
      %v939 = vpop.f32.mrb[0].mxu0
      %v940 = vadd.f32 0.0, %v939
      %v941 = vpop.f32.mrb[0].mxu0
      %942 = vmatprep.mubr.bf16.mxu0 0
      %943 = vmatmul.mubr.bf16.gmra.mrb[0].mxu0 %v730
      %v944 = vpop.f32.mrb[0].mxu0
      %v945 = vadd.f32 0.0, %v944
      %v946 = vpop.f32.mrb[0].mxu0
      %v947 = vpop.f32.mrb[0].mxu0
      %v948 = vadd.f32 0.0, %v947
      %v949 = vpop.f32.mrb[0].mxu0
      %950 = vmatprep.mubr.bf16.mxu0 0
      %951 = vmatmul.mubr.bf16.gmra.mrb[0].mxu0 %v733
      %v952 = vpop.f32.mrb[0].mxu0
      %v953 = vadd.f32 0.0, %v952
      %v954 = vpop.f32.mrb[0].mxu0
      %v955 = vpop.f32.mrb[0].mxu0
      %v956 = vadd.f32 0.0, %v955
      %v957 = vpop.f32.mrb[0].mxu0
      %958 = vmatprep.mubr.bf16.mxu0 0
      %959 = vmatmul.mubr.bf16.gmra.mrb[0].mxu0 %v736
      %v960 = vpop.f32.mrb[0].mxu0
      %v961 = vadd.f32 0.0, %v960
      %v962 = vpop.f32.mrb[0].mxu0
      %v963 = vpop.f32.mrb[0].mxu0
      %v964 = vadd.f32 0.0, %v963
      %v965 = vpop.f32.mrb[0].mxu0
      %966 = vmatprep.mubr.bf16.mxu0 0
      %967 = vmatmul.mubr.bf16.gmra.mrb[0].mxu0 %v739
      %v968 = vpop.f32.mrb[0].mxu0
      %v969 = vadd.f32 0.0, %v968
      %v970 = vpop.f32.mrb[0].mxu0
      %v971 = vpop.f32.mrb[0].mxu0
      %v972 = vadd.f32 0.0, %v971
      %v973 = vpop.f32.mrb[0].mxu0
      %974 = vmatprep.mubr.bf16.mxu0 0
      %975 = vmatmul.mubr.bf16.gmra.mrb[0].mxu0 %v742
      %v976 = vpop.f32.mrb[0].mxu0
      %v977 = vadd.f32 0.0, %v976
      %v978 = vpop.f32.mrb[0].mxu0
      %v979 = vpop.f32.mrb[0].mxu0
      %v980 = vadd.f32 0.0, %v979
      %v981 = vpop.f32.mrb[0].mxu0
      %982 = vmatprep.mubr.bf16.mxu0 0
      %983 = vmatmul.mubr.bf16.gmra.mrb[0].mxu0 %v745
      %v984 = vpop.f32.mrb[0].mxu0
      %v985 = vadd.f32 0.0, %v984
      %v986 = vpop.f32.mrb[0].mxu0
      %v987 = vpop.f32.mrb[0].mxu0
      %v988 = vadd.f32 0.0, %v987
      %v989 = vpop.f32.mrb[0].mxu0
      %990 = vmatprep.mubr.bf16.mxu0 0
      %991 = vmatmul.mubr.bf16.gmra.mrb[0].mxu0 %v748
      %v992 = vpop.f32.mrb[0].mxu0
      %v993 = vadd.f32 0.0, %v992
      %v994 = vpop.f32.mrb[0].mxu0
      %v995 = vpop.f32.mrb[0].mxu0
      %v996 = vadd.f32 0.0, %v995
      %v997 = vpop.f32.mrb[0].mxu0
      %998 = vmatprep.mubr.bf16.mxu0 0
      %999 = vmatmul.mubr.bf16.gmra.mrb[0].mxu0 %v751
      %v1000 = vpop.f32.mrb[0].mxu0
      %v1001 = vadd.f32 0.0, %v1000
      %v1002 = vpop.f32.mrb[0].mxu0
      %v1003 = vpop.f32.mrb[0].mxu0
      %v1004 = vadd.f32 0.0, %v1003
      %v1005 = vpop.f32.mrb[0].mxu0
      %1006 = vmatprep.mubr.bf16.mxu0 0
      %1007 = vmatmul.mubr.bf16.gmra.mrb[0].mxu0 %v754
      %v1008 = vpop.f32.mrb[0].mxu0
      %v1009 = vadd.f32 0.0, %v1008
      %v1010 = vpop.f32.mrb[0].mxu0
      %v1011 = vpop.f32.mrb[0].mxu0
      %v1012 = vadd.f32 0.0, %v1011
      %v1013 = vpop.f32.mrb[0].mxu0
      %1014 = vmatprep.mubr.bf16.mxu0 0
      %1015 = vmatmul.mubr.bf16.gmra.mrb[0].mxu0 %v757
      %v1016 = vpop.f32.mrb[0].mxu0
      %v1017 = vadd.f32 0.0, %v1016
      %v1018 = vpop.f32.mrb[0].mxu0
      %v1019 = vpop.f32.mrb[0].mxu0
      %v1020 = vadd.f32 0.0, %v1019
      %v1021 = vpop.f32.mrb[0].mxu0
      %1022 = vmatprep.mubr.bf16.mxu0 0
      %1023 = vmatmul.mubr.bf16.gmra.mrb[0].mxu0 %v760
      %v1024 = vpop.f32.mrb[0].mxu0
      %v1025 = vadd.f32 0.0, %v1024
      %v1026 = vpop.f32.mrb[0].mxu0
      %v1027 = vpop.f32.mrb[0].mxu0
      %v1028 = vadd.f32 0.0, %v1027
      %v1029 = vpop.f32.mrb[0].mxu0
      %1030 = vmatprep.mubr.bf16.mxu0 0
      %1031 = vmatmul.mubr.bf16.gmra.mrb[0].mxu0 %v763
      %v1032 = vpop.f32.mrb[0].mxu0
      %v1033 = vadd.f32 0.0, %v1032
      %v1034 = vpop.f32.mrb[0].mxu0
      %v1035 = vpop.f32.mrb[0].mxu0
      %v1036 = vadd.f32 0.0, %v1035
      %v1037 = vpop.f32.mrb[0].mxu0
      %1038 = vmatprep.mubr.bf16.mxu0 0
      %1039 = vmatmul.mubr.bf16.gmra.mrb[0].mxu0 %v766
      %v1040 = vpop.f32.mrb[0].mxu0
      %v1041 = vadd.f32 0.0, %v1040
      %v1042 = vpop.f32.mrb[0].mxu0
      %v1043 = vpop.f32.mrb[0].mxu0
      %v1044 = vadd.f32 0.0, %v1043
      %v1045 = vpop.f32.mrb[0].mxu0
      %1046 = vmatprep.mubr.bf16.mxu0 0
      %1047 = vmatmul.mubr.bf16.gmra.mrb[0].mxu0 %v769
      %v1048 = vpop.f32.mrb[0].mxu0
      %v1049 = vadd.f32 0.0, %v1048
      %v1050 = vpop.f32.mrb[0].mxu0
      %v1051 = vpop.f32.mrb[0].mxu0
      %v1052 = vadd.f32 0.0, %v1051
      %v1053 = vpop.f32.mrb[0].mxu0
      %1054 = vmatprep.mubr.bf16.mxu0 0
      %1055 = vmatmul.mubr.bf16.gmra.mrb[0].mxu0 %v772
      %v1056 = vpop.f32.mrb[0].mxu0
      %v1057 = vadd.f32 0.0, %v1056
      %v1058 = vpop.f32.mrb[0].mxu0
      %v1059 = vpop.f32.mrb[0].mxu0
      %v1060 = vadd.f32 0.0, %v1059
      %v1061 = vpop.f32.mrb[0].mxu0
      %1062 = vdwg.mxu0
      %v1063 = vadd.f32 %v373, %v809
      %v1064 = vadd.f32 %v374, %v812
      %v1065 = vadd.f32 %v375, %v817
      %v1066 = vadd.f32 %v376, %v820
      %v1067 = vadd.f32 %v377, %v825
      %v1068 = vadd.f32 %v378, %v828
      %v1069 = vadd.f32 %v379, %v833
      %v1070 = vadd.f32 %v380, %v836
      %v1071 = vadd.f32 %v381, %v841
      %v1072 = vadd.f32 %v382, %v844
      %v1073 = vadd.f32 %v383, %v849
      %v1074 = vadd.f32 %v384, %v852
      %v1075 = vadd.f32 %v385, %v857
      %v1076 = vadd.f32 %v386, %v860
      %v1077 = vadd.f32 %v387, %v865
      %v1078 = vadd.f32 %v388, %v868
      %v1079 = vadd.f32 %v389, %v873
      %v1080 = vadd.f32 %v390, %v876
      %v1081 = vadd.f32 %v391, %v881
      %v1082 = vadd.f32 %v392, %v884
      %v1083 = vadd.f32 %v393, %v889
      %v1084 = vadd.f32 %v394, %v892
      %v1085 = vadd.f32 %v395, %v897
      %v1086 = vadd.f32 %v396, %v900
      %v1087 = vadd.f32 %v397, %v905
      %v1088 = vadd.f32 %v398, %v908
      %v1089 = vadd.f32 %v399, %v913
      %v1090 = vadd.f32 %v400, %v916
      %v1091 = vadd.f32 %v401, %v921
      %v1092 = vadd.f32 %v402, %v924
      %v1093 = vadd.f32 %v403, %v929
      %v1094 = vadd.f32 %v404, %v932
      %v1095 = vadd.f32 %v405, %v937
      %v1096 = vadd.f32 %v406, %v940
      %v1097 = vadd.f32 %v407, %v945
      %v1098 = vadd.f32 %v408, %v948
      %v1099 = vadd.f32 %v409, %v953
      %v1100 = vadd.f32 %v410, %v956
      %v1101 = vadd.f32 %v411, %v961
      %v1102 = vadd.f32 %v412, %v964
      %v1103 = vadd.f32 %v413, %v969
      %v1104 = vadd.f32 %v414, %v972
      %v1105 = vadd.f32 %v415, %v977
      %v1106 = vadd.f32 %v416, %v980
      %v1107 = vadd.f32 %v417, %v985
      %v1108 = vadd.f32 %v418, %v988
      %v1109 = vadd.f32 %v419, %v993
      %v1110 = vadd.f32 %v420, %v996
      %v1111 = vadd.f32 %v421, %v1001
      %v1112 = vadd.f32 %v422, %v1004
      %v1113 = vadd.f32 %v423, %v1009
      %v1114 = vadd.f32 %v424, %v1012
      %v1115 = vadd.f32 %v425, %v1017
      %v1116 = vadd.f32 %v426, %v1020
      %v1117 = vadd.f32 %v427, %v1025
      %v1118 = vadd.f32 %v428, %v1028
      %v1119 = vadd.f32 %v429, %v1033
      %v1120 = vadd.f32 %v430, %v1036
      %v1121 = vadd.f32 %v431, %v1041
      %v1122 = vadd.f32 %v432, %v1044
      %v1123 = vadd.f32 %v433, %v1049
      %v1124 = vadd.f32 %v434, %v1052
      %v1125 = vadd.f32 %v435, %v1057
      %v1126 = vadd.f32 %v436, %v1060
      %1127 = vst [vmem:[#allocation2] sm:$0xff] %v1063
      %1128 = vst [vmem:[#allocation2 + $0x8] sm:$0xff] %v1064
      %1129 = vst [vmem:[#allocation2 + $0x10] sm:$0xff] %v1065
      %1130 = vst [vmem:[#allocation2 + $0x18] sm:$0xff] %v1066
      %1131 = vst [vmem:[#allocation2 + $0x20] sm:$0xff] %v1067
      %1132 = vst [vmem:[#allocation2 + $0x28] sm:$0xff] %v1068
      %1133 = vst [vmem:[#allocation2 + $0x30] sm:$0xff] %v1069
      %1134 = vst [vmem:[#allocation2 + $0x38] sm:$0xff] %v1070
      %1135 = vst [vmem:[#allocation2 + $0x40] sm:$0xff] %v1071
      %1136 = vst [vmem:[#allocation2 + $0x48] sm:$0xff] %v1072
      %1137 = vst [vmem:[#allocation2 + $0x50] sm:$0xff] %v1073
      %1138 = vst [vmem:[#allocation2 + $0x58] sm:$0xff] %v1074
      %1139 = vst [vmem:[#allocation2 + $0x60] sm:$0xff] %v1075
      %1140 = vst [vmem:[#allocation2 + $0x68] sm:$0xff] %v1076
      %1141 = vst [vmem:[#allocation2 + $0x70] sm:$0xff] %v1077
      %1142 = vst [vmem:[#allocation2 + $0x78] sm:$0xff] %v1078
      %1143 = vst [vmem:[#allocation2 + $0x80] sm:$0xff] %v1079
      %1144 = vst [vmem:[#allocation2 + $0x88] sm:$0xff] %v1080
      %1145 = vst [vmem:[#allocation2 + $0x90] sm:$0xff] %v1081
      %1146 = vst [vmem:[#allocation2 + $0x98] sm:$0xff] %v1082
      %1147 = vst [vmem:[#allocation2 + $0xa0] sm:$0xff] %v1083
      %1148 = vst [vmem:[#allocation2 + $0xa8] sm:$0xff] %v1084
      %1149 = vst [vmem:[#allocation2 + $0xb0] sm:$0xff] %v1085
      %1150 = vst [vmem:[#allocation2 + $0xb8] sm:$0xff] %v1086
      %1151 = vst [vmem:[#allocation2 + $0xc0] sm:$0xff] %v1087
      %1152 = vst [vmem:[#allocation2 + $0xc8] sm:$0xff] %v1088
      %1153 = vst [vmem:[#allocation2 + $0xd0] sm:$0xff] %v1089
      %1154 = vst [vmem:[#allocation2 + $0xd8] sm:$0xff] %v1090
      %1155 = vst [vmem:[#allocation2 + $0xe0] sm:$0xff] %v1091
      %1156 = vst [vmem:[#allocation2 + $0xe8] sm:$0xff] %v1092
      %1157 = vst [vmem:[#allocation2 + $0xf0] sm:$0xff] %v1093
      %1158 = vst [vmem:[#allocation2 + $0xf8] sm:$0xff] %v1094
      %1159 = vst [vmem:[#allocation2 + $0x100] sm:$0xff] %v1095
      %1160 = vst [vmem:[#allocation2 + $0x108] sm:$0xff] %v1096
      %1161 = vst [vmem:[#allocation2 + $0x110] sm:$0xff] %v1097
      %1162 = vst [vmem:[#allocation2 + $0x118] sm:$0xff] %v1098
      %1163 = vst [vmem:[#allocation2 + $0x120] sm:$0xff] %v1099
      %1164 = vst [vmem:[#allocation2 + $0x128] sm:$0xff] %v1100
      %1165 = vst [vmem:[#allocation2 + $0x130] sm:$0xff] %v1101
      %1166 = vst [vmem:[#allocation2 + $0x138] sm:$0xff] %v1102
      %1167 = vst [vmem:[#allocation2 + $0x140] sm:$0xff] %v1103
      %1168 = vst [vmem:[#allocation2 + $0x148] sm:$0xff] %v1104
      %1169 = vst [vmem:[#allocation2 + $0x150] sm:$0xff] %v1105
      %1170 = vst [vmem:[#allocation2 + $0x158] sm:$0xff] %v1106
      %1171 = vst [vmem:[#allocation2 + $0x160] sm:$0xff] %v1107
      %1172 = vst [vmem:[#allocation2 + $0x168] sm:$0xff] %v1108
      %1173 = vst [vmem:[#allocation2 + $0x170] sm:$0xff] %v1109
      %1174 = vst [vmem:[#allocation2 + $0x178] sm:$0xff] %v1110
      %1175 = vst [vmem:[#allocation2 + $0x180] sm:$0xff] %v1111
      %1176 = vst [vmem:[#allocation2 + $0x188] sm:$0xff] %v1112
      %1177 = vst [vmem:[#allocation2 + $0x190] sm:$0xff] %v1113
      %1178 = vst [vmem:[#allocation2 + $0x198] sm:$0xff] %v1114
      %1179 = vst [vmem:[#allocation2 + $0x1a0] sm:$0xff] %v1115
      %1180 = vst [vmem:[#allocation2 + $0x1a8] sm:$0xff] %v1116
      %1181 = vst [vmem:[#allocation2 + $0x1b0] sm:$0xff] %v1117
      %1182 = vst [vmem:[#allocation2 + $0x1b8] sm:$0xff] %v1118
      %1183 = vst [vmem:[#allocation2 + $0x1c0] sm:$0xff] %v1119
      %1184 = vst [vmem:[#allocation2 + $0x1c8] sm:$0xff] %v1120
      %1185 = vst [vmem:[#allocation2 + $0x1d0] sm:$0xff] %v1121
      %1186 = vst [vmem:[#allocation2 + $0x1d8] sm:$0xff] %v1122
      %1187 = vst [vmem:[#allocation2 + $0x1e0] sm:$0xff] %v1123
      %1188 = vst [vmem:[#allocation2 + $0x1e8] sm:$0xff] %v1124
      %1189 = vst [vmem:[#allocation2 + $0x1f0] sm:$0xff] %v1125
      %1190 = vst [vmem:[#allocation2 + $0x1f8] sm:$0xff] %v1126
      // Predicated region
      $region37: #{generator_forward.9} parent=31 // pred_check
        %p1191 = pneg %p305
      $region38: #{generator_forward.9} parent=31 // pred_check_branch
        %1193 = sbr.rel (%p1191) target = $region40
      $region39: #{generator_forward.9} parent=31 // pred_region
        %v1194 = vld [vmem:[#allocation2] sm:$0xff]
        %v1195 = vld [vmem:[#allocation2 + $0x8] sm:$0xff]
        %v1196 = vld [vmem:[#allocation2 + $0x10] sm:$0xff]
        %v1197 = vld [vmem:[#allocation2 + $0x18] sm:$0xff]
        %v1198 = vld [vmem:[#allocation2 + $0x20] sm:$0xff]
        %v1199 = vld [vmem:[#allocation2 + $0x28] sm:$0xff]
        %v1200 = vld [vmem:[#allocation2 + $0x30] sm:$0xff]
        %v1201 = vld [vmem:[#allocation2 + $0x38] sm:$0xff]
        %v1202 = vld [vmem:[#allocation2 + $0x40] sm:$0xff]
        %v1203 = vld [vmem:[#allocation2 + $0x48] sm:$0xff]
        %v1204 = vld [vmem:[#allocation2 + $0x50] sm:$0xff]
        %v1205 = vld [vmem:[#allocation2 + $0x58] sm:$0xff]
        %v1206 = vld [vmem:[#allocation2 + $0x60] sm:$0xff]
        %v1207 = vld [vmem:[#allocation2 + $0x68] sm:$0xff]
        %v1208 = vld [vmem:[#allocation2 + $0x70] sm:$0xff]
        %v1209 = vld [vmem:[#allocation2 + $0x78] sm:$0xff]
        %v1210 = vld [vmem:[#allocation2 + $0x80] sm:$0xff]
        %v1211 = vld [vmem:[#allocation2 + $0x88] sm:$0xff]
        %v1212 = vld [vmem:[#allocation2 + $0x90] sm:$0xff]
        %v1213 = vld [vmem:[#allocation2 + $0x98] sm:$0xff]
        %v1214 = vld [vmem:[#allocation2 + $0xa0] sm:$0xff]
        %v1215 = vld [vmem:[#allocation2 + $0xa8] sm:$0xff]
        %v1216 = vld [vmem:[#allocation2 + $0xb0] sm:$0xff]
        %v1217 = vld [vmem:[#allocation2 + $0xb8] sm:$0xff]
        %v1218 = vld [vmem:[#allocation2 + $0xc0] sm:$0xff]
        %v1219 = vld [vmem:[#allocation2 + $0xc8] sm:$0xff]
        %v1220 = vld [vmem:[#allocation2 + $0xd0] sm:$0xff]
        %v1221 = vld [vmem:[#allocation2 + $0xd8] sm:$0xff]
        %v1222 = vld [vmem:[#allocation2 + $0xe0] sm:$0xff]
        %v1223 = vld [vmem:[#allocation2 + $0xe8] sm:$0xff]
        %v1224 = vld [vmem:[#allocation2 + $0xf0] sm:$0xff]
        %v1225 = vld [vmem:[#allocation2 + $0xf8] sm:$0xff]
        %v1226 = vld [vmem:[#allocation2 + $0x100] sm:$0xff]
        %v1227 = vld [vmem:[#allocation2 + $0x108] sm:$0xff]
        %v1228 = vld [vmem:[#allocation2 + $0x110] sm:$0xff]
        %v1229 = vld [vmem:[#allocation2 + $0x118] sm:$0xff]
        %v1230 = vld [vmem:[#allocation2 + $0x120] sm:$0xff]
        %v1231 = vld [vmem:[#allocation2 + $0x128] sm:$0xff]
        %v1232 = vld [vmem:[#allocation2 + $0x130] sm:$0xff]
        %v1233 = vld [vmem:[#allocation2 + $0x138] sm:$0xff]
        %v1234 = vld [vmem:[#allocation2 + $0x140] sm:$0xff]
        %v1235 = vld [vmem:[#allocation2 + $0x148] sm:$0xff]
        %v1236 = vld [vmem:[#allocation2 + $0x150] sm:$0xff]
        %v1237 = vld [vmem:[#allocation2 + $0x158] sm:$0xff]
        %v1238 = vld [vmem:[#allocation2 + $0x160] sm:$0xff]
        %v1239 = vld [vmem:[#allocation2 + $0x168] sm:$0xff]
        %v1240 = vld [vmem:[#allocation2 + $0x170] sm:$0xff]
        %v1241 = vld [vmem:[#allocation2 + $0x178] sm:$0xff]
        %v1242 = vld [vmem:[#allocation2 + $0x180] sm:$0xff]
        %v1243 = vld [vmem:[#allocation2 + $0x188] sm:$0xff]
        %v1244 = vld [vmem:[#allocation2 + $0x190] sm:$0xff]
        %v1245 = vld [vmem:[#allocation2 + $0x198] sm:$0xff]
        %v1246 = vld [vmem:[#allocation2 + $0x1a0] sm:$0xff]
        %v1247 = vld [vmem:[#allocation2 + $0x1a8] sm:$0xff]
        %v1248 = vld [vmem:[#allocation2 + $0x1b0] sm:$0xff]
        %v1249 = vld [vmem:[#allocation2 + $0x1b8] sm:$0xff]
        %v1250 = vld [vmem:[#allocation2 + $0x1c0] sm:$0xff]
        %v1251 = vld [vmem:[#allocation2 + $0x1c8] sm:$0xff]
        %v1252 = vld [vmem:[#allocation2 + $0x1d0] sm:$0xff]
        %v1253 = vld [vmem:[#allocation2 + $0x1d8] sm:$0xff]
        %v1254 = vld [vmem:[#allocation2 + $0x1e0] sm:$0xff]
        %v1255 = vld [vmem:[#allocation2 + $0x1e8] sm:$0xff]
        %v1256 = vld [vmem:[#allocation2 + $0x1f0] sm:$0xff]
        %v1257 = vld [vmem:[#allocation2 + $0x1f8] sm:$0xff]
        %v1258 = vld [vmem:[%s290] sm:$0x1]
        %v1260 = vlaneseq
        %v1261 = vshrl.u32 %v1260, 7
        %v1262 = vsub.s32 0, %v1261
        %v1263 = vrot.slane %v1258, %v1262
        %v1265 = vadd.f32 %v1194, %v1263
        %v1266 = vadd.f32 %v1195, %v1263
        %v1267 = vadd.f32 %v1196, %v1263
        %v1268 = vadd.f32 %v1197, %v1263
        %v1269 = vadd.f32 %v1198, %v1263
        %v1270 = vadd.f32 %v1199, %v1263
        %v1271 = vadd.f32 %v1200, %v1263
        %v1272 = vadd.f32 %v1201, %v1263
        %v1273 = vadd.f32 %v1202, %v1263
        %v1274 = vadd.f32 %v1203, %v1263
        %v1275 = vadd.f32 %v1204, %v1263
        %v1276 = vadd.f32 %v1205, %v1263
        %v1277 = vadd.f32 %v1206, %v1263
        %v1278 = vadd.f32 %v1207, %v1263
        %v1279 = vadd.f32 %v1208, %v1263
        %v1280 = vadd.f32 %v1209, %v1263
        %v1281 = vadd.f32 %v1210, %v1263
        %v1282 = vadd.f32 %v1211, %v1263
        %v1283 = vadd.f32 %v1212, %v1263
        %v1284 = vadd.f32 %v1213, %v1263
        %v1285 = vadd.f32 %v1214, %v1263
        %v1286 = vadd.f32 %v1215, %v1263
        %v1287 = vadd.f32 %v1216, %v1263
        %v1288 = vadd.f32 %v1217, %v1263
        %v1289 = vadd.f32 %v1218, %v1263
        %v1290 = vadd.f32 %v1219, %v1263
        %v1291 = vadd.f32 %v1220, %v1263
        %v1292 = vadd.f32 %v1221, %v1263
        %v1293 = vadd.f32 %v1222, %v1263
        %v1294 = vadd.f32 %v1223, %v1263
        %v1295 = vadd.f32 %v1224, %v1263
        %v1296 = vadd.f32 %v1225, %v1263
        %v1297 = vadd.f32 %v1226, %v1263
        %v1298 = vadd.f32 %v1227, %v1263
        %v1299 = vadd.f32 %v1228, %v1263
        %v1300 = vadd.f32 %v1229, %v1263
        %v1301 = vadd.f32 %v1230, %v1263
        %v1302 = vadd.f32 %v1231, %v1263
        %v1303 = vadd.f32 %v1232, %v1263
        %v1304 = vadd.f32 %v1233, %v1263
        %v1305 = vadd.f32 %v1234, %v1263
        %v1306 = vadd.f32 %v1235, %v1263
        %v1307 = vadd.f32 %v1236, %v1263
        %v1308 = vadd.f32 %v1237, %v1263
        %v1309 = vadd.f32 %v1238, %v1263
        %v1310 = vadd.f32 %v1239, %v1263
        %v1311 = vadd.f32 %v1240, %v1263
        %v1312 = vadd.f32 %v1241, %v1263
        %v1313 = vadd.f32 %v1242, %v1263
        %v1314 = vadd.f32 %v1243, %v1263
        %v1315 = vadd.f32 %v1244, %v1263
        %v1316 = vadd.f32 %v1245, %v1263
        %v1317 = vadd.f32 %v1246, %v1263
        %v1318 = vadd.f32 %v1247, %v1263
        %v1319 = vadd.f32 %v1248, %v1263
        %v1320 = vadd.f32 %v1249, %v1263
        %v1321 = vadd.f32 %v1250, %v1263
        %v1322 = vadd.f32 %v1251, %v1263
        %v1323 = vadd.f32 %v1252, %v1263
        %v1324 = vadd.f32 %v1253, %v1263
        %v1325 = vadd.f32 %v1254, %v1263
        %v1326 = vadd.f32 %v1255, %v1263
        %v1327 = vadd.f32 %v1256, %v1263
        %v1328 = vadd.f32 %v1257, %v1263
        %v1329 = vtanh.pop %v1265
        %v1330 = vtanh.pop %v1266
        %v1331 = vtanh.pop %v1267
        %v1332 = vtanh.pop %v1268
        %v1333 = vtanh.pop %v1269
        %v1334 = vtanh.pop %v1270
        %v1335 = vtanh.pop %v1271
        %v1336 = vtanh.pop %v1272
        %v1337 = vtanh.pop %v1273
        %v1338 = vtanh.pop %v1274
        %v1339 = vtanh.pop %v1275
        %v1340 = vtanh.pop %v1276
        %v1341 = vtanh.pop %v1277
        %v1342 = vtanh.pop %v1278
        %v1343 = vtanh.pop %v1279
        %v1344 = vtanh.pop %v1280
        %v1345 = vtanh.pop %v1281
        %v1346 = vtanh.pop %v1282
        %v1347 = vtanh.pop %v1283
        %v1348 = vtanh.pop %v1284
        %v1349 = vtanh.pop %v1285
        %v1350 = vtanh.pop %v1286
        %v1351 = vtanh.pop %v1287
        %v1352 = vtanh.pop %v1288
        %v1353 = vtanh.pop %v1289
        %v1354 = vtanh.pop %v1290
        %v1355 = vtanh.pop %v1291
        %v1356 = vtanh.pop %v1292
        %v1357 = vtanh.pop %v1293
        %v1358 = vtanh.pop %v1294
        %v1359 = vtanh.pop %v1295
        %v1360 = vtanh.pop %v1296
        %v1361 = vtanh.pop %v1297
        %v1362 = vtanh.pop %v1298
        %v1363 = vtanh.pop %v1299
        %v1364 = vtanh.pop %v1300
        %v1365 = vtanh.pop %v1301
        %v1366 = vtanh.pop %v1302
        %v1367 = vtanh.pop %v1303
        %v1368 = vtanh.pop %v1304
        %v1369 = vtanh.pop %v1305
        %v1370 = vtanh.pop %v1306
        %v1371 = vtanh.pop %v1307
        %v1372 = vtanh.pop %v1308
        %v1373 = vtanh.pop %v1309
        %v1374 = vtanh.pop %v1310
        %v1375 = vtanh.pop %v1311
        %v1376 = vtanh.pop %v1312
        %v1377 = vtanh.pop %v1313
        %v1378 = vtanh.pop %v1314
        %v1379 = vtanh.pop %v1315
        %v1380 = vtanh.pop %v1316
        %v1381 = vtanh.pop %v1317
        %v1382 = vtanh.pop %v1318
        %v1383 = vtanh.pop %v1319
        %v1384 = vtanh.pop %v1320
        %v1385 = vtanh.pop %v1321
        %v1386 = vtanh.pop %v1322
        %v1387 = vtanh.pop %v1323
        %v1388 = vtanh.pop %v1324
        %v1389 = vtanh.pop %v1325
        %v1390 = vtanh.pop %v1326
        %v1391 = vtanh.pop %v1327
        %v1392 = vtanh.pop %v1328
        %1393 = vst [vmem:[%s302] sm:$0xff] %v1329
        %1394 = vst [vmem:[%s302 + $0x8] sm:$0xff] %v1330
        %1395 = vst [vmem:[%s302 + $0x10] sm:$0xff] %v1331
        %1396 = vst [vmem:[%s302 + $0x18] sm:$0xff] %v1332
        %1397 = vst [vmem:[%s302 + $0x20] sm:$0xff] %v1333
        %1398 = vst [vmem:[%s302 + $0x28] sm:$0xff] %v1334
        %1399 = vst [vmem:[%s302 + $0x30] sm:$0xff] %v1335
        %1400 = vst [vmem:[%s302 + $0x38] sm:$0xff] %v1336
        %1401 = vst [vmem:[%s302 + $0x40] sm:$0xff] %v1337
        %1402 = vst [vmem:[%s302 + $0x48] sm:$0xff] %v1338
        %1403 = vst [vmem:[%s302 + $0x50] sm:$0xff] %v1339
        %1404 = vst [vmem:[%s302 + $0x58] sm:$0xff] %v1340
        %1405 = vst [vmem:[%s302 + $0x60] sm:$0xff] %v1341
        %1406 = vst [vmem:[%s302 + $0x68] sm:$0xff] %v1342
        %1407 = vst [vmem:[%s302 + $0x70] sm:$0xff] %v1343
        %1408 = vst [vmem:[%s302 + $0x78] sm:$0xff] %v1344
        %1409 = vst [vmem:[%s302 + $0x80] sm:$0xff] %v1345
        %1410 = vst [vmem:[%s302 + $0x88] sm:$0xff] %v1346
        %1411 = vst [vmem:[%s302 + $0x90] sm:$0xff] %v1347
        %1412 = vst [vmem:[%s302 + $0x98] sm:$0xff] %v1348
        %1413 = vst [vmem:[%s302 + $0xa0] sm:$0xff] %v1349
        %1414 = vst [vmem:[%s302 + $0xa8] sm:$0xff] %v1350
        %1415 = vst [vmem:[%s302 + $0xb0] sm:$0xff] %v1351
        %1416 = vst [vmem:[%s302 + $0xb8] sm:$0xff] %v1352
        %1417 = vst [vmem:[%s302 + $0xc0] sm:$0xff] %v1353
        %1418 = vst [vmem:[%s302 + $0xc8] sm:$0xff] %v1354
        %1419 = vst [vmem:[%s302 + $0xd0] sm:$0xff] %v1355
        %1420 = vst [vmem:[%s302 + $0xd8] sm:$0xff] %v1356
        %1421 = vst [vmem:[%s302 + $0xe0] sm:$0xff] %v1357
        %1422 = vst [vmem:[%s302 + $0xe8] sm:$0xff] %v1358
        %1423 = vst [vmem:[%s302 + $0xf0] sm:$0xff] %v1359
        %1424 = vst [vmem:[%s302 + $0xf8] sm:$0xff] %v1360
        %1425 = vst [vmem:[%s302 + $0x100] sm:$0xff] %v1361
        %1426 = vst [vmem:[%s302 + $0x108] sm:$0xff] %v1362
        %1427 = vst [vmem:[%s302 + $0x110] sm:$0xff] %v1363
        %1428 = vst [vmem:[%s302 + $0x118] sm:$0xff] %v1364
        %1429 = vst [vmem:[%s302 + $0x120] sm:$0xff] %v1365
        %1430 = vst [vmem:[%s302 + $0x128] sm:$0xff] %v1366
        %1431 = vst [vmem:[%s302 + $0x130] sm:$0xff] %v1367
        %1432 = vst [vmem:[%s302 + $0x138] sm:$0xff] %v1368
        %1433 = vst [vmem:[%s302 + $0x140] sm:$0xff] %v1369
        %1434 = vst [vmem:[%s302 + $0x148] sm:$0xff] %v1370
        %1435 = vst [vmem:[%s302 + $0x150] sm:$0xff] %v1371
        %1436 = vst [vmem:[%s302 + $0x158] sm:$0xff] %v1372
        %1437 = vst [vmem:[%s302 + $0x160] sm:$0xff] %v1373
        %1438 = vst [vmem:[%s302 + $0x168] sm:$0xff] %v1374
        %1439 = vst [vmem:[%s302 + $0x170] sm:$0xff] %v1375
        %1440 = vst [vmem:[%s302 + $0x178] sm:$0xff] %v1376
        %1441 = vst [vmem:[%s302 + $0x180] sm:$0xff] %v1377
        %1442 = vst [vmem:[%s302 + $0x188] sm:$0xff] %v1378
        %1443 = vst [vmem:[%s302 + $0x190] sm:$0xff] %v1379
        %1444 = vst [vmem:[%s302 + $0x198] sm:$0xff] %v1380
        %1445 = vst [vmem:[%s302 + $0x1a0] sm:$0xff] %v1381
        %1446 = vst [vmem:[%s302 + $0x1a8] sm:$0xff] %v1382
        %1447 = vst [vmem:[%s302 + $0x1b0] sm:$0xff] %v1383
        %1448 = vst [vmem:[%s302 + $0x1b8] sm:$0xff] %v1384
        %1449 = vst [vmem:[%s302 + $0x1c0] sm:$0xff] %v1385
        %1450 = vst [vmem:[%s302 + $0x1c8] sm:$0xff] %v1386
        %1451 = vst [vmem:[%s302 + $0x1d0] sm:$0xff] %v1387
        %1452 = vst [vmem:[%s302 + $0x1d8] sm:$0xff] %v1388
        %1453 = vst [vmem:[%s302 + $0x1e0] sm:$0xff] %v1389
        %1454 = vst [vmem:[%s302 + $0x1e8] sm:$0xff] %v1390
        %1455 = vst [vmem:[%s302 + $0x1f0] sm:$0xff] %v1391
        %1456 = vst [vmem:[%s302 + $0x1f8] sm:$0xff] %v1392
      $region40: #{generator_forward.9} parent=31 // pred_fallthru
        _
      %s1457 = smul.u32 64, %s21
      %p1458 = scmp.lt.s32.totalorder %s20, 3
      %s1459 = scalar_select %p1458, %s20, 3
      %p1460 = scmp.lt.s32.totalorder %s1457, 255
      %s1461 = scalar_select %p1460, %s1457, 255
      %p1462 = scmp.lt.s32.totalorder %s22, 0
      %s1463 = scalar_select %p1462, %s22, 0
      %s1464 = sadd.s32 %s1463, %s1461
      %s1465 = smul.addr %s1459, 256
      %s1466 = sadd.s32 %s1464, %s1465
      %s1467 = smul.addr %s1466, 8
      %s1468 = scalar_lea.vmem %s3, %s1467
      // Predicated region
      $region41: #{generator_forward.9} parent=31 // pred_check
        %p1469 = pneg %p148
      $region42: #{generator_forward.9} parent=31 // pred_check_branch
        %1471 = sbr.rel (%p1469) target = $region44
      $region43: #{generator_forward.9} parent=31 // pred_region
        %s1472 = smul.u32 64, %s21
      $region44: #{generator_forward.9} parent=31 // pred_fallthru
        _
    $region32: #{generator_forward.9} parent=5 // pred_fallthru
      _
    %p1473 = scmp.le.s32.totalorder 2, %s9
    // Predicated region
    $region45: #{generator_forward.9} parent=5 // pred_check
      %p1474 = pneg %p1473
    $region46: #{generator_forward.9} parent=5 // pred_check_branch
      %1476 = sbr.rel (%p1474) target = $region48
    $region47: #{generator_forward.9} parent=5 // pred_region
      %s1477 = ssub.s32 %s9, 2
      // Predicated region
      $region49: #{generator_forward.9} parent=47 // pred_check
        %p1478 = pneg %p154
      $region50: #{generator_forward.9} parent=47 // pred_check_branch
        %1480 = sbr.rel (%p1478) target = $region52
      $region51: #{generator_forward.9} parent=47 // pred_region
        %s1481 = smul.u32 64, %s25
        %p1482 = scmp.lt.s32.totalorder %s24, 3
        %s1483 = scalar_select %p1482, %s24, 3
        %p1484 = scmp.lt.s32.totalorder %s1481, 255
        %s1485 = scalar_select %p1484, %s1481, 255
        %p1486 = scmp.lt.s32.totalorder %s26, 0
        %s1487 = scalar_select %p1486, %s26, 0
        %s1488 = sadd.s32 %s1487, %s1485
        %s1489 = smul.addr %s1483, 256
        %s1490 = sadd.s32 %s1488, %s1489
        %s1491 = smul.addr %s1490, 8
        %s1492 = scalar_lea.vmem %s3, %s1491
      $region52: #{generator_forward.9} parent=47 // pred_fallthru
        _
    $region48: #{generator_forward.9} parent=5 // pred_fallthru
      _
  $region6: #{generator_forward.9} parent=0 // loop_footer
    %s13 = sadd.s32 1, %s9
  $region7: #{generator_forward.9} parent=0 // loop_footer_branch
    %8 = sbr.rel target = $region3
  $region8: #{generator_forward.9} parent=0 // loop_exit
    _

</llo_original>
